<compile_context>
chip_gen: v7x
topology: tpu7x:2x2x1
jax: 0.10.0
libtpu: 0.0.40
codegen_flags: <defaults>
</compile_context>

<pallas_src>
import numpy as np

import jax
import jax.numpy as jnp
from jax import lax
from jax.experimental import pallas as pl
from jax.experimental.pallas import tpu as pltpu


# ---------------------------------------------------------------------------
# Pallas kernel (all three heads fused, single output slab)
# ---------------------------------------------------------------------------
def _make_fused_kernel(classes, regression, crt_pad):
    """classes/regression/crt_pad are Python ints baked into the kernel."""

    def kernel(x_ref, w1_ref, shift_ref, w2_ref, b2_ref, out_ref):
        # x_ref    : (1, 9*Cin, tile) bf16   im2col, channel-concat, spatial-last
        # w1_ref   : (3*cm, 9*Cin)    bf16   all three 3x3 convs, BN scale folded
        # shift_ref: (3*cm, 1)        f32    folded conv bias + BN shift
        # w2_ref   : (crt_pad, 3*cm)  bf16   block-diagonal fused 1x1 head weight
        # b2_ref   : (crt_pad, 1)     f32
        # out_ref  : (1, crt_pad, tile) f32  rows = [class | reg | size2d | pad]

        # One fat MXU matmul: (3*cm, 9*Cin) @ (9*Cin, tile) -> (3*cm, tile) f32.
        h = jnp.dot(w1_ref[...], x_ref[0], preferred_element_type=jnp.float32)
        # folded conv1 bias + eval-mode BatchNorm shift + ReLU
        h = jnp.maximum(h + shift_ref[...], 0.0)

        # Single block-diagonal 1x1 head matmul (bf16 operands, f32 acc).
        y = jnp.dot(w2_ref[...], h.astype(jnp.bfloat16),
                    preferred_element_type=jnp.float32) + b2_ref[...]

        # ---- per-row post-processing masks ----------------------------------
        row = lax.broadcasted_iota(jnp.int32, (crt_pad, 1), 0)
        is_cls = row < classes
        is_dim = jnp.logical_and(row >= classes + 3, row < classes + 6)
        is_ori = jnp.logical_and(row >= classes + 6, row < classes + regression)

        sig = 1.0 / (1.0 + jnp.exp(-y))

        # L2-normalize the two 'ori' rows per pixel (F.normalize, eps=1e-12).
        sq = jnp.where(is_ori, y * y, 0.0)
        inv_norm = lax.rsqrt(
            jnp.maximum(jnp.sum(sq, axis=0, keepdims=True), 1e-24))

        out = jnp.where(is_cls, jnp.clip(sig, 1e-4, 1.0 - 1e-4), y)
        out = jnp.where(is_dim, sig - 0.5, out)
        out = jnp.where(is_ori, y * inv_norm, out)

        out_ref[0] = out.astype(out_ref.dtype)

    return kernel


# ---------------------------------------------------------------------------
# One-time parameter packing (hoisted out of the per-call forward)
# ---------------------------------------------------------------------------
def pack_smoke_predictor_params(params):
    cm = params["class"]["w1"].shape[-1]                 # head_conv
    cin = params["class"]["w1"].shape[2]
    classes = params["class"]["w2"].shape[-1]
    regression = params["reg"]["w2"].shape[-1]
    cm3, k9 = 3 * cm, 9 * cin
    crt = classes + regression + 2
    crt_pad = -(-crt // 8) * 8                           # pad rows to sublane mult

    order = ("class", "reg", "size2d")

    # Fold conv1 bias into the (eval-mode) BN affine, fold BN scale into the
    # conv weight in f32, then cast the fused conv weight to bf16.
    w1_blocks, shifts = [], []
    for k in order:
        p = params[k]
        scale = p["bn_scale"]
        shifts.append(p["bn_shift"] + scale * p["b1"])
        w1s = p["w1"] * scale[None, None, None, :]       # (3,3,cin,cm) f32
        w1_blocks.append(w1s.reshape(k9, cm).T)          # (cm, 9*cin)
    w1s_all = jnp.concatenate(w1_blocks, axis=0).astype(jnp.bfloat16)   # (3cm, 9cin)
    shift_all = jnp.concatenate(shifts).reshape(cm3, 1).astype(jnp.float32)

    # Block-diagonal fused 1x1 head weight (crt_pad, 3*cm), bf16.
    w2bd = jnp.zeros((crt_pad, cm3), jnp.float32)
    w2bd = w2bd.at[0:classes, 0:cm].set(params["class"]["w2"].T)
    w2bd = w2bd.at[classes:classes + regression, cm:2 * cm].set(
        params["reg"]["w2"].T)
    w2bd = w2bd.at[classes + regression:crt, 2 * cm:3 * cm].set(
        params["size2d"]["w2"].T)
    w2bd = w2bd.astype(jnp.bfloat16)

    b2 = jnp.zeros((crt_pad, 1), jnp.float32)
    b2 = b2.at[0:classes, 0].set(params["class"]["b2"])
    b2 = b2.at[classes:classes + regression, 0].set(params["reg"]["b2"])
    b2 = b2.at[classes + regression:crt, 0].set(params["size2d"]["b2"])

    return dict(w1s=w1s_all, shift=shift_all, w2bd=w2bd, b2=b2)


# ---------------------------------------------------------------------------
# JAX wrapper (per-call forward: im2col + one pallas_call + cheap slices)
# ---------------------------------------------------------------------------
def smoke_predictor_forward(features_nchw, packed, *, classes, regression,
                            tile=1024):
    """Returns [heatmap_head, head_regression, size_2d_reg], each NCHW."""
    n, cin, h, w = features_nchw.shape
    hw = h * w
    w1s, shift, w2bd, b2 = (packed["w1s"], packed["shift"],
                            packed["w2bd"], packed["b2"])
    cm3, k9 = w1s.shape
    crt_pad = w2bd.shape[0]
    assert k9 == 9 * cin, "packed weights do not match input channel count"

    tile = min(tile, hw)
    assert hw % tile == 0, "H*W must be a multiple of the spatial tile"

    # --- shared im2col: (N, 9*Cin, H*W), channel-concat, bf16 ----------------
    xb = features_nchw.astype(jnp.bfloat16)
    xp = jnp.pad(xb, ((0, 0), (0, 0), (1, 1), (1, 1)))
    cols = [xp[:, :, dy:dy + h, dx:dx + w].reshape(n, cin, hw)
            for dy in range(3) for dx in range(3)]
    xcols = jnp.concatenate(cols, axis=1)                       # (N, 9*Cin, HW)

    const = lambda i, s: (0, 0)
    out = pl.pallas_call(
        _make_fused_kernel(classes, regression, crt_pad),
        out_shape=jax.ShapeDtypeStruct((n, crt_pad, hw), jnp.float32),
        grid_spec=pltpu.PrefetchScalarGridSpec(
            num_scalar_prefetch=0,
            grid=(n, hw // tile),
            in_specs=[
                pl.BlockSpec((1, k9, tile), lambda i, s: (i, 0, s)),
                pl.BlockSpec((cm3, k9), const),
                pl.BlockSpec((cm3, 1), const),
                pl.BlockSpec((crt_pad, cm3), const),
                pl.BlockSpec((crt_pad, 1), const),
            ],
            out_specs=pl.BlockSpec((1, crt_pad, tile), lambda i, s: (i, 0, s)),
        ),
        compiler_params=pltpu.CompilerParams(
            dimension_semantics=("parallel", "parallel"),
            vmem_limit_bytes=48 * 1024 * 1024),   # fits v7x's 64 MiB VMEM
    )(xcols, w1s, shift, w2bd, b2)

    # outputs are already NCHW-ordered; slices/reshapes are cheap splits
    heat = out[:, :classes].reshape(n, classes, h, w)
    regr = out[:, classes:classes + regression].reshape(n, regression, h, w)
    sz = out[:, classes + regression:classes + regression + 2].reshape(n, 2, h, w)
    return [heat, regr, sz]


# ---------------------------------------------------------------------------
# SMOKEPredictor parameters
# ---------------------------------------------------------------------------
def _fold_bn(gamma, beta, mean, var, eps=1e-5):
    scale = gamma / jnp.sqrt(var + eps)
    shift = beta - mean * scale
    return scale, shift


def init_smoke_predictor_params(key, in_channels, head_conv, classes,
                                regression):
    ks = jax.random.split(key, 16)
    s = 0.05

    def nrm(k, shape):
        return s * jax.random.normal(k, shape, jnp.float32)

    params = {}

    # class_head: conv3x3(+bias) -> BN -> ReLU -> conv1x1 (bias filled -2.19)
    g = 1.0 + 0.1 * jax.random.normal(ks[2], (head_conv,), jnp.float32)
    b = 0.1 * jax.random.normal(ks[3], (head_conv,), jnp.float32)
    m = 0.1 * jax.random.normal(ks[4], (head_conv,), jnp.float32)
    v = 0.5 + jnp.abs(jax.random.normal(ks[5], (head_conv,), jnp.float32))
    sc, sh = _fold_bn(g, b, m, v)
    params["class"] = dict(
        w1=nrm(ks[0], (3, 3, in_channels, head_conv)),
        b1=nrm(ks[1], (head_conv,)),
        bn_scale=sc, bn_shift=sh,
        w2=nrm(ks[6], (head_conv, classes)),
        b2=jnp.full((classes,), -2.19, jnp.float32),
    )

    # regression_head: _fill_fc_weights -> conv biases are 0
    g = 1.0 + 0.1 * jax.random.normal(ks[9], (head_conv,), jnp.float32)
    b = 0.1 * jax.random.normal(ks[10], (head_conv,), jnp.float32)
    m = 0.1 * jax.random.normal(ks[11], (head_conv,), jnp.float32)
    v = 0.5 + jnp.abs(jax.random.normal(ks[12], (head_conv,), jnp.float32))
    sc, sh = _fold_bn(g, b, m, v)
    params["reg"] = dict(
        w1=nrm(ks[7], (3, 3, in_channels, head_conv)),
        b1=jnp.zeros((head_conv,), jnp.float32),
        bn_scale=sc, bn_shift=sh,
        w2=nrm(ks[8], (head_conv, regression)),
        b2=jnp.zeros((regression,), jnp.float32),
    )

    # size_2d: no BN (identity affine), conv biases are 0
    params["size2d"] = dict(
        w1=nrm(ks[13], (3, 3, in_channels, head_conv)),
        b1=jnp.zeros((head_conv,), jnp.float32),
        bn_scale=jnp.ones((head_conv,), jnp.float32),
        bn_shift=jnp.zeros((head_conv,), jnp.float32),
        w2=nrm(ks[14], (head_conv, 2)),
        b2=jnp.zeros((2,), jnp.float32),
    )
    return params


# ---------------------------------------------------------------------------
# Pure-JAX reference (applies the same bf16 operand casts as the kernel)
# ---------------------------------------------------------------------------
def _ref_forward(features, params, classes, regression):
    x = features.astype(jnp.bfloat16).astype(jnp.float32)
    outs = {}
    for k in ("class", "reg", "size2d"):
        p = params[k]
        scale = p["bn_scale"]
        shift = p["bn_shift"] + scale * p["b1"]
        w1s = (p["w1"] * scale[None, None, None, :]).astype(
            jnp.bfloat16).astype(jnp.float32)
        y = lax.conv_general_dilated(
            x, w1s, (1, 1), "SAME",
            dimension_numbers=("NCHW", "HWIO", "NCHW"))
        h = jnp.maximum(y + shift[None, :, None, None], 0.0)
        hb = h.astype(jnp.bfloat16).astype(jnp.float32)
        w2b = p["w2"].astype(jnp.bfloat16).astype(jnp.float32)
        outs[k] = (jnp.einsum("nchw,cd->ndhw", hb, w2b)
                   + p["b2"][None, :, None, None])

    heat = jnp.clip(jax.nn.sigmoid(outs["class"]), 1e-4, 1.0 - 1e-4)
    reg = outs["reg"]
    dim = jax.nn.sigmoid(reg[:, 3:6]) - 0.5
    ori = reg[:, 6:8]
    ori = ori / jnp.maximum(
        jnp.sqrt(jnp.sum(ori * ori, axis=1, keepdims=True)), 1e-12)
    reg = jnp.concatenate([reg[:, :3], dim, ori], axis=1)
    return [heat, reg, outs["size2d"]]


# ---------------------------------------------------------------------------
if __name__ == "__main__":
    key = jax.random.PRNGKey(0)
    N, Cin, H, W = 2, 64, 16, 16          # small shapes consistent with module
    classes, head_conv, regression = 3, 256, 8

    k_x, k_p = jax.random.split(key)
    features = jax.random.normal(k_x, (N, Cin, H, W), jnp.float32)  # NCHW
    params = init_smoke_predictor_params(k_p, Cin, head_conv, classes,
                                         regression)

    # Pack weights ONCE (outside the per-call forward).
    packed = pack_smoke_predictor_params(params)
    packed = jax.tree_util.tree_map(jnp.asarray, packed)

    fwd = jax.jit(smoke_predictor_forward,
                  static_argnames=("classes", "regression", "tile"))
    heatmap, head_reg, size_2d = fwd(features, packed,
                                     classes=classes, regression=regression)
    jax.block_until_ready((heatmap, head_reg, size_2d))

    # sanity check against a pure-JAX reference
    refs = _ref_forward(features, params, classes, regression)
    for got, ref in zip((heatmap, head_reg, size_2d), refs):
        assert got.shape == ref.shape, (got.shape, ref.shape)
        np.testing.assert_allclose(np.asarray(got), np.asarray(ref),
                                   rtol=2e-3, atol=2e-3)

    print("KERNEL_OK")
</pallas_src>

<mosaic_0001>
module attributes {stable_mosaic.version = 11 : i64} {
  func.func @kernel(%arg0: i32, %arg1: i32, %arg2: memref<1x576x256xbf16, #tpu.memory_space<vmem>>, %arg3: memref<768x576xbf16, #tpu.memory_space<vmem>>, %arg4: memref<768x1xf32, #tpu.memory_space<vmem>>, %arg5: memref<16x768xbf16, #tpu.memory_space<vmem>>, %arg6: memref<16x1xf32, #tpu.memory_space<vmem>>, %arg7: memref<1x16x256xf32, #tpu.memory_space<vmem>>) attributes {dimension_semantics = [#tpu.dimension_semantics<parallel>, #tpu.dimension_semantics<parallel>], iteration_bounds = array<i64: 2, 1>, scalar_prefetch = 0 : i64, scratch_operands = 0 : i64, tpu.core_type = #tpu.core_type<tc>, window_params = [{transform_indices = @transform_0, window_bounds = array<i64: 1, 576, 256>}, {pipeline_mode = #tpu.pipeline_mode<synchronous>, transform_indices = @transform_1, window_bounds = array<i64: 768, 576>}, {pipeline_mode = #tpu.pipeline_mode<synchronous>, transform_indices = @transform_2, window_bounds = array<i64: 768, 1>}, {pipeline_mode = #tpu.pipeline_mode<synchronous>, transform_indices = @transform_3, window_bounds = array<i64: 16, 768>}, {pipeline_mode = #tpu.pipeline_mode<synchronous>, transform_indices = @transform_4, window_bounds = array<i64: 16, 1>}, {transform_indices = @transform_5, window_bounds = array<i64: 1, 16, 256>}]} {
    %c0 = arith.constant 0 : index
    %c0_0 = arith.constant 0 : index
    %0 = vector.load %arg3[%c0, %c0_0] : memref<768x576xbf16, #tpu.memory_space<vmem>>, vector<768x576xbf16>
    %c0_1 = arith.constant 0 : index
    %c0_2 = arith.constant 0 : index
    %c0_3 = arith.constant 0 : index
    %1 = vector.load %arg2[%c0_1, %c0_2, %c0_3] : memref<1x576x256xbf16, #tpu.memory_space<vmem>>, vector<1x576x256xbf16>
    %2 = vector.shape_cast %1 : vector<1x576x256xbf16> to vector<576x256xbf16>
    %cst = arith.constant dense<0.000000e+00> : vector<768x256xf32>
    %3 = tpu.matmul %0, %2, %cst {dimension_numbers = #tpu.dot_dimension_numbers<[1], [0], [0], [1], [0, 0, 1, 1], [], []>} : vector<768x576xbf16>, vector<576x256xbf16>, vector<768x256xf32> -> vector<768x256xf32>
    %c0_4 = arith.constant 0 : index
    %c0_5 = arith.constant 0 : index
    %4 = vector.load %arg4[%c0_4, %c0_5] : memref<768x1xf32, #tpu.memory_space<vmem>>, vector<768x1xf32>
    %5 = vector.broadcast %4 : vector<768x1xf32> to vector<768x256xf32>
    %6 = arith.addf %3, %5 : vector<768x256xf32>
    %cst_6 = arith.constant 0.000000e+00 : f32
    %7 = vector.broadcast %cst_6 : f32 to vector<768x256xf32>
    %8 = arith.maximumf %6, %7 : vector<768x256xf32>
    %c0_7 = arith.constant 0 : index
    %c0_8 = arith.constant 0 : index
    %9 = vector.load %arg5[%c0_7, %c0_8] : memref<16x768xbf16, #tpu.memory_space<vmem>>, vector<16x768xbf16>
    %10 = arith.truncf %8 : vector<768x256xf32> to vector<768x256xbf16>
    %cst_9 = arith.constant dense<0.000000e+00> : vector<16x256xf32>
    %11 = tpu.matmul %9, %10, %cst_9 {dimension_numbers = #tpu.dot_dimension_numbers<[1], [0], [0], [1], [0, 0, 1, 1], [], []>} : vector<16x768xbf16>, vector<768x256xbf16>, vector<16x256xf32> -> vector<16x256xf32>
    %c0_10 = arith.constant 0 : index
    %c0_11 = arith.constant 0 : index
    %12 = vector.load %arg6[%c0_10, %c0_11] : memref<16x1xf32, #tpu.memory_space<vmem>>, vector<16x1xf32>
    %13 = vector.broadcast %12 : vector<16x1xf32> to vector<16x256xf32>
    %14 = arith.addf %11, %13 : vector<16x256xf32>
    %15 = tpu.iota {dimensions = array<i32: 0>} : vector<16x1xi32>
    %c3_i32 = arith.constant 3 : i32
    %16 = vector.broadcast %c3_i32 : i32 to vector<16x1xi32>
    %17 = arith.cmpi slt, %15, %16 : vector<16x1xi32>
    %c6_i32 = arith.constant 6 : i32
    %18 = vector.broadcast %c6_i32 : i32 to vector<16x1xi32>
    %19 = arith.cmpi sge, %15, %18 : vector<16x1xi32>
    %c9_i32 = arith.constant 9 : i32
    %20 = vector.broadcast %c9_i32 : i32 to vector<16x1xi32>
    %21 = arith.cmpi slt, %15, %20 : vector<16x1xi32>
    %22 = arith.andi %19, %21 : vector<16x1xi1>
    %c9_i32_12 = arith.constant 9 : i32
    %23 = vector.broadcast %c9_i32_12 : i32 to vector<16x1xi32>
    %24 = arith.cmpi sge, %15, %23 : vector<16x1xi32>
    %c11_i32 = arith.constant 11 : i32
    %25 = vector.broadcast %c11_i32 : i32 to vector<16x1xi32>
    %26 = arith.cmpi slt, %15, %25 : vector<16x1xi32>
    %27 = arith.andi %24, %26 : vector<16x1xi1>
    %cst_13 = arith.constant 0.000000e+00 : f32
    %28 = vector.broadcast %cst_13 : f32 to vector<16x256xf32>
    %29 = arith.subf %28, %14 : vector<16x256xf32>
    %30 = math.exp %29 : vector<16x256xf32>
    %cst_14 = arith.constant 1.000000e+00 : f32
    %31 = vector.broadcast %cst_14 : f32 to vector<16x256xf32>
    %32 = arith.addf %31, %30 : vector<16x256xf32>
    %cst_15 = arith.constant 1.000000e+00 : f32
    %33 = vector.broadcast %cst_15 : f32 to vector<16x256xf32>
    %34 = arith.divf %33, %32 : vector<16x256xf32>
    %35 = arith.mulf %14, %14 : vector<16x256xf32>
    %cst_16 = arith.constant 0.000000e+00 : f32
    %36 = vector.shape_cast %27 : vector<16x1xi1> to vector<16x1xi1>
    %37 = vector.broadcast %36 : vector<16x1xi1> to vector<16x256xi1>
    %38 = vector.broadcast %cst_16 : f32 to vector<16x256xf32>
    %39 = arith.select %37, %35, %38 : vector<16x256xi1>, vector<16x256xf32>
    %cst_17 = arith.constant dense<0.000000e+00> : vector<256xf32>
    %40 = vector.multi_reduction <add>, %39, %cst_17 [0] : vector<16x256xf32> to vector<256xf32>
    %41 = vector.shape_cast %40 : vector<256xf32> to vector<1x256xf32>
    %cst_18 = arith.constant 1.000000e-24 : f32
    %42 = vector.broadcast %cst_18 : f32 to vector<1x256xf32>
    %43 = arith.maximumf %41, %42 : vector<1x256xf32>
    %44 = math.rsqrt %43 : vector<1x256xf32>
    %cst_19 = arith.constant 9.99999974E-5 : f32
    %cst_20 = arith.constant 0.999899983 : f32
    %45 = vector.broadcast %cst_19 : f32 to vector<16x256xf32>
    %46 = arith.maximumf %45, %34 : vector<16x256xf32>
    %47 = vector.broadcast %cst_20 : f32 to vector<16x256xf32>
    %48 = arith.minimumf %47, %46 : vector<16x256xf32>
    %49 = vector.shape_cast %17 : vector<16x1xi1> to vector<16x1xi1>
    %50 = vector.broadcast %49 : vector<16x1xi1> to vector<16x256xi1>
    %51 = arith.select %50, %48, %14 : vector<16x256xi1>, vector<16x256xf32>
    %cst_21 = arith.constant 5.000000e-01 : f32
    %52 = vector.broadcast %cst_21 : f32 to vector<16x256xf32>
    %53 = arith.subf %34, %52 : vector<16x256xf32>
    %54 = vector.shape_cast %22 : vector<16x1xi1> to vector<16x1xi1>
    %55 = vector.broadcast %54 : vector<16x1xi1> to vector<16x256xi1>
    %56 = arith.select %55, %53, %51 : vector<16x256xi1>, vector<16x256xf32>
    %57 = vector.broadcast %44 : vector<1x256xf32> to vector<16x256xf32>
    %58 = arith.mulf %14, %57 : vector<16x256xf32>
    %59 = vector.shape_cast %27 : vector<16x1xi1> to vector<16x1xi1>
    %60 = vector.broadcast %59 : vector<16x1xi1> to vector<16x256xi1>
    %61 = arith.select %60, %58, %56 : vector<16x256xi1>, vector<16x256xf32>
    %c0_22 = arith.constant 0 : index
    %c0_23 = arith.constant 0 : index
    %c0_24 = arith.constant 0 : index
    %62 = vector.load %arg7[%c0_22, %c0_23, %c0_24] : memref<1x16x256xf32, #tpu.memory_space<vmem>>, vector<1x16x256xf32>
    %63 = vector.shape_cast %62 : vector<1x16x256xf32> to vector<16x256xf32>
    %64 = vector.shape_cast %61 : vector<16x256xf32> to vector<1x16x256xf32>
    tpu.vector_store %arg7[%c0_22, %c0_23, %c0_24], %64 {strides = array<i32>} : memref<1x16x256xf32, #tpu.memory_space<vmem>>, vector<1x16x256xf32>,
    return
  }
  func.func @transform_0(%arg0: i32, %arg1: i32) -> (i32, i32, i32) {
    %c0_i32 = arith.constant 0 : i32
    %c0_i32_0 = arith.constant 0 : i32
    return %arg0, %c0_i32, %arg1 : i32, i32, i32
  }
  func.func @transform_1(%arg0: i32, %arg1: i32) -> (i32, i32) {
    %c0_i32 = arith.constant 0 : i32
    %c0_i32_0 = arith.constant 0 : i32
    %c0_i32_1 = arith.constant 0 : i32
    return %c0_i32, %c0_i32_0 : i32, i32
  }
  func.func @transform_2(%arg0: i32, %arg1: i32) -> (i32, i32) {
    %c0_i32 = arith.constant 0 : i32
    %c0_i32_0 = arith.constant 0 : i32
    %c0_i32_1 = arith.constant 0 : i32
    return %c0_i32, %c0_i32_0 : i32, i32
  }
  func.func @transform_3(%arg0: i32, %arg1: i32) -> (i32, i32) {
    %c0_i32 = arith.constant 0 : i32
    %c0_i32_0 = arith.constant 0 : i32
    %c0_i32_1 = arith.constant 0 : i32
    return %c0_i32, %c0_i32_0 : i32, i32
  }
  func.func @transform_4(%arg0: i32, %arg1: i32) -> (i32, i32) {
    %c0_i32 = arith.constant 0 : i32
    %c0_i32_0 = arith.constant 0 : i32
    %c0_i32_1 = arith.constant 0 : i32
    return %c0_i32, %c0_i32_0 : i32, i32
  }
  func.func @transform_5(%arg0: i32, %arg1: i32) -> (i32, i32, i32) {
    %c0_i32 = arith.constant 0 : i32
    %c0_i32_0 = arith.constant 0 : i32
    return %arg0, %c0_i32, %arg1 : i32, i32, i32
  }
}

</mosaic_0001>

<llo_original>
// kernel: smoke_predictor_forward.1
$region0: #{smoke_predictor_forward.1}
  #allocation0 [shape = 'u32[]', space=smem, size = 0x4, offset = 0x4, fixed_abs, tag = 'smem constant byte address 0x4 - core index']
  #allocation1 [shape = 'u32[144,128]{1,0:T(1,128)}', space=vmem, size = 0x12000, scoped, tag = 'internal scratch']
  %s0 = inlined_call_operand.vmem [shape: bf16[2,576,256], index: 0, kind: input, shape index: {}]
  %s1 = inlined_call_operand.vmem [shape: bf16[768,576], index: 1, kind: input, shape index: {}]
  %s2 = inlined_call_operand.vmem [shape: f32[768,1], index: 2, kind: input, shape index: {}]
  %s3 = inlined_call_operand.vmem [shape: bf16[16,768], index: 3, kind: input, shape index: {}]
  %s4 = inlined_call_operand.vmem [shape: f32[16,1], index: 4, kind: input, shape index: {}]
  %s5 = inlined_call_operand.vmem [shape: f32[2,16,256], index: 5, kind: output, shape index: {}]
  %s6 = sld [smem:[#allocation0]]
  $region53: #{smoke_predictor_forward.1} parent=0
    _
  %s8 = ssub.s32 1, %s6
  %s9 = scalar_select 0, %s8, %s6
  loop: start=0, step=1, limit=4
  $region2: #{smoke_predictor_forward.1} parent=0 // loop_pre_header
    _
  $region3: #{smoke_predictor_forward.1} parent=0 // loop_header
    %s11 = sphi 0, %s15
    %p12 = scmp.ge.s32.totalorder %s11, 4
    %s18 = sphi 0, %s30
    %s19 = sphi 0, %s26
    %s20 = sphi 0, %s18
    %s21 = sphi 0, %s19
    %s22 = sphi 0, %s20
    %s23 = sphi 0, %s21
    %s35 = sphi 0, %s37
    %s38 = sphi 0, %s35
    %s39 = sphi 0, %s38
    %s55 = sphi 0, %s39
    %s59 = sphi 0, %s59
    %s61 = sphi 0, %s59
    %s62 = sphi 0, %s61
    %s76 = sphi 0, %s62
    %s80 = sphi 0, %s80
    %s82 = sphi 0, %s80
    %s83 = sphi 0, %s82
    %s97 = sphi 0, %s83
    %s101 = sphi 0, %s101
    %s103 = sphi 0, %s101
    %s104 = sphi 0, %s103
    %s118 = sphi 0, %s104
    %s122 = sphi 0, %s122
    %s124 = sphi 0, %s122
    %s125 = sphi 0, %s124
    %s139 = sphi 0, %s125
    %s147 = sphi 0, %s149
    %s150 = sphi 0, %s147
    %s151 = sphi 0, %s150
    %s167 = sphi 0, %s151
  $region4: #{smoke_predictor_forward.1} parent=0 // loop_header_branch
    %14 = sbr.rel (%p12) target = $region8
  $region5: #{smoke_predictor_forward.1} parent=0 // loop_body
    %s16 = ssub.s32 %s11, 1
    %s17 = ssub.s32 %s11, 2
    %s24 = sadd.s32 1, %s19
    %p25 = scmp.ge.s32.totalorder %s24, 1
    %s26 = scalar_select %p25, 0, %s24
    %s27 = sadd.s32 1, %s18
    %s28 = scalar_select %p25, %s27, %s18
    %p29 = scmp.ge.s32.totalorder %s28, 2
    %s30 = scalar_select %p29, 0, %s28
    %s31 = ssub.s32 %s18, %s30
    %s32 = ssub.s32 %s19, %s26
    %s33 = sor.u32 %s31, %s32
    %p34 = scmp.eq.s32.totalorder %s33, 0
    %s36 = sadd.s32 %s35, 1
    %s37 = scalar_select %p34, %s35, %s36
    %p40 = pneg %p34
    %p41 = scmp.eq.s32.totalorder %s11, 1
    %p42 = por %p40, %p41
    %p43 = scmp.ne.s32.totalorder %s35, %s38
    %p44 = scmp.eq.s32.totalorder %s11, 0
    %p45 = por %p43, %p44
    %p46 = scmp.ne.s32.totalorder %s35, %s38
    %p47 = scmp.eq.s32.totalorder %s16, 1
    %p48 = por %p46, %p47
    %p49 = scmp.ne.s32.totalorder %s38, %s39
    %p50 = scmp.eq.s32.totalorder %s16, 0
    %p51 = por %p49, %p50
    %p52 = scmp.ne.s32.totalorder %s38, %s39
    %p53 = scmp.eq.s32.totalorder %s17, 1
    %p54 = por %p52, %p53
    %p56 = scmp.ne.s32.totalorder %s39, %s55
    %p57 = scmp.eq.s32.totalorder %s17, 0
    %p58 = por %p56, %p57
    %s60 = sadd.s32 %s59, 1
    %p63 = scmp.eq.s32.totalorder %s11, 1
    %p64 = scmp.ne.s32.totalorder %s59, %s61
    %p65 = scmp.eq.s32.totalorder %s11, 0
    %p66 = por %p64, %p65
    %p67 = scmp.ne.s32.totalorder %s59, %s61
    %p68 = scmp.eq.s32.totalorder %s16, 1
    %p69 = por %p67, %p68
    %p70 = scmp.ne.s32.totalorder %s61, %s62
    %p71 = scmp.eq.s32.totalorder %s16, 0
    %p72 = por %p70, %p71
    %p73 = scmp.ne.s32.totalorder %s61, %s62
    %p74 = scmp.eq.s32.totalorder %s17, 1
    %p75 = por %p73, %p74
    %p77 = scmp.ne.s32.totalorder %s62, %s76
    %p78 = scmp.eq.s32.totalorder %s17, 0
    %p79 = por %p77, %p78
    %s81 = sadd.s32 %s80, 1
    %p84 = scmp.eq.s32.totalorder %s11, 1
    %p85 = scmp.ne.s32.totalorder %s80, %s82
    %p86 = scmp.eq.s32.totalorder %s11, 0
    %p87 = por %p85, %p86
    %p88 = scmp.ne.s32.totalorder %s80, %s82
    %p89 = scmp.eq.s32.totalorder %s16, 1
    %p90 = por %p88, %p89
    %p91 = scmp.ne.s32.totalorder %s82, %s83
    %p92 = scmp.eq.s32.totalorder %s16, 0
    %p93 = por %p91, %p92
    %p94 = scmp.ne.s32.totalorder %s82, %s83
    %p95 = scmp.eq.s32.totalorder %s17, 1
    %p96 = por %p94, %p95
    %p98 = scmp.ne.s32.totalorder %s83, %s97
    %p99 = scmp.eq.s32.totalorder %s17, 0
    %p100 = por %p98, %p99
    %s102 = sadd.s32 %s101, 1
    %p105 = scmp.eq.s32.totalorder %s11, 1
    %p106 = scmp.ne.s32.totalorder %s101, %s103
    %p107 = scmp.eq.s32.totalorder %s11, 0
    %p108 = por %p106, %p107
    %p109 = scmp.ne.s32.totalorder %s101, %s103
    %p110 = scmp.eq.s32.totalorder %s16, 1
    %p111 = por %p109, %p110
    %p112 = scmp.ne.s32.totalorder %s103, %s104
    %p113 = scmp.eq.s32.totalorder %s16, 0
    %p114 = por %p112, %p113
    %p115 = scmp.ne.s32.totalorder %s103, %s104
    %p116 = scmp.eq.s32.totalorder %s17, 1
    %p117 = por %p115, %p116
    %p119 = scmp.ne.s32.totalorder %s104, %s118
    %p120 = scmp.eq.s32.totalorder %s17, 0
    %p121 = por %p119, %p120
    %s123 = sadd.s32 %s122, 1
    %p126 = scmp.eq.s32.totalorder %s11, 1
    %p127 = scmp.ne.s32.totalorder %s122, %s124
    %p128 = scmp.eq.s32.totalorder %s11, 0
    %p129 = por %p127, %p128
    %p130 = scmp.ne.s32.totalorder %s122, %s124
    %p131 = scmp.eq.s32.totalorder %s16, 1
    %p132 = por %p130, %p131
    %p133 = scmp.ne.s32.totalorder %s124, %s125
    %p134 = scmp.eq.s32.totalorder %s16, 0
    %p135 = por %p133, %p134
    %p136 = scmp.ne.s32.totalorder %s124, %s125
    %p137 = scmp.eq.s32.totalorder %s17, 1
    %p138 = por %p136, %p137
    %p140 = scmp.ne.s32.totalorder %s125, %s139
    %p141 = scmp.eq.s32.totalorder %s17, 0
    %p142 = por %p140, %p141
    %s143 = ssub.s32 %s18, %s30
    %s144 = ssub.s32 %s19, %s26
    %s145 = sor.u32 %s143, %s144
    %p146 = scmp.eq.s32.totalorder %s145, 0
    %s148 = sadd.s32 %s147, 1
    %s149 = scalar_select %p146, %s147, %s148
    %p152 = pneg %p146
    %p153 = scmp.eq.s32.totalorder %s11, 1
    %p154 = por %p152, %p153
    %p155 = scmp.ne.s32.totalorder %s147, %s150
    %p156 = scmp.eq.s32.totalorder %s11, 0
    %p157 = por %p155, %p156
    %p158 = scmp.ne.s32.totalorder %s147, %s150
    %p159 = scmp.eq.s32.totalorder %s16, 1
    %p160 = por %p158, %p159
    %p161 = scmp.ne.s32.totalorder %s150, %s151
    %p162 = scmp.eq.s32.totalorder %s16, 0
    %p163 = por %p161, %p162
    %p164 = scmp.ne.s32.totalorder %s150, %s151
    %p165 = scmp.eq.s32.totalorder %s17, 1
    %p166 = por %p164, %p165
    %p168 = scmp.ne.s32.totalorder %s151, %s167
    %p169 = scmp.eq.s32.totalorder %s17, 0
    %p170 = por %p168, %p169
    %p171 = scmp.le.s32.totalorder 1, %s11
    %p172 = scmp.lt.s32.totalorder %s11, 3
    %p173 = pnand %p171, %p172
    %p174 = pneg %p173
    // Predicated region
    $region9: #{smoke_predictor_forward.1} parent=5 // pred_check
      _
    $region10: #{smoke_predictor_forward.1} parent=5 // pred_check_branch
      %176 = sbr.rel (%p173) target = $region12
    $region11: #{smoke_predictor_forward.1} parent=5 // pred_region
      %s177 = ssub.s32 %s11, 1
      // Predicated region
      $region13: #{smoke_predictor_forward.1} parent=11 // pred_check
        %p178 = pneg %p72
      $region14: #{smoke_predictor_forward.1} parent=11 // pred_check_branch
        %180 = sbr.rel (%p178) target = $region16
      $region15: #{smoke_predictor_forward.1} parent=11 // pred_region
        _
      $region16: #{smoke_predictor_forward.1} parent=11 // pred_fallthru
        _
      // Predicated region
      $region17: #{smoke_predictor_forward.1} parent=11 // pred_check
        %p181 = pneg %p93
      $region18: #{smoke_predictor_forward.1} parent=11 // pred_check_branch
        %183 = sbr.rel (%p181) target = $region20
      $region19: #{smoke_predictor_forward.1} parent=11 // pred_region
        _
      $region20: #{smoke_predictor_forward.1} parent=11 // pred_fallthru
        _
      // Predicated region
      $region21: #{smoke_predictor_forward.1} parent=11 // pred_check
        %p184 = pneg %p114
      $region22: #{smoke_predictor_forward.1} parent=11 // pred_check_branch
        %186 = sbr.rel (%p184) target = $region24
      $region23: #{smoke_predictor_forward.1} parent=11 // pred_region
        _
      $region24: #{smoke_predictor_forward.1} parent=11 // pred_fallthru
        _
      // Predicated region
      $region25: #{smoke_predictor_forward.1} parent=11 // pred_check
        %p187 = pneg %p135
      $region26: #{smoke_predictor_forward.1} parent=11 // pred_check_branch
        %189 = sbr.rel (%p187) target = $region28
      $region27: #{smoke_predictor_forward.1} parent=11 // pred_region
        _
      $region28: #{smoke_predictor_forward.1} parent=11 // pred_fallthru
        _
    $region12: #{smoke_predictor_forward.1} parent=5 // pred_fallthru
      _
    %p190 = scmp.lt.s32.totalorder %s11, 2
    // Predicated region
    $region29: #{smoke_predictor_forward.1} parent=5 // pred_check
      %p191 = pneg %p190
    $region30: #{smoke_predictor_forward.1} parent=5 // pred_check_branch
      %193 = sbr.rel (%p191) target = $region32
    $region31: #{smoke_predictor_forward.1} parent=5 // pred_region
      // Predicated region
      $region33: #{smoke_predictor_forward.1} parent=31 // pred_check
        %p194 = pneg %p45
      $region34: #{smoke_predictor_forward.1} parent=31 // pred_check_branch
        %196 = sbr.rel (%p194) target = $region36
      $region35: #{smoke_predictor_forward.1} parent=31 // pred_region
        %s197 = smul.u32 2, %s19
        %p198 = scmp.lt.s32.totalorder %s18, 1
        %s199 = scalar_select %p198, %s18, 1
        %p200 = scmp.lt.s32.totalorder %s197, 1
        %s201 = scalar_select %p200, %s197, 1
        %s202 = smul.addr %s199, 144
        %s203 = sadd.s32 %s201, %s202
        %s204 = smul.addr %s203, 4
        %s205 = scalar_lea.vmem %s0, %s204
        %s206 = smul.u32 2, %s19
      $region36: #{smoke_predictor_forward.1} parent=31 // pred_fallthru
        _
    $region32: #{smoke_predictor_forward.1} parent=5 // pred_fallthru
      _
    %p207 = scmp.le.s32.totalorder 1, %s11
    %p208 = scmp.lt.s32.totalorder %s11, 3
    %p209 = pnand %p207, %p208
    %p210 = pneg %p209
    // Predicated region
    $region37: #{smoke_predictor_forward.1} parent=5 // pred_check
      _
    $region38: #{smoke_predictor_forward.1} parent=5 // pred_check_branch
      %212 = sbr.rel (%p209) target = $region40
    $region39: #{smoke_predictor_forward.1} parent=5 // pred_region
      %s213 = ssub.s32 %s11, 1
      %s214 = smul.u32 2, %s21
      %p215 = scmp.lt.s32.totalorder %s20, 1
      %s216 = scalar_select %p215, %s20, 1
      %p217 = scmp.lt.s32.totalorder %s214, 1
      %s218 = scalar_select %p217, %s214, 1
      %s219 = smul.addr %s216, 144
      %s220 = sadd.s32 %s218, %s219
      %s221 = smul.addr %s220, 4
      %s222 = scalar_lea.vmem %s0, %s221
      %p223 = pneg %p51
      %p224 = pneg %p48
      %p225 = pneg %p72
      %p226 = pneg %p69
      %p227 = pneg %p93
      %p228 = pneg %p90
      %p229 = pneg %p114
      %p230 = pneg %p111
      %p231 = pneg %p135
      %p232 = pneg %p132
      %p233 = pneg %p163
      %p234 = pneg %p160
      %s235 = smul.u32 2, %s21
      %p236 = scmp.lt.s32.totalorder %s20, 1
      %s237 = scalar_select %p236, %s20, 1
      %p238 = scmp.lt.s32.totalorder %s235, 1
      %s239 = scalar_select %p238, %s235, 1
      %s240 = smul.addr %s237, 4
      %s241 = sadd.s32 %s239, %s240
      %s242 = smul.addr %s241, 8
      %s243 = scalar_lea.vmem %s5, %s242
      %s244 = smul.u32 2, %s21
      %p245 = scmp.lt.s32.totalorder %s20, 1
      %s246 = scalar_select %p245, %s20, 1
      %p247 = scmp.lt.s32.totalorder %s244, 1
      %s248 = scalar_select %p247, %s244, 1
      %s249 = smul.addr %s246, 144
      %s250 = sadd.s32 %s248, %s249
      %s251 = smul.addr %s250, 4
      %s252 = scalar_lea.vmem %s0, %s251
      %s253 = smul.u32 2, %s21
      %s254 = smul.u32 2, %s21
      %p255 = scmp.lt.s32.totalorder %s20, 1
      %s256 = scalar_select %p255, %s20, 1
      %p257 = scmp.lt.s32.totalorder %s254, 1
      %s258 = scalar_select %p257, %s254, 1
      %s259 = smul.addr %s256, 4
      %s260 = sadd.s32 %s258, %s259
      %s261 = smul.addr %s260, 8
      %s262 = scalar_lea.vmem %s5, %s261
      %s263 = smul.u32 2, %s21
      %v265 = vld [vmem:[%s1] sm:$0xff]
      %v266 = vld [vmem:[%s1 + $0x8] sm:$0xff]
      %v267 = vld [vmem:[%s1 + $0x10] sm:$0xf]
      %v268 = vld [vmem:[%s1 + $0x14] sm:$0xff]
      %v269 = vld [vmem:[%s1 + $0x1c] sm:$0xff]
      %v270 = vld [vmem:[%s1 + $0x24] sm:$0xf]
      %v271 = vld [vmem:[%s1 + $0x28] sm:$0xff]
      %v272 = vld [vmem:[%s1 + $0x30] sm:$0xff]
      %v273 = vld [vmem:[%s1 + $0x38] sm:$0xf]
      %v274 = vld [vmem:[%s1 + $0x3c] sm:$0xff]
      %v275 = vld [vmem:[%s1 + $0x44] sm:$0xff]
      %v276 = vld [vmem:[%s1 + $0x4c] sm:$0xf]
      %v277 = vld [vmem:[%s1 + $0x50] sm:$0xff]
      %v278 = vld [vmem:[%s1 + $0x58] sm:$0xff]
      %v279 = vld [vmem:[%s1 + $0x60] sm:$0xf]
      %v280 = vld [vmem:[%s1 + $0x64] sm:$0xff]
      %v281 = vld [vmem:[%s1 + $0x6c] sm:$0xff]
      %v282 = vld [vmem:[%s1 + $0x74] sm:$0xf]
      %v283 = vld [vmem:[%s1 + $0x78] sm:$0xff]
      %v284 = vld [vmem:[%s1 + $0x80] sm:$0xff]
      %v285 = vld [vmem:[%s1 + $0x88] sm:$0xf]
      %v286 = vld [vmem:[%s1 + $0x8c] sm:$0xff]
      %v287 = vld [vmem:[%s1 + $0x94] sm:$0xff]
      %v288 = vld [vmem:[%s1 + $0x9c] sm:$0xf]
      %v289 = vld [vmem:[%s1 + $0xa0] sm:$0xff]
      %v290 = vld [vmem:[%s1 + $0xa8] sm:$0xff]
      %v291 = vld [vmem:[%s1 + $0xb0] sm:$0xf]
      %v292 = vld [vmem:[%s1 + $0xb4] sm:$0xff]
      %v293 = vld [vmem:[%s1 + $0xbc] sm:$0xff]
      %v294 = vld [vmem:[%s1 + $0xc4] sm:$0xf]
      %v295 = vld [vmem:[%s1 + $0xc8] sm:$0xff]
      %v296 = vld [vmem:[%s1 + $0xd0] sm:$0xff]
      %v297 = vld [vmem:[%s1 + $0xd8] sm:$0xf]
      %v298 = vld [vmem:[%s1 + $0xdc] sm:$0xff]
      %v299 = vld [vmem:[%s1 + $0xe4] sm:$0xff]
      %v300 = vld [vmem:[%s1 + $0xec] sm:$0xf]
      %v301 = vld [vmem:[%s1 + $0xf0] sm:$0xff]
      %v302 = vld [vmem:[%s1 + $0xf8] sm:$0xff]
      %v303 = vld [vmem:[%s1 + $0x100] sm:$0xf]
      %v304 = vld [vmem:[%s1 + $0x104] sm:$0xff]
      %v305 = vld [vmem:[%s1 + $0x10c] sm:$0xff]
      %v306 = vld [vmem:[%s1 + $0x114] sm:$0xf]
      %v307 = vld [vmem:[%s1 + $0x118] sm:$0xff]
      %v308 = vld [vmem:[%s1 + $0x120] sm:$0xff]
      %v309 = vld [vmem:[%s1 + $0x128] sm:$0xf]
      %v310 = vld [vmem:[%s1 + $0x12c] sm:$0xff]
      %v311 = vld [vmem:[%s1 + $0x134] sm:$0xff]
      %v312 = vld [vmem:[%s1 + $0x13c] sm:$0xf]
      %v313 = vld [vmem:[%s1 + $0x140] sm:$0xff]
      %v314 = vld [vmem:[%s1 + $0x148] sm:$0xff]
      %v315 = vld [vmem:[%s1 + $0x150] sm:$0xf]
      %v316 = vld [vmem:[%s1 + $0x154] sm:$0xff]
      %v317 = vld [vmem:[%s1 + $0x15c] sm:$0xff]
      %v318 = vld [vmem:[%s1 + $0x164] sm:$0xf]
      %v319 = vld [vmem:[%s1 + $0x168] sm:$0xff]
      %v320 = vld [vmem:[%s1 + $0x170] sm:$0xff]
      %v321 = vld [vmem:[%s1 + $0x178] sm:$0xf]
      %v322 = vld [vmem:[%s1 + $0x17c] sm:$0xff]
      %v323 = vld [vmem:[%s1 + $0x184] sm:$0xff]
      %v324 = vld [vmem:[%s1 + $0x18c] sm:$0xf]
      %v325 = vld [vmem:[%s1 + $0x190] sm:$0xff]
      %v326 = vld [vmem:[%s1 + $0x198] sm:$0xff]
      %v327 = vld [vmem:[%s1 + $0x1a0] sm:$0xf]
      %v328 = vld [vmem:[%s1 + $0x1a4] sm:$0xff]
      %v329 = vld [vmem:[%s1 + $0x1ac] sm:$0xff]
      %v330 = vld [vmem:[%s1 + $0x1b4] sm:$0xf]
      %v331 = vld [vmem:[%s1 + $0x1b8] sm:$0xff]
      %v332 = vld [vmem:[%s1 + $0x1c0] sm:$0xff]
      %v333 = vld [vmem:[%s1 + $0x1c8] sm:$0xf]
      %v334 = vld [vmem:[%s1 + $0x1cc] sm:$0xff]
      %v335 = vld [vmem:[%s1 + $0x1d4] sm:$0xff]
      %v336 = vld [vmem:[%s1 + $0x1dc] sm:$0xf]
      %v337 = vld [vmem:[%s1 + $0x1e0] sm:$0xff]
      %v338 = vld [vmem:[%s1 + $0x1e8] sm:$0xff]
      %v339 = vld [vmem:[%s1 + $0x1f0] sm:$0xf]
      %v340 = vld [vmem:[%s1 + $0x1f4] sm:$0xff]
      %v341 = vld [vmem:[%s1 + $0x1fc] sm:$0xff]
      %v342 = vld [vmem:[%s1 + $0x204] sm:$0xf]
      %v343 = vld [vmem:[%s1 + $0x208] sm:$0xff]
      %v344 = vld [vmem:[%s1 + $0x210] sm:$0xff]
      %v345 = vld [vmem:[%s1 + $0x218] sm:$0xf]
      %v346 = vld [vmem:[%s1 + $0x21c] sm:$0xff]
      %v347 = vld [vmem:[%s1 + $0x224] sm:$0xff]
      %v348 = vld [vmem:[%s1 + $0x22c] sm:$0xf]
      %v349 = vld [vmem:[%s1 + $0x230] sm:$0xff]
      %v350 = vld [vmem:[%s1 + $0x238] sm:$0xff]
      %v351 = vld [vmem:[%s1 + $0x240] sm:$0xf]
      %v352 = vld [vmem:[%s1 + $0x244] sm:$0xff]
      %v353 = vld [vmem:[%s1 + $0x24c] sm:$0xff]
      %v354 = vld [vmem:[%s1 + $0x254] sm:$0xf]
      %v355 = vld [vmem:[%s1 + $0x258] sm:$0xff]
      %v356 = vld [vmem:[%s1 + $0x260] sm:$0xff]
      %v357 = vld [vmem:[%s1 + $0x268] sm:$0xf]
      %v358 = vld [vmem:[%s1 + $0x26c] sm:$0xff]
      %v359 = vld [vmem:[%s1 + $0x274] sm:$0xff]
      %v360 = vld [vmem:[%s1 + $0x27c] sm:$0xf]
      %v361 = vld [vmem:[%s1 + $0x280] sm:$0xff]
      %v362 = vld [vmem:[%s1 + $0x288] sm:$0xff]
      %v363 = vld [vmem:[%s1 + $0x290] sm:$0xf]
      %v364 = vld [vmem:[%s1 + $0x294] sm:$0xff]
      %v365 = vld [vmem:[%s1 + $0x29c] sm:$0xff]
      %v366 = vld [vmem:[%s1 + $0x2a4] sm:$0xf]
      %v367 = vld [vmem:[%s1 + $0x2a8] sm:$0xff]
      %v368 = vld [vmem:[%s1 + $0x2b0] sm:$0xff]
      %v369 = vld [vmem:[%s1 + $0x2b8] sm:$0xf]
      %v370 = vld [vmem:[%s1 + $0x2bc] sm:$0xff]
      %v371 = vld [vmem:[%s1 + $0x2c4] sm:$0xff]
      %v372 = vld [vmem:[%s1 + $0x2cc] sm:$0xf]
      %v373 = vld [vmem:[%s1 + $0x2d0] sm:$0xff]
      %v374 = vld [vmem:[%s1 + $0x2d8] sm:$0xff]
      %v375 = vld [vmem:[%s1 + $0x2e0] sm:$0xf]
      %v376 = vld [vmem:[%s1 + $0x2e4] sm:$0xff]
      %v377 = vld [vmem:[%s1 + $0x2ec] sm:$0xff]
      %v378 = vld [vmem:[%s1 + $0x2f4] sm:$0xf]
      %v379 = vld [vmem:[%s1 + $0x2f8] sm:$0xff]
      %v380 = vld [vmem:[%s1 + $0x300] sm:$0xff]
      %v381 = vld [vmem:[%s1 + $0x308] sm:$0xf]
      %v382 = vld [vmem:[%s1 + $0x30c] sm:$0xff]
      %v383 = vld [vmem:[%s1 + $0x314] sm:$0xff]
      %v384 = vld [vmem:[%s1 + $0x31c] sm:$0xf]
      %v385 = vld [vmem:[%s1 + $0x320] sm:$0xff]
      %v386 = vld [vmem:[%s1 + $0x328] sm:$0xff]
      %v387 = vld [vmem:[%s1 + $0x330] sm:$0xf]
      %v388 = vld [vmem:[%s1 + $0x334] sm:$0xff]
      %v389 = vld [vmem:[%s1 + $0x33c] sm:$0xff]
      %v390 = vld [vmem:[%s1 + $0x344] sm:$0xf]
      %v391 = vld [vmem:[%s1 + $0x348] sm:$0xff]
      %v392 = vld [vmem:[%s1 + $0x350] sm:$0xff]
      %v393 = vld [vmem:[%s1 + $0x358] sm:$0xf]
      %v394 = vld [vmem:[%s1 + $0x35c] sm:$0xff]
      %v395 = vld [vmem:[%s1 + $0x364] sm:$0xff]
      %v396 = vld [vmem:[%s1 + $0x36c] sm:$0xf]
      %v397 = vld [vmem:[%s1 + $0x370] sm:$0xff]
      %v398 = vld [vmem:[%s1 + $0x378] sm:$0xff]
      %v399 = vld [vmem:[%s1 + $0x380] sm:$0xf]
      %v400 = vld [vmem:[%s1 + $0x384] sm:$0xff]
      %v401 = vld [vmem:[%s1 + $0x38c] sm:$0xff]
      %v402 = vld [vmem:[%s1 + $0x394] sm:$0xf]
      %v403 = vld [vmem:[%s1 + $0x398] sm:$0xff]
      %v404 = vld [vmem:[%s1 + $0x3a0] sm:$0xff]
      %v405 = vld [vmem:[%s1 + $0x3a8] sm:$0xf]
      %v406 = vld [vmem:[%s1 + $0x3ac] sm:$0xff]
      %v407 = vld [vmem:[%s1 + $0x3b4] sm:$0xff]
      %v408 = vld [vmem:[%s1 + $0x3bc] sm:$0xf]
      %v409 = vld [vmem:[%s1 + $0x3c0] sm:$0xff]
      %v410 = vld [vmem:[%s1 + $0x3c8] sm:$0xff]
      %v411 = vld [vmem:[%s1 + $0x3d0] sm:$0xf]
      %v412 = vld [vmem:[%s1 + $0x3d4] sm:$0xff]
      %v413 = vld [vmem:[%s1 + $0x3dc] sm:$0xff]
      %v414 = vld [vmem:[%s1 + $0x3e4] sm:$0xf]
      %v415 = vld [vmem:[%s1 + $0x3e8] sm:$0xff]
      %v416 = vld [vmem:[%s1 + $0x3f0] sm:$0xff]
      %v417 = vld [vmem:[%s1 + $0x3f8] sm:$0xf]
      %v418 = vld [vmem:[%s1 + $0x3fc] sm:$0xff]
      %v419 = vld [vmem:[%s1 + $0x404] sm:$0xff]
      %v420 = vld [vmem:[%s1 + $0x40c] sm:$0xf]
      %v421 = vld [vmem:[%s1 + $0x410] sm:$0xff]
      %v422 = vld [vmem:[%s1 + $0x418] sm:$0xff]
      %v423 = vld [vmem:[%s1 + $0x420] sm:$0xf]
      %v424 = vld [vmem:[%s1 + $0x424] sm:$0xff]
      %v425 = vld [vmem:[%s1 + $0x42c] sm:$0xff]
      %v426 = vld [vmem:[%s1 + $0x434] sm:$0xf]
      %v427 = vld [vmem:[%s1 + $0x438] sm:$0xff]
      %v428 = vld [vmem:[%s1 + $0x440] sm:$0xff]
      %v429 = vld [vmem:[%s1 + $0x448] sm:$0xf]
      %v430 = vld [vmem:[%s1 + $0x44c] sm:$0xff]
      %v431 = vld [vmem:[%s1 + $0x454] sm:$0xff]
      %v432 = vld [vmem:[%s1 + $0x45c] sm:$0xf]
      %v433 = vld [vmem:[%s1 + $0x460] sm:$0xff]
      %v434 = vld [vmem:[%s1 + $0x468] sm:$0xff]
      %v435 = vld [vmem:[%s1 + $0x470] sm:$0xf]
      %v436 = vld [vmem:[%s1 + $0x474] sm:$0xff]
      %v437 = vld [vmem:[%s1 + $0x47c] sm:$0xff]
      %v438 = vld [vmem:[%s1 + $0x484] sm:$0xf]
      %v439 = vld [vmem:[%s1 + $0x488] sm:$0xff]
      %v440 = vld [vmem:[%s1 + $0x490] sm:$0xff]
      %v441 = vld [vmem:[%s1 + $0x498] sm:$0xf]
      %v442 = vld [vmem:[%s1 + $0x49c] sm:$0xff]
      %v443 = vld [vmem:[%s1 + $0x4a4] sm:$0xff]
      %v444 = vld [vmem:[%s1 + $0x4ac] sm:$0xf]
      %v445 = vld [vmem:[%s1 + $0x4b0] sm:$0xff]
      %v446 = vld [vmem:[%s1 + $0x4b8] sm:$0xff]
      %v447 = vld [vmem:[%s1 + $0x4c0] sm:$0xf]
      %v448 = vld [vmem:[%s1 + $0x4c4] sm:$0xff]
      %v449 = vld [vmem:[%s1 + $0x4cc] sm:$0xff]
      %v450 = vld [vmem:[%s1 + $0x4d4] sm:$0xf]
      %v451 = vld [vmem:[%s1 + $0x4d8] sm:$0xff]
      %v452 = vld [vmem:[%s1 + $0x4e0] sm:$0xff]
      %v453 = vld [vmem:[%s1 + $0x4e8] sm:$0xf]
      %v454 = vld [vmem:[%s1 + $0x4ec] sm:$0xff]
      %v455 = vld [vmem:[%s1 + $0x4f4] sm:$0xff]
      %v456 = vld [vmem:[%s1 + $0x4fc] sm:$0xf]
      %v457 = vld [vmem:[%s1 + $0x500] sm:$0xff]
      %v458 = vld [vmem:[%s1 + $0x508] sm:$0xff]
      %v459 = vld [vmem:[%s1 + $0x510] sm:$0xf]
      %v460 = vld [vmem:[%s1 + $0x514] sm:$0xff]
      %v461 = vld [vmem:[%s1 + $0x51c] sm:$0xff]
      %v462 = vld [vmem:[%s1 + $0x524] sm:$0xf]
      %v463 = vld [vmem:[%s1 + $0x528] sm:$0xff]
      %v464 = vld [vmem:[%s1 + $0x530] sm:$0xff]
      %v465 = vld [vmem:[%s1 + $0x538] sm:$0xf]
      %v466 = vld [vmem:[%s1 + $0x53c] sm:$0xff]
      %v467 = vld [vmem:[%s1 + $0x544] sm:$0xff]
      %v468 = vld [vmem:[%s1 + $0x54c] sm:$0xf]
      %v469 = vld [vmem:[%s1 + $0x550] sm:$0xff]
      %v470 = vld [vmem:[%s1 + $0x558] sm:$0xff]
      %v471 = vld [vmem:[%s1 + $0x560] sm:$0xf]
      %v472 = vld [vmem:[%s1 + $0x564] sm:$0xff]
      %v473 = vld [vmem:[%s1 + $0x56c] sm:$0xff]
      %v474 = vld [vmem:[%s1 + $0x574] sm:$0xf]
      %v475 = vld [vmem:[%s1 + $0x578] sm:$0xff]
      %v476 = vld [vmem:[%s1 + $0x580] sm:$0xff]
      %v477 = vld [vmem:[%s1 + $0x588] sm:$0xf]
      %v478 = vld [vmem:[%s1 + $0x58c] sm:$0xff]
      %v479 = vld [vmem:[%s1 + $0x594] sm:$0xff]
      %v480 = vld [vmem:[%s1 + $0x59c] sm:$0xf]
      %v481 = vld [vmem:[%s1 + $0x5a0] sm:$0xff]
      %v482 = vld [vmem:[%s1 + $0x5a8] sm:$0xff]
      %v483 = vld [vmem:[%s1 + $0x5b0] sm:$0xf]
      %v484 = vld [vmem:[%s1 + $0x5b4] sm:$0xff]
      %v485 = vld [vmem:[%s1 + $0x5bc] sm:$0xff]
      %v486 = vld [vmem:[%s1 + $0x5c4] sm:$0xf]
      %v487 = vld [vmem:[%s1 + $0x5c8] sm:$0xff]
      %v488 = vld [vmem:[%s1 + $0x5d0] sm:$0xff]
      %v489 = vld [vmem:[%s1 + $0x5d8] sm:$0xf]
      %v490 = vld [vmem:[%s1 + $0x5dc] sm:$0xff]
      %v491 = vld [vmem:[%s1 + $0x5e4] sm:$0xff]
      %v492 = vld [vmem:[%s1 + $0x5ec] sm:$0xf]
      %v493 = vld [vmem:[%s1 + $0x5f0] sm:$0xff]
      %v494 = vld [vmem:[%s1 + $0x5f8] sm:$0xff]
      %v495 = vld [vmem:[%s1 + $0x600] sm:$0xf]
      %v496 = vld [vmem:[%s1 + $0x604] sm:$0xff]
      %v497 = vld [vmem:[%s1 + $0x60c] sm:$0xff]
      %v498 = vld [vmem:[%s1 + $0x614] sm:$0xf]
      %v499 = vld [vmem:[%s1 + $0x618] sm:$0xff]
      %v500 = vld [vmem:[%s1 + $0x620] sm:$0xff]
      %v501 = vld [vmem:[%s1 + $0x628] sm:$0xf]
      %v502 = vld [vmem:[%s1 + $0x62c] sm:$0xff]
      %v503 = vld [vmem:[%s1 + $0x634] sm:$0xff]
      %v504 = vld [vmem:[%s1 + $0x63c] sm:$0xf]
      %v505 = vld [vmem:[%s1 + $0x640] sm:$0xff]
      %v506 = vld [vmem:[%s1 + $0x648] sm:$0xff]
      %v507 = vld [vmem:[%s1 + $0x650] sm:$0xf]
      %v508 = vld [vmem:[%s1 + $0x654] sm:$0xff]
      %v509 = vld [vmem:[%s1 + $0x65c] sm:$0xff]
      %v510 = vld [vmem:[%s1 + $0x664] sm:$0xf]
      %v511 = vld [vmem:[%s1 + $0x668] sm:$0xff]
      %v512 = vld [vmem:[%s1 + $0x670] sm:$0xff]
      %v513 = vld [vmem:[%s1 + $0x678] sm:$0xf]
      %v514 = vld [vmem:[%s1 + $0x67c] sm:$0xff]
      %v515 = vld [vmem:[%s1 + $0x684] sm:$0xff]
      %v516 = vld [vmem:[%s1 + $0x68c] sm:$0xf]
      %v517 = vld [vmem:[%s1 + $0x690] sm:$0xff]
      %v518 = vld [vmem:[%s1 + $0x698] sm:$0xff]
      %v519 = vld [vmem:[%s1 + $0x6a0] sm:$0xf]
      %v520 = vld [vmem:[%s1 + $0x6a4] sm:$0xff]
      %v521 = vld [vmem:[%s1 + $0x6ac] sm:$0xff]
      %v522 = vld [vmem:[%s1 + $0x6b4] sm:$0xf]
      %v523 = vld [vmem:[%s1 + $0x6b8] sm:$0xff]
      %v524 = vld [vmem:[%s1 + $0x6c0] sm:$0xff]
      %v525 = vld [vmem:[%s1 + $0x6c8] sm:$0xf]
      %v526 = vld [vmem:[%s1 + $0x6cc] sm:$0xff]
      %v527 = vld [vmem:[%s1 + $0x6d4] sm:$0xff]
      %v528 = vld [vmem:[%s1 + $0x6dc] sm:$0xf]
      %v529 = vld [vmem:[%s1 + $0x6e0] sm:$0xff]
      %v530 = vld [vmem:[%s1 + $0x6e8] sm:$0xff]
      %v531 = vld [vmem:[%s1 + $0x6f0] sm:$0xf]
      %v532 = vld [vmem:[%s1 + $0x6f4] sm:$0xff]
      %v533 = vld [vmem:[%s1 + $0x6fc] sm:$0xff]
      %v534 = vld [vmem:[%s1 + $0x704] sm:$0xf]
      %v535 = vld [vmem:[%s1 + $0x708] sm:$0xff]
      %v536 = vld [vmem:[%s1 + $0x710] sm:$0xff]
      %v537 = vld [vmem:[%s1 + $0x718] sm:$0xf]
      %v538 = vld [vmem:[%s1 + $0x71c] sm:$0xff]
      %v539 = vld [vmem:[%s1 + $0x724] sm:$0xff]
      %v540 = vld [vmem:[%s1 + $0x72c] sm:$0xf]
      %v541 = vld [vmem:[%s1 + $0x730] sm:$0xff]
      %v542 = vld [vmem:[%s1 + $0x738] sm:$0xff]
      %v543 = vld [vmem:[%s1 + $0x740] sm:$0xf]
      %v544 = vld [vmem:[%s1 + $0x744] sm:$0xff]
      %v545 = vld [vmem:[%s1 + $0x74c] sm:$0xff]
      %v546 = vld [vmem:[%s1 + $0x754] sm:$0xf]
      %v547 = vld [vmem:[%s1 + $0x758] sm:$0xff]
      %v548 = vld [vmem:[%s1 + $0x760] sm:$0xff]
      %v549 = vld [vmem:[%s1 + $0x768] sm:$0xf]
      %v550 = vld [vmem:[%s1 + $0x76c] sm:$0xff]
      %v551 = vld [vmem:[%s1 + $0x774] sm:$0xff]
      %v552 = vld [vmem:[%s1 + $0x77c] sm:$0xf]
      %v553 = vld [vmem:[%s252] sm:$0xff]
      %v554 = vld [vmem:[%s252 + $0x8] sm:$0xff]
      %v555 = vld [vmem:[%s252 + $0x10] sm:$0xff]
      %v556 = vld [vmem:[%s252 + $0x18] sm:$0xff]
      %v557 = vld [vmem:[%s252 + $0x20] sm:$0xff]
      %v558 = vld [vmem:[%s252 + $0x28] sm:$0xff]
      %v559 = vld [vmem:[%s252 + $0x30] sm:$0xff]
      %v560 = vld [vmem:[%s252 + $0x38] sm:$0xff]
      %v561 = vld [vmem:[%s252 + $0x40] sm:$0xff]
      %v562 = vld [vmem:[%s252 + $0x48] sm:$0xff]
      %v563 = vld [vmem:[%s252 + $0x50] sm:$0xff]
      %v564 = vld [vmem:[%s252 + $0x58] sm:$0xff]
      %v565 = vld [vmem:[%s252 + $0x60] sm:$0xff]
      %v566 = vld [vmem:[%s252 + $0x68] sm:$0xff]
      %v567 = vld [vmem:[%s252 + $0x70] sm:$0xff]
      %v568 = vld [vmem:[%s252 + $0x78] sm:$0xff]
      %v569 = vld [vmem:[%s252 + $0x80] sm:$0xff]
      %v570 = vld [vmem:[%s252 + $0x88] sm:$0xff]
      %v571 = vld [vmem:[%s252 + $0x90] sm:$0xff]
      %v572 = vld [vmem:[%s252 + $0x98] sm:$0xff]
      %v573 = vld [vmem:[%s252 + $0xa0] sm:$0xff]
      %v574 = vld [vmem:[%s252 + $0xa8] sm:$0xff]
      %v575 = vld [vmem:[%s252 + $0xb0] sm:$0xff]
      %v576 = vld [vmem:[%s252 + $0xb8] sm:$0xff]
      %v577 = vld [vmem:[%s252 + $0xc0] sm:$0xff]
      %v578 = vld [vmem:[%s252 + $0xc8] sm:$0xff]
      %v579 = vld [vmem:[%s252 + $0xd0] sm:$0xff]
      %v580 = vld [vmem:[%s252 + $0xd8] sm:$0xff]
      %v581 = vld [vmem:[%s252 + $0xe0] sm:$0xff]
      %v582 = vld [vmem:[%s252 + $0xe8] sm:$0xff]
      %v583 = vld [vmem:[%s252 + $0xf0] sm:$0xff]
      %v584 = vld [vmem:[%s252 + $0xf8] sm:$0xff]
      %v585 = vld [vmem:[%s252 + $0x100] sm:$0xff]
      %v586 = vld [vmem:[%s252 + $0x108] sm:$0xff]
      %v587 = vld [vmem:[%s252 + $0x110] sm:$0xff]
      %v588 = vld [vmem:[%s252 + $0x118] sm:$0xff]
      %v589 = vld [vmem:[%s252 + $0x120] sm:$0xff]
      %v590 = vld [vmem:[%s252 + $0x128] sm:$0xff]
      %v591 = vld [vmem:[%s252 + $0x130] sm:$0xff]
      %v592 = vld [vmem:[%s252 + $0x138] sm:$0xff]
      %v593 = vld [vmem:[%s252 + $0x140] sm:$0xff]
      %v594 = vld [vmem:[%s252 + $0x148] sm:$0xff]
      %v595 = vld [vmem:[%s252 + $0x150] sm:$0xff]
      %v596 = vld [vmem:[%s252 + $0x158] sm:$0xff]
      %v597 = vld [vmem:[%s252 + $0x160] sm:$0xff]
      %v598 = vld [vmem:[%s252 + $0x168] sm:$0xff]
      %v599 = vld [vmem:[%s252 + $0x170] sm:$0xff]
      %v600 = vld [vmem:[%s252 + $0x178] sm:$0xff]
      %v601 = vld [vmem:[%s252 + $0x180] sm:$0xff]
      %v602 = vld [vmem:[%s252 + $0x188] sm:$0xff]
      %v603 = vld [vmem:[%s252 + $0x190] sm:$0xff]
      %v604 = vld [vmem:[%s252 + $0x198] sm:$0xff]
      %v605 = vld [vmem:[%s252 + $0x1a0] sm:$0xff]
      %v606 = vld [vmem:[%s252 + $0x1a8] sm:$0xff]
      %v607 = vld [vmem:[%s252 + $0x1b0] sm:$0xff]
      %v608 = vld [vmem:[%s252 + $0x1b8] sm:$0xff]
      %v609 = vld [vmem:[%s252 + $0x1c0] sm:$0xff]
      %v610 = vld [vmem:[%s252 + $0x1c8] sm:$0xff]
      %v611 = vld [vmem:[%s252 + $0x1d0] sm:$0xff]
      %v612 = vld [vmem:[%s252 + $0x1d8] sm:$0xff]
      %v613 = vld [vmem:[%s252 + $0x1e0] sm:$0xff]
      %v614 = vld [vmem:[%s252 + $0x1e8] sm:$0xff]
      %v615 = vld [vmem:[%s252 + $0x1f0] sm:$0xff]
      %v616 = vld [vmem:[%s252 + $0x1f8] sm:$0xff]
      %v617 = vld [vmem:[%s252 + $0x200] sm:$0xff]
      %v618 = vld [vmem:[%s252 + $0x208] sm:$0xff]
      %v619 = vld [vmem:[%s252 + $0x210] sm:$0xff]
      %v620 = vld [vmem:[%s252 + $0x218] sm:$0xff]
      %v621 = vld [vmem:[%s252 + $0x220] sm:$0xff]
      %v622 = vld [vmem:[%s252 + $0x228] sm:$0xff]
      %v623 = vld [vmem:[%s252 + $0x230] sm:$0xff]
      %v624 = vld [vmem:[%s252 + $0x238] sm:$0xff]
      %v625 = vld [vmem:[%s2] sm:$0xff]
      %v626 = vld [vmem:[%s2 + $0x8] sm:$0xff]
      %v627 = vld [vmem:[%s2 + $0x10] sm:$0xff]
      %v628 = vld [vmem:[%s2 + $0x18] sm:$0xff]
      %v629 = vld [vmem:[%s2 + $0x20] sm:$0xff]
      %v630 = vld [vmem:[%s2 + $0x28] sm:$0xff]
      %v631 = vld [vmem:[%s2 + $0x30] sm:$0xff]
      %v632 = vld [vmem:[%s2 + $0x38] sm:$0xff]
      %v633 = vld [vmem:[%s2 + $0x40] sm:$0xff]
      %v634 = vld [vmem:[%s2 + $0x48] sm:$0xff]
      %v635 = vld [vmem:[%s2 + $0x50] sm:$0xff]
      %v636 = vld [vmem:[%s2 + $0x58] sm:$0xff]
      %v637 = vld [vmem:[%s2 + $0x60] sm:$0xff]
      %v638 = vld [vmem:[%s2 + $0x68] sm:$0xff]
      %v639 = vld [vmem:[%s2 + $0x70] sm:$0xff]
      %v640 = vld [vmem:[%s2 + $0x78] sm:$0xff]
      %v641 = vld [vmem:[%s2 + $0x80] sm:$0xff]
      %v642 = vld [vmem:[%s2 + $0x88] sm:$0xff]
      %v643 = vld [vmem:[%s2 + $0x90] sm:$0xff]
      %v644 = vld [vmem:[%s2 + $0x98] sm:$0xff]
      %v645 = vld [vmem:[%s2 + $0xa0] sm:$0xff]
      %v646 = vld [vmem:[%s2 + $0xa8] sm:$0xff]
      %v647 = vld [vmem:[%s2 + $0xb0] sm:$0xff]
      %v648 = vld [vmem:[%s2 + $0xb8] sm:$0xff]
      %v649 = vld [vmem:[%s2 + $0xc0] sm:$0xff]
      %v650 = vld [vmem:[%s2 + $0xc8] sm:$0xff]
      %v651 = vld [vmem:[%s2 + $0xd0] sm:$0xff]
      %v652 = vld [vmem:[%s2 + $0xd8] sm:$0xff]
      %v653 = vld [vmem:[%s2 + $0xe0] sm:$0xff]
      %v654 = vld [vmem:[%s2 + $0xe8] sm:$0xff]
      %v655 = vld [vmem:[%s2 + $0xf0] sm:$0xff]
      %v656 = vld [vmem:[%s2 + $0xf8] sm:$0xff]
      %v657 = vld [vmem:[%s2 + $0x100] sm:$0xff]
      %v658 = vld [vmem:[%s2 + $0x108] sm:$0xff]
      %v659 = vld [vmem:[%s2 + $0x110] sm:$0xff]
      %v660 = vld [vmem:[%s2 + $0x118] sm:$0xff]
      %v661 = vld [vmem:[%s2 + $0x120] sm:$0xff]
      %v662 = vld [vmem:[%s2 + $0x128] sm:$0xff]
      %v663 = vld [vmem:[%s2 + $0x130] sm:$0xff]
      %v664 = vld [vmem:[%s2 + $0x138] sm:$0xff]
      %v665 = vld [vmem:[%s2 + $0x140] sm:$0xff]
      %v666 = vld [vmem:[%s2 + $0x148] sm:$0xff]
      %v667 = vld [vmem:[%s2 + $0x150] sm:$0xff]
      %v668 = vld [vmem:[%s2 + $0x158] sm:$0xff]
      %v669 = vld [vmem:[%s2 + $0x160] sm:$0xff]
      %v670 = vld [vmem:[%s2 + $0x168] sm:$0xff]
      %v671 = vld [vmem:[%s2 + $0x170] sm:$0xff]
      %v672 = vld [vmem:[%s2 + $0x178] sm:$0xff]
      %v673 = vld [vmem:[%s2 + $0x180] sm:$0xff]
      %v674 = vld [vmem:[%s2 + $0x188] sm:$0xff]
      %v675 = vld [vmem:[%s2 + $0x190] sm:$0xff]
      %v676 = vld [vmem:[%s2 + $0x198] sm:$0xff]
      %v677 = vld [vmem:[%s2 + $0x1a0] sm:$0xff]
      %v678 = vld [vmem:[%s2 + $0x1a8] sm:$0xff]
      %v679 = vld [vmem:[%s2 + $0x1b0] sm:$0xff]
      %v680 = vld [vmem:[%s2 + $0x1b8] sm:$0xff]
      %v681 = vld [vmem:[%s2 + $0x1c0] sm:$0xff]
      %v682 = vld [vmem:[%s2 + $0x1c8] sm:$0xff]
      %v683 = vld [vmem:[%s2 + $0x1d0] sm:$0xff]
      %v684 = vld [vmem:[%s2 + $0x1d8] sm:$0xff]
      %v685 = vld [vmem:[%s2 + $0x1e0] sm:$0xff]
      %v686 = vld [vmem:[%s2 + $0x1e8] sm:$0xff]
      %v687 = vld [vmem:[%s2 + $0x1f0] sm:$0xff]
      %v688 = vld [vmem:[%s2 + $0x1f8] sm:$0xff]
      %v689 = vld [vmem:[%s2 + $0x200] sm:$0xff]
      %v690 = vld [vmem:[%s2 + $0x208] sm:$0xff]
      %v691 = vld [vmem:[%s2 + $0x210] sm:$0xff]
      %v692 = vld [vmem:[%s2 + $0x218] sm:$0xff]
      %v693 = vld [vmem:[%s2 + $0x220] sm:$0xff]
      %v694 = vld [vmem:[%s2 + $0x228] sm:$0xff]
      %v695 = vld [vmem:[%s2 + $0x230] sm:$0xff]
      %v696 = vld [vmem:[%s2 + $0x238] sm:$0xff]
      %v697 = vld [vmem:[%s2 + $0x240] sm:$0xff]
      %v698 = vld [vmem:[%s2 + $0x248] sm:$0xff]
      %v699 = vld [vmem:[%s2 + $0x250] sm:$0xff]
      %v700 = vld [vmem:[%s2 + $0x258] sm:$0xff]
      %v701 = vld [vmem:[%s2 + $0x260] sm:$0xff]
      %v702 = vld [vmem:[%s2 + $0x268] sm:$0xff]
      %v703 = vld [vmem:[%s2 + $0x270] sm:$0xff]
      %v704 = vld [vmem:[%s2 + $0x278] sm:$0xff]
      %v705 = vld [vmem:[%s2 + $0x280] sm:$0xff]
      %v706 = vld [vmem:[%s2 + $0x288] sm:$0xff]
      %v707 = vld [vmem:[%s2 + $0x290] sm:$0xff]
      %v708 = vld [vmem:[%s2 + $0x298] sm:$0xff]
      %v709 = vld [vmem:[%s2 + $0x2a0] sm:$0xff]
      %v710 = vld [vmem:[%s2 + $0x2a8] sm:$0xff]
      %v711 = vld [vmem:[%s2 + $0x2b0] sm:$0xff]
      %v712 = vld [vmem:[%s2 + $0x2b8] sm:$0xff]
      %v713 = vld [vmem:[%s2 + $0x2c0] sm:$0xff]
      %v714 = vld [vmem:[%s2 + $0x2c8] sm:$0xff]
      %v715 = vld [vmem:[%s2 + $0x2d0] sm:$0xff]
      %v716 = vld [vmem:[%s2 + $0x2d8] sm:$0xff]
      %v717 = vld [vmem:[%s2 + $0x2e0] sm:$0xff]
      %v718 = vld [vmem:[%s2 + $0x2e8] sm:$0xff]
      %v719 = vld [vmem:[%s2 + $0x2f0] sm:$0xff]
      %v720 = vld [vmem:[%s2 + $0x2f8] sm:$0xff]
      %722 = vset.pattern.permute.xlu0 0
      %723 = vperm.xlu0 %722, %v625
      %v724 = vpop.permute.xlu0 %723
      %727 = vset.pattern.permute.xlu0 0
      %728 = vperm.xlu0 %727, %v626
      %v729 = vpop.permute.xlu0 %728
      %732 = vset.pattern.permute.xlu0 0
      %733 = vperm.xlu0 %732, %v627
      %v734 = vpop.permute.xlu0 %733
      %737 = vset.pattern.permute.xlu0 0
      %738 = vperm.xlu0 %737, %v628
      %v739 = vpop.permute.xlu0 %738
      %742 = vset.pattern.permute.xlu0 0
      %743 = vperm.xlu0 %742, %v629
      %v744 = vpop.permute.xlu0 %743
      %747 = vset.pattern.permute.xlu0 0
      %748 = vperm.xlu0 %747, %v630
      %v749 = vpop.permute.xlu0 %748
      %752 = vset.pattern.permute.xlu0 0
      %753 = vperm.xlu0 %752, %v631
      %v754 = vpop.permute.xlu0 %753
      %757 = vset.pattern.permute.xlu0 0
      %758 = vperm.xlu0 %757, %v632
      %v759 = vpop.permute.xlu0 %758
      %762 = vset.pattern.permute.xlu0 0
      %763 = vperm.xlu0 %762, %v633
      %v764 = vpop.permute.xlu0 %763
      %767 = vset.pattern.permute.xlu0 0
      %768 = vperm.xlu0 %767, %v634
      %v769 = vpop.permute.xlu0 %768
      %772 = vset.pattern.permute.xlu0 0
      %773 = vperm.xlu0 %772, %v635
      %v774 = vpop.permute.xlu0 %773
      %777 = vset.pattern.permute.xlu0 0
      %778 = vperm.xlu0 %777, %v636
      %v779 = vpop.permute.xlu0 %778
      %782 = vset.pattern.permute.xlu0 0
      %783 = vperm.xlu0 %782, %v637
      %v784 = vpop.permute.xlu0 %783
      %787 = vset.pattern.permute.xlu0 0
      %788 = vperm.xlu0 %787, %v638
      %v789 = vpop.permute.xlu0 %788
      %792 = vset.pattern.permute.xlu0 0
      %793 = vperm.xlu0 %792, %v639
      %v794 = vpop.permute.xlu0 %793
      %797 = vset.pattern.permute.xlu0 0
      %798 = vperm.xlu0 %797, %v640
      %v799 = vpop.permute.xlu0 %798
      %802 = vset.pattern.permute.xlu0 0
      %803 = vperm.xlu0 %802, %v641
      %v804 = vpop.permute.xlu0 %803
      %807 = vset.pattern.permute.xlu0 0
      %808 = vperm.xlu0 %807, %v642
      %v809 = vpop.permute.xlu0 %808
      %812 = vset.pattern.permute.xlu0 0
      %813 = vperm.xlu0 %812, %v643
      %v814 = vpop.permute.xlu0 %813
      %817 = vset.pattern.permute.xlu0 0
      %818 = vperm.xlu0 %817, %v644
      %v819 = vpop.permute.xlu0 %818
      %822 = vset.pattern.permute.xlu0 0
      %823 = vperm.xlu0 %822, %v645
      %v824 = vpop.permute.xlu0 %823
      %827 = vset.pattern.permute.xlu0 0
      %828 = vperm.xlu0 %827, %v646
      %v829 = vpop.permute.xlu0 %828
      %832 = vset.pattern.permute.xlu0 0
      %833 = vperm.xlu0 %832, %v647
      %v834 = vpop.permute.xlu0 %833
      %837 = vset.pattern.permute.xlu0 0
      %838 = vperm.xlu0 %837, %v648
      %v839 = vpop.permute.xlu0 %838
      %842 = vset.pattern.permute.xlu0 0
      %843 = vperm.xlu0 %842, %v649
      %v844 = vpop.permute.xlu0 %843
      %847 = vset.pattern.permute.xlu0 0
      %848 = vperm.xlu0 %847, %v650
      %v849 = vpop.permute.xlu0 %848
      %852 = vset.pattern.permute.xlu0 0
      %853 = vperm.xlu0 %852, %v651
      %v854 = vpop.permute.xlu0 %853
      %857 = vset.pattern.permute.xlu0 0
      %858 = vperm.xlu0 %857, %v652
      %v859 = vpop.permute.xlu0 %858
      %862 = vset.pattern.permute.xlu0 0
      %863 = vperm.xlu0 %862, %v653
      %v864 = vpop.permute.xlu0 %863
      %867 = vset.pattern.permute.xlu0 0
      %868 = vperm.xlu0 %867, %v654
      %v869 = vpop.permute.xlu0 %868
      %872 = vset.pattern.permute.xlu0 0
      %873 = vperm.xlu0 %872, %v655
      %v874 = vpop.permute.xlu0 %873
      %877 = vset.pattern.permute.xlu0 0
      %878 = vperm.xlu0 %877, %v656
      %v879 = vpop.permute.xlu0 %878
      %882 = vset.pattern.permute.xlu0 0
      %883 = vperm.xlu0 %882, %v657
      %v884 = vpop.permute.xlu0 %883
      %887 = vset.pattern.permute.xlu0 0
      %888 = vperm.xlu0 %887, %v658
      %v889 = vpop.permute.xlu0 %888
      %892 = vset.pattern.permute.xlu0 0
      %893 = vperm.xlu0 %892, %v659
      %v894 = vpop.permute.xlu0 %893
      %897 = vset.pattern.permute.xlu0 0
      %898 = vperm.xlu0 %897, %v660
      %v899 = vpop.permute.xlu0 %898
      %902 = vset.pattern.permute.xlu0 0
      %903 = vperm.xlu0 %902, %v661
      %v904 = vpop.permute.xlu0 %903
      %907 = vset.pattern.permute.xlu0 0
      %908 = vperm.xlu0 %907, %v662
      %v909 = vpop.permute.xlu0 %908
      %912 = vset.pattern.permute.xlu0 0
      %913 = vperm.xlu0 %912, %v663
      %v914 = vpop.permute.xlu0 %913
      %917 = vset.pattern.permute.xlu0 0
      %918 = vperm.xlu0 %917, %v664
      %v919 = vpop.permute.xlu0 %918
      %922 = vset.pattern.permute.xlu0 0
      %923 = vperm.xlu0 %922, %v665
      %v924 = vpop.permute.xlu0 %923
      %927 = vset.pattern.permute.xlu0 0
      %928 = vperm.xlu0 %927, %v666
      %v929 = vpop.permute.xlu0 %928
      %932 = vset.pattern.permute.xlu0 0
      %933 = vperm.xlu0 %932, %v667
      %v934 = vpop.permute.xlu0 %933
      %937 = vset.pattern.permute.xlu0 0
      %938 = vperm.xlu0 %937, %v668
      %v939 = vpop.permute.xlu0 %938
      %942 = vset.pattern.permute.xlu0 0
      %943 = vperm.xlu0 %942, %v669
      %v944 = vpop.permute.xlu0 %943
      %947 = vset.pattern.permute.xlu0 0
      %948 = vperm.xlu0 %947, %v670
      %v949 = vpop.permute.xlu0 %948
      %952 = vset.pattern.permute.xlu0 0
      %953 = vperm.xlu0 %952, %v671
      %v954 = vpop.permute.xlu0 %953
      %957 = vset.pattern.permute.xlu0 0
      %958 = vperm.xlu0 %957, %v672
      %v959 = vpop.permute.xlu0 %958
      %962 = vset.pattern.permute.xlu0 0
      %963 = vperm.xlu0 %962, %v673
      %v964 = vpop.permute.xlu0 %963
      %967 = vset.pattern.permute.xlu0 0
      %968 = vperm.xlu0 %967, %v674
      %v969 = vpop.permute.xlu0 %968
      %972 = vset.pattern.permute.xlu0 0
      %973 = vperm.xlu0 %972, %v675
      %v974 = vpop.permute.xlu0 %973
      %977 = vset.pattern.permute.xlu0 0
      %978 = vperm.xlu0 %977, %v676
      %v979 = vpop.permute.xlu0 %978
      %982 = vset.pattern.permute.xlu0 0
      %983 = vperm.xlu0 %982, %v677
      %v984 = vpop.permute.xlu0 %983
      %987 = vset.pattern.permute.xlu0 0
      %988 = vperm.xlu0 %987, %v678
      %v989 = vpop.permute.xlu0 %988
      %992 = vset.pattern.permute.xlu0 0
      %993 = vperm.xlu0 %992, %v679
      %v994 = vpop.permute.xlu0 %993
      %997 = vset.pattern.permute.xlu0 0
      %998 = vperm.xlu0 %997, %v680
      %v999 = vpop.permute.xlu0 %998
      %1002 = vset.pattern.permute.xlu0 0
      %1003 = vperm.xlu0 %1002, %v681
      %v1004 = vpop.permute.xlu0 %1003
      %1007 = vset.pattern.permute.xlu0 0
      %1008 = vperm.xlu0 %1007, %v682
      %v1009 = vpop.permute.xlu0 %1008
      %1012 = vset.pattern.permute.xlu0 0
      %1013 = vperm.xlu0 %1012, %v683
      %v1014 = vpop.permute.xlu0 %1013
      %1017 = vset.pattern.permute.xlu0 0
      %1018 = vperm.xlu0 %1017, %v684
      %v1019 = vpop.permute.xlu0 %1018
      %1022 = vset.pattern.permute.xlu0 0
      %1023 = vperm.xlu0 %1022, %v685
      %v1024 = vpop.permute.xlu0 %1023
      %1027 = vset.pattern.permute.xlu0 0
      %1028 = vperm.xlu0 %1027, %v686
      %v1029 = vpop.permute.xlu0 %1028
      %1032 = vset.pattern.permute.xlu0 0
      %1033 = vperm.xlu0 %1032, %v687
      %v1034 = vpop.permute.xlu0 %1033
      %1037 = vset.pattern.permute.xlu0 0
      %1038 = vperm.xlu0 %1037, %v688
      %v1039 = vpop.permute.xlu0 %1038
      %1042 = vset.pattern.permute.xlu0 0
      %1043 = vperm.xlu0 %1042, %v689
      %v1044 = vpop.permute.xlu0 %1043
      %1047 = vset.pattern.permute.xlu0 0
      %1048 = vperm.xlu0 %1047, %v690
      %v1049 = vpop.permute.xlu0 %1048
      %1052 = vset.pattern.permute.xlu0 0
      %1053 = vperm.xlu0 %1052, %v691
      %v1054 = vpop.permute.xlu0 %1053
      %1057 = vset.pattern.permute.xlu0 0
      %1058 = vperm.xlu0 %1057, %v692
      %v1059 = vpop.permute.xlu0 %1058
      %1062 = vset.pattern.permute.xlu0 0
      %1063 = vperm.xlu0 %1062, %v693
      %v1064 = vpop.permute.xlu0 %1063
      %1067 = vset.pattern.permute.xlu0 0
      %1068 = vperm.xlu0 %1067, %v694
      %v1069 = vpop.permute.xlu0 %1068
      %1072 = vset.pattern.permute.xlu0 0
      %1073 = vperm.xlu0 %1072, %v695
      %v1074 = vpop.permute.xlu0 %1073
      %1077 = vset.pattern.permute.xlu0 0
      %1078 = vperm.xlu0 %1077, %v696
      %v1079 = vpop.permute.xlu0 %1078
      %1082 = vset.pattern.permute.xlu0 0
      %1083 = vperm.xlu0 %1082, %v697
      %v1084 = vpop.permute.xlu0 %1083
      %1087 = vset.pattern.permute.xlu0 0
      %1088 = vperm.xlu0 %1087, %v698
      %v1089 = vpop.permute.xlu0 %1088
      %1092 = vset.pattern.permute.xlu0 0
      %1093 = vperm.xlu0 %1092, %v699
      %v1094 = vpop.permute.xlu0 %1093
      %1097 = vset.pattern.permute.xlu0 0
      %1098 = vperm.xlu0 %1097, %v700
      %v1099 = vpop.permute.xlu0 %1098
      %1102 = vset.pattern.permute.xlu0 0
      %1103 = vperm.xlu0 %1102, %v701
      %v1104 = vpop.permute.xlu0 %1103
      %1107 = vset.pattern.permute.xlu0 0
      %1108 = vperm.xlu0 %1107, %v702
      %v1109 = vpop.permute.xlu0 %1108
      %1112 = vset.pattern.permute.xlu0 0
      %1113 = vperm.xlu0 %1112, %v703
      %v1114 = vpop.permute.xlu0 %1113
      %1117 = vset.pattern.permute.xlu0 0
      %1118 = vperm.xlu0 %1117, %v704
      %v1119 = vpop.permute.xlu0 %1118
      %1122 = vset.pattern.permute.xlu0 0
      %1123 = vperm.xlu0 %1122, %v705
      %v1124 = vpop.permute.xlu0 %1123
      %1127 = vset.pattern.permute.xlu0 0
      %1128 = vperm.xlu0 %1127, %v706
      %v1129 = vpop.permute.xlu0 %1128
      %1132 = vset.pattern.permute.xlu0 0
      %1133 = vperm.xlu0 %1132, %v707
      %v1134 = vpop.permute.xlu0 %1133
      %1137 = vset.pattern.permute.xlu0 0
      %1138 = vperm.xlu0 %1137, %v708
      %v1139 = vpop.permute.xlu0 %1138
      %1142 = vset.pattern.permute.xlu0 0
      %1143 = vperm.xlu0 %1142, %v709
      %v1144 = vpop.permute.xlu0 %1143
      %1147 = vset.pattern.permute.xlu0 0
      %1148 = vperm.xlu0 %1147, %v710
      %v1149 = vpop.permute.xlu0 %1148
      %1152 = vset.pattern.permute.xlu0 0
      %1153 = vperm.xlu0 %1152, %v711
      %v1154 = vpop.permute.xlu0 %1153
      %1157 = vset.pattern.permute.xlu0 0
      %1158 = vperm.xlu0 %1157, %v712
      %v1159 = vpop.permute.xlu0 %1158
      %1162 = vset.pattern.permute.xlu0 0
      %1163 = vperm.xlu0 %1162, %v713
      %v1164 = vpop.permute.xlu0 %1163
      %1167 = vset.pattern.permute.xlu0 0
      %1168 = vperm.xlu0 %1167, %v714
      %v1169 = vpop.permute.xlu0 %1168
      %1172 = vset.pattern.permute.xlu0 0
      %1173 = vperm.xlu0 %1172, %v715
      %v1174 = vpop.permute.xlu0 %1173
      %1177 = vset.pattern.permute.xlu0 0
      %1178 = vperm.xlu0 %1177, %v716
      %v1179 = vpop.permute.xlu0 %1178
      %1182 = vset.pattern.permute.xlu0 0
      %1183 = vperm.xlu0 %1182, %v717
      %v1184 = vpop.permute.xlu0 %1183
      %1187 = vset.pattern.permute.xlu0 0
      %1188 = vperm.xlu0 %1187, %v718
      %v1189 = vpop.permute.xlu0 %1188
      %1192 = vset.pattern.permute.xlu0 0
      %1193 = vperm.xlu0 %1192, %v719
      %v1194 = vpop.permute.xlu0 %1193
      %1197 = vset.pattern.permute.xlu0 0
      %1198 = vperm.xlu0 %1197, %v720
      %v1199 = vpop.permute.xlu0 %1198
      %v1489 = vunpack.c.l.b16 %v265
      %v1490 = vunpack.c.h.b16 %v265
      %v1491 = vunpack.c.l.b16 %v266
      %v1492 = vunpack.c.h.b16 %v266
      %v1493 = vunpack.c.l.b16 %v267
      %v1494 = vunpack.c.l.b16 %v268
      %v1495 = vunpack.c.h.b16 %v268
      %v1496 = vunpack.c.l.b16 %v269
      %v1497 = vunpack.c.h.b16 %v269
      %v1498 = vunpack.c.l.b16 %v270
      %v1499 = vunpack.c.l.b16 %v271
      %v1500 = vunpack.c.h.b16 %v271
      %v1501 = vunpack.c.l.b16 %v272
      %v1502 = vunpack.c.h.b16 %v272
      %v1503 = vunpack.c.l.b16 %v273
      %v1504 = vunpack.c.l.b16 %v274
      %v1505 = vunpack.c.h.b16 %v274
      %v1506 = vunpack.c.l.b16 %v275
      %v1507 = vunpack.c.h.b16 %v275
      %v1508 = vunpack.c.l.b16 %v276
      %v1509 = vunpack.c.l.b16 %v277
      %v1510 = vunpack.c.h.b16 %v277
      %v1511 = vunpack.c.l.b16 %v278
      %v1512 = vunpack.c.h.b16 %v278
      %v1513 = vunpack.c.l.b16 %v279
      %v1514 = vunpack.c.l.b16 %v280
      %v1515 = vunpack.c.h.b16 %v280
      %v1516 = vunpack.c.l.b16 %v281
      %v1517 = vunpack.c.h.b16 %v281
      %v1518 = vunpack.c.l.b16 %v282
      %v1519 = vunpack.c.l.b16 %v283
      %v1520 = vunpack.c.h.b16 %v283
      %v1521 = vunpack.c.l.b16 %v284
      %v1522 = vunpack.c.h.b16 %v284
      %v1523 = vunpack.c.l.b16 %v285
      %v1524 = vunpack.c.l.b16 %v286
      %v1525 = vunpack.c.h.b16 %v286
      %v1526 = vunpack.c.l.b16 %v287
      %v1527 = vunpack.c.h.b16 %v287
      %v1528 = vunpack.c.l.b16 %v288
      %v1529 = vunpack.c.l.b16 %v289
      %v1530 = vunpack.c.h.b16 %v289
      %v1531 = vunpack.c.l.b16 %v290
      %v1532 = vunpack.c.h.b16 %v290
      %v1533 = vunpack.c.l.b16 %v291
      %v1534 = vunpack.c.l.b16 %v292
      %v1535 = vunpack.c.h.b16 %v292
      %v1536 = vunpack.c.l.b16 %v293
      %v1537 = vunpack.c.h.b16 %v293
      %v1538 = vunpack.c.l.b16 %v294
      %v1539 = vunpack.c.l.b16 %v295
      %v1540 = vunpack.c.h.b16 %v295
      %v1541 = vunpack.c.l.b16 %v296
      %v1542 = vunpack.c.h.b16 %v296
      %v1543 = vunpack.c.l.b16 %v297
      %v1544 = vunpack.c.l.b16 %v298
      %v1545 = vunpack.c.h.b16 %v298
      %v1546 = vunpack.c.l.b16 %v299
      %v1547 = vunpack.c.h.b16 %v299
      %v1548 = vunpack.c.l.b16 %v300
      %v1549 = vunpack.c.l.b16 %v301
      %v1550 = vunpack.c.h.b16 %v301
      %v1551 = vunpack.c.l.b16 %v302
      %v1552 = vunpack.c.h.b16 %v302
      %v1553 = vunpack.c.l.b16 %v303
      %v1554 = vunpack.c.l.b16 %v304
      %v1555 = vunpack.c.h.b16 %v304
      %v1556 = vunpack.c.l.b16 %v305
      %v1557 = vunpack.c.h.b16 %v305
      %v1558 = vunpack.c.l.b16 %v306
      %v1559 = vunpack.c.l.b16 %v307
      %v1560 = vunpack.c.h.b16 %v307
      %v1561 = vunpack.c.l.b16 %v308
      %v1562 = vunpack.c.h.b16 %v308
      %v1563 = vunpack.c.l.b16 %v309
      %v1564 = vunpack.c.l.b16 %v310
      %v1565 = vunpack.c.h.b16 %v310
      %v1566 = vunpack.c.l.b16 %v311
      %v1567 = vunpack.c.h.b16 %v311
      %v1568 = vunpack.c.l.b16 %v312
      %v1569 = vunpack.c.l.b16 %v313
      %v1570 = vunpack.c.h.b16 %v313
      %v1571 = vunpack.c.l.b16 %v314
      %v1572 = vunpack.c.h.b16 %v314
      %v1573 = vunpack.c.l.b16 %v315
      %v1574 = vunpack.c.l.b16 %v316
      %v1575 = vunpack.c.h.b16 %v316
      %v1576 = vunpack.c.l.b16 %v317
      %v1577 = vunpack.c.h.b16 %v317
      %v1578 = vunpack.c.l.b16 %v318
      %v1579 = vunpack.c.l.b16 %v319
      %v1580 = vunpack.c.h.b16 %v319
      %v1581 = vunpack.c.l.b16 %v320
      %v1582 = vunpack.c.h.b16 %v320
      %v1583 = vunpack.c.l.b16 %v321
      %v1584 = vunpack.c.l.b16 %v322
      %v1585 = vunpack.c.h.b16 %v322
      %v1586 = vunpack.c.l.b16 %v323
      %v1587 = vunpack.c.h.b16 %v323
      %v1588 = vunpack.c.l.b16 %v324
      %v1589 = vunpack.c.l.b16 %v325
      %v1590 = vunpack.c.h.b16 %v325
      %v1591 = vunpack.c.l.b16 %v326
      %v1592 = vunpack.c.h.b16 %v326
      %v1593 = vunpack.c.l.b16 %v327
      %v1594 = vunpack.c.l.b16 %v328
      %v1595 = vunpack.c.h.b16 %v328
      %v1596 = vunpack.c.l.b16 %v329
      %v1597 = vunpack.c.h.b16 %v329
      %v1598 = vunpack.c.l.b16 %v330
      %v1599 = vunpack.c.l.b16 %v331
      %v1600 = vunpack.c.h.b16 %v331
      %v1601 = vunpack.c.l.b16 %v332
      %v1602 = vunpack.c.h.b16 %v332
      %v1603 = vunpack.c.l.b16 %v333
      %v1604 = vunpack.c.l.b16 %v334
      %v1605 = vunpack.c.h.b16 %v334
      %v1606 = vunpack.c.l.b16 %v335
      %v1607 = vunpack.c.h.b16 %v335
      %v1608 = vunpack.c.l.b16 %v336
      %v1609 = vunpack.c.l.b16 %v337
      %v1610 = vunpack.c.h.b16 %v337
      %v1611 = vunpack.c.l.b16 %v338
      %v1612 = vunpack.c.h.b16 %v338
      %v1613 = vunpack.c.l.b16 %v339
      %v1614 = vunpack.c.l.b16 %v340
      %v1615 = vunpack.c.h.b16 %v340
      %v1616 = vunpack.c.l.b16 %v341
      %v1617 = vunpack.c.h.b16 %v341
      %v1618 = vunpack.c.l.b16 %v342
      %v1619 = vunpack.c.l.b16 %v343
      %v1620 = vunpack.c.h.b16 %v343
      %v1621 = vunpack.c.l.b16 %v344
      %v1622 = vunpack.c.h.b16 %v344
      %v1623 = vunpack.c.l.b16 %v345
      %v1624 = vunpack.c.l.b16 %v346
      %v1625 = vunpack.c.h.b16 %v346
      %v1626 = vunpack.c.l.b16 %v347
      %v1627 = vunpack.c.h.b16 %v347
      %v1628 = vunpack.c.l.b16 %v348
      %v1629 = vunpack.c.l.b16 %v349
      %v1630 = vunpack.c.h.b16 %v349
      %v1631 = vunpack.c.l.b16 %v350
      %v1632 = vunpack.c.h.b16 %v350
      %v1633 = vunpack.c.l.b16 %v351
      %v1634 = vunpack.c.l.b16 %v352
      %v1635 = vunpack.c.h.b16 %v352
      %v1636 = vunpack.c.l.b16 %v353
      %v1637 = vunpack.c.h.b16 %v353
      %v1638 = vunpack.c.l.b16 %v354
      %v1639 = vunpack.c.l.b16 %v355
      %v1640 = vunpack.c.h.b16 %v355
      %v1641 = vunpack.c.l.b16 %v356
      %v1642 = vunpack.c.h.b16 %v356
      %v1643 = vunpack.c.l.b16 %v357
      %v1644 = vunpack.c.l.b16 %v358
      %v1645 = vunpack.c.h.b16 %v358
      %v1646 = vunpack.c.l.b16 %v359
      %v1647 = vunpack.c.h.b16 %v359
      %v1648 = vunpack.c.l.b16 %v360
      %v1649 = vunpack.c.l.b16 %v361
      %v1650 = vunpack.c.h.b16 %v361
      %v1651 = vunpack.c.l.b16 %v362
      %v1652 = vunpack.c.h.b16 %v362
      %v1653 = vunpack.c.l.b16 %v363
      %v1654 = vunpack.c.l.b16 %v364
      %v1655 = vunpack.c.h.b16 %v364
      %v1656 = vunpack.c.l.b16 %v365
      %v1657 = vunpack.c.h.b16 %v365
      %v1658 = vunpack.c.l.b16 %v366
      %v1659 = vunpack.c.l.b16 %v367
      %v1660 = vunpack.c.h.b16 %v367
      %v1661 = vunpack.c.l.b16 %v368
      %v1662 = vunpack.c.h.b16 %v368
      %v1663 = vunpack.c.l.b16 %v369
      %v1664 = vunpack.c.l.b16 %v370
      %v1665 = vunpack.c.h.b16 %v370
      %v1666 = vunpack.c.l.b16 %v371
      %v1667 = vunpack.c.h.b16 %v371
      %v1668 = vunpack.c.l.b16 %v372
      %v1669 = vunpack.c.l.b16 %v373
      %v1670 = vunpack.c.h.b16 %v373
      %v1671 = vunpack.c.l.b16 %v374
      %v1672 = vunpack.c.h.b16 %v374
      %v1673 = vunpack.c.l.b16 %v375
      %v1674 = vunpack.c.l.b16 %v376
      %v1675 = vunpack.c.h.b16 %v376
      %v1676 = vunpack.c.l.b16 %v377
      %v1677 = vunpack.c.h.b16 %v377
      %v1678 = vunpack.c.l.b16 %v378
      %v1679 = vunpack.c.l.b16 %v379
      %v1680 = vunpack.c.h.b16 %v379
      %v1681 = vunpack.c.l.b16 %v380
      %v1682 = vunpack.c.h.b16 %v380
      %v1683 = vunpack.c.l.b16 %v381
      %v1684 = vunpack.c.l.b16 %v382
      %v1685 = vunpack.c.h.b16 %v382
      %v1686 = vunpack.c.l.b16 %v383
      %v1687 = vunpack.c.h.b16 %v383
      %v1688 = vunpack.c.l.b16 %v384
      %v1689 = vunpack.c.l.b16 %v385
      %v1690 = vunpack.c.h.b16 %v385
      %v1691 = vunpack.c.l.b16 %v386
      %v1692 = vunpack.c.h.b16 %v386
      %v1693 = vunpack.c.l.b16 %v387
      %v1694 = vunpack.c.l.b16 %v388
      %v1695 = vunpack.c.h.b16 %v388
      %v1696 = vunpack.c.l.b16 %v389
      %v1697 = vunpack.c.h.b16 %v389
      %v1698 = vunpack.c.l.b16 %v390
      %v1699 = vunpack.c.l.b16 %v391
      %v1700 = vunpack.c.h.b16 %v391
      %v1701 = vunpack.c.l.b16 %v392
      %v1702 = vunpack.c.h.b16 %v392
      %v1703 = vunpack.c.l.b16 %v393
      %v1704 = vunpack.c.l.b16 %v394
      %v1705 = vunpack.c.h.b16 %v394
      %v1706 = vunpack.c.l.b16 %v395
      %v1707 = vunpack.c.h.b16 %v395
      %v1708 = vunpack.c.l.b16 %v396
      %v1709 = vunpack.c.l.b16 %v397
      %v1710 = vunpack.c.h.b16 %v397
      %v1711 = vunpack.c.l.b16 %v398
      %v1712 = vunpack.c.h.b16 %v398
      %v1713 = vunpack.c.l.b16 %v399
      %v1714 = vunpack.c.l.b16 %v400
      %v1715 = vunpack.c.h.b16 %v400
      %v1716 = vunpack.c.l.b16 %v401
      %v1717 = vunpack.c.h.b16 %v401
      %v1718 = vunpack.c.l.b16 %v402
      %v1719 = vunpack.c.l.b16 %v403
      %v1720 = vunpack.c.h.b16 %v403
      %v1721 = vunpack.c.l.b16 %v404
      %v1722 = vunpack.c.h.b16 %v404
      %v1723 = vunpack.c.l.b16 %v405
      %v1724 = vunpack.c.l.b16 %v406
      %v1725 = vunpack.c.h.b16 %v406
      %v1726 = vunpack.c.l.b16 %v407
      %v1727 = vunpack.c.h.b16 %v407
      %v1728 = vunpack.c.l.b16 %v408
      %v1729 = vunpack.c.l.b16 %v409
      %v1730 = vunpack.c.h.b16 %v409
      %v1731 = vunpack.c.l.b16 %v410
      %v1732 = vunpack.c.h.b16 %v410
      %v1733 = vunpack.c.l.b16 %v411
      %v1734 = vunpack.c.l.b16 %v412
      %v1735 = vunpack.c.h.b16 %v412
      %v1736 = vunpack.c.l.b16 %v413
      %v1737 = vunpack.c.h.b16 %v413
      %v1738 = vunpack.c.l.b16 %v414
      %v1739 = vunpack.c.l.b16 %v415
      %v1740 = vunpack.c.h.b16 %v415
      %v1741 = vunpack.c.l.b16 %v416
      %v1742 = vunpack.c.h.b16 %v416
      %v1743 = vunpack.c.l.b16 %v417
      %v1744 = vunpack.c.l.b16 %v418
      %v1745 = vunpack.c.h.b16 %v418
      %v1746 = vunpack.c.l.b16 %v419
      %v1747 = vunpack.c.h.b16 %v419
      %v1748 = vunpack.c.l.b16 %v420
      %v1749 = vunpack.c.l.b16 %v421
      %v1750 = vunpack.c.h.b16 %v421
      %v1751 = vunpack.c.l.b16 %v422
      %v1752 = vunpack.c.h.b16 %v422
      %v1753 = vunpack.c.l.b16 %v423
      %v1754 = vunpack.c.l.b16 %v424
      %v1755 = vunpack.c.h.b16 %v424
      %v1756 = vunpack.c.l.b16 %v425
      %v1757 = vunpack.c.h.b16 %v425
      %v1758 = vunpack.c.l.b16 %v426
      %v1759 = vunpack.c.l.b16 %v427
      %v1760 = vunpack.c.h.b16 %v427
      %v1761 = vunpack.c.l.b16 %v428
      %v1762 = vunpack.c.h.b16 %v428
      %v1763 = vunpack.c.l.b16 %v429
      %v1764 = vunpack.c.l.b16 %v430
      %v1765 = vunpack.c.h.b16 %v430
      %v1766 = vunpack.c.l.b16 %v431
      %v1767 = vunpack.c.h.b16 %v431
      %v1768 = vunpack.c.l.b16 %v432
      %v1769 = vunpack.c.l.b16 %v433
      %v1770 = vunpack.c.h.b16 %v433
      %v1771 = vunpack.c.l.b16 %v434
      %v1772 = vunpack.c.h.b16 %v434
      %v1773 = vunpack.c.l.b16 %v435
      %v1774 = vunpack.c.l.b16 %v436
      %v1775 = vunpack.c.h.b16 %v436
      %v1776 = vunpack.c.l.b16 %v437
      %v1777 = vunpack.c.h.b16 %v437
      %v1778 = vunpack.c.l.b16 %v438
      %v1779 = vunpack.c.l.b16 %v439
      %v1780 = vunpack.c.h.b16 %v439
      %v1781 = vunpack.c.l.b16 %v440
      %v1782 = vunpack.c.h.b16 %v440
      %v1783 = vunpack.c.l.b16 %v441
      %v1784 = vunpack.c.l.b16 %v442
      %v1785 = vunpack.c.h.b16 %v442
      %v1786 = vunpack.c.l.b16 %v443
      %v1787 = vunpack.c.h.b16 %v443
      %v1788 = vunpack.c.l.b16 %v444
      %v1789 = vunpack.c.l.b16 %v445
      %v1790 = vunpack.c.h.b16 %v445
      %v1791 = vunpack.c.l.b16 %v446
      %v1792 = vunpack.c.h.b16 %v446
      %v1793 = vunpack.c.l.b16 %v447
      %v1794 = vunpack.c.l.b16 %v448
      %v1795 = vunpack.c.h.b16 %v448
      %v1796 = vunpack.c.l.b16 %v449
      %v1797 = vunpack.c.h.b16 %v449
      %v1798 = vunpack.c.l.b16 %v450
      %v1799 = vunpack.c.l.b16 %v451
      %v1800 = vunpack.c.h.b16 %v451
      %v1801 = vunpack.c.l.b16 %v452
      %v1802 = vunpack.c.h.b16 %v452
      %v1803 = vunpack.c.l.b16 %v453
      %v1804 = vunpack.c.l.b16 %v454
      %v1805 = vunpack.c.h.b16 %v454
      %v1806 = vunpack.c.l.b16 %v455
      %v1807 = vunpack.c.h.b16 %v455
      %v1808 = vunpack.c.l.b16 %v456
      %v1809 = vunpack.c.l.b16 %v457
      %v1810 = vunpack.c.h.b16 %v457
      %v1811 = vunpack.c.l.b16 %v458
      %v1812 = vunpack.c.h.b16 %v458
      %v1813 = vunpack.c.l.b16 %v459
      %v1814 = vunpack.c.l.b16 %v460
      %v1815 = vunpack.c.h.b16 %v460
      %v1816 = vunpack.c.l.b16 %v461
      %v1817 = vunpack.c.h.b16 %v461
      %v1818 = vunpack.c.l.b16 %v462
      %v1819 = vunpack.c.l.b16 %v463
      %v1820 = vunpack.c.h.b16 %v463
      %v1821 = vunpack.c.l.b16 %v464
      %v1822 = vunpack.c.h.b16 %v464
      %v1823 = vunpack.c.l.b16 %v465
      %v1824 = vunpack.c.l.b16 %v466
      %v1825 = vunpack.c.h.b16 %v466
      %v1826 = vunpack.c.l.b16 %v467
      %v1827 = vunpack.c.h.b16 %v467
      %v1828 = vunpack.c.l.b16 %v468
      %v1829 = vunpack.c.l.b16 %v469
      %v1830 = vunpack.c.h.b16 %v469
      %v1831 = vunpack.c.l.b16 %v470
      %v1832 = vunpack.c.h.b16 %v470
      %v1833 = vunpack.c.l.b16 %v471
      %v1834 = vunpack.c.l.b16 %v472
      %v1835 = vunpack.c.h.b16 %v472
      %v1836 = vunpack.c.l.b16 %v473
      %v1837 = vunpack.c.h.b16 %v473
      %v1838 = vunpack.c.l.b16 %v474
      %v1839 = vunpack.c.l.b16 %v475
      %v1840 = vunpack.c.h.b16 %v475
      %v1841 = vunpack.c.l.b16 %v476
      %v1842 = vunpack.c.h.b16 %v476
      %v1843 = vunpack.c.l.b16 %v477
      %v1844 = vunpack.c.l.b16 %v478
      %v1845 = vunpack.c.h.b16 %v478
      %v1846 = vunpack.c.l.b16 %v479
      %v1847 = vunpack.c.h.b16 %v479
      %v1848 = vunpack.c.l.b16 %v480
      %v1849 = vunpack.c.l.b16 %v481
      %v1850 = vunpack.c.h.b16 %v481
      %v1851 = vunpack.c.l.b16 %v482
      %v1852 = vunpack.c.h.b16 %v482
      %v1853 = vunpack.c.l.b16 %v483
      %v1854 = vunpack.c.l.b16 %v484
      %v1855 = vunpack.c.h.b16 %v484
      %v1856 = vunpack.c.l.b16 %v485
      %v1857 = vunpack.c.h.b16 %v485
      %v1858 = vunpack.c.l.b16 %v486
      %v1859 = vunpack.c.l.b16 %v487
      %v1860 = vunpack.c.h.b16 %v487
      %v1861 = vunpack.c.l.b16 %v488
      %v1862 = vunpack.c.h.b16 %v488
      %v1863 = vunpack.c.l.b16 %v489
      %v1864 = vunpack.c.l.b16 %v490
      %v1865 = vunpack.c.h.b16 %v490
      %v1866 = vunpack.c.l.b16 %v491
      %v1867 = vunpack.c.h.b16 %v491
      %v1868 = vunpack.c.l.b16 %v492
      %v1869 = vunpack.c.l.b16 %v493
      %v1870 = vunpack.c.h.b16 %v493
      %v1871 = vunpack.c.l.b16 %v494
      %v1872 = vunpack.c.h.b16 %v494
      %v1873 = vunpack.c.l.b16 %v495
      %v1874 = vunpack.c.l.b16 %v496
      %v1875 = vunpack.c.h.b16 %v496
      %v1876 = vunpack.c.l.b16 %v497
      %v1877 = vunpack.c.h.b16 %v497
      %v1878 = vunpack.c.l.b16 %v498
      %v1879 = vunpack.c.l.b16 %v499
      %v1880 = vunpack.c.h.b16 %v499
      %v1881 = vunpack.c.l.b16 %v500
      %v1882 = vunpack.c.h.b16 %v500
      %v1883 = vunpack.c.l.b16 %v501
      %v1884 = vunpack.c.l.b16 %v502
      %v1885 = vunpack.c.h.b16 %v502
      %v1886 = vunpack.c.l.b16 %v503
      %v1887 = vunpack.c.h.b16 %v503
      %v1888 = vunpack.c.l.b16 %v504
      %v1889 = vunpack.c.l.b16 %v505
      %v1890 = vunpack.c.h.b16 %v505
      %v1891 = vunpack.c.l.b16 %v506
      %v1892 = vunpack.c.h.b16 %v506
      %v1893 = vunpack.c.l.b16 %v507
      %v1894 = vunpack.c.l.b16 %v508
      %v1895 = vunpack.c.h.b16 %v508
      %v1896 = vunpack.c.l.b16 %v509
      %v1897 = vunpack.c.h.b16 %v509
      %v1898 = vunpack.c.l.b16 %v510
      %v1899 = vunpack.c.l.b16 %v511
      %v1900 = vunpack.c.h.b16 %v511
      %v1901 = vunpack.c.l.b16 %v512
      %v1902 = vunpack.c.h.b16 %v512
      %v1903 = vunpack.c.l.b16 %v513
      %v1904 = vunpack.c.l.b16 %v514
      %v1905 = vunpack.c.h.b16 %v514
      %v1906 = vunpack.c.l.b16 %v515
      %v1907 = vunpack.c.h.b16 %v515
      %v1908 = vunpack.c.l.b16 %v516
      %v1909 = vunpack.c.l.b16 %v517
      %v1910 = vunpack.c.h.b16 %v517
      %v1911 = vunpack.c.l.b16 %v518
      %v1912 = vunpack.c.h.b16 %v518
      %v1913 = vunpack.c.l.b16 %v519
      %v1914 = vunpack.c.l.b16 %v520
      %v1915 = vunpack.c.h.b16 %v520
      %v1916 = vunpack.c.l.b16 %v521
      %v1917 = vunpack.c.h.b16 %v521
      %v1918 = vunpack.c.l.b16 %v522
      %v1919 = vunpack.c.l.b16 %v523
      %v1920 = vunpack.c.h.b16 %v523
      %v1921 = vunpack.c.l.b16 %v524
      %v1922 = vunpack.c.h.b16 %v524
      %v1923 = vunpack.c.l.b16 %v525
      %v1924 = vunpack.c.l.b16 %v526
      %v1925 = vunpack.c.h.b16 %v526
      %v1926 = vunpack.c.l.b16 %v527
      %v1927 = vunpack.c.h.b16 %v527
      %v1928 = vunpack.c.l.b16 %v528
      %v1929 = vunpack.c.l.b16 %v529
      %v1930 = vunpack.c.h.b16 %v529
      %v1931 = vunpack.c.l.b16 %v530
      %v1932 = vunpack.c.h.b16 %v530
      %v1933 = vunpack.c.l.b16 %v531
      %v1934 = vunpack.c.l.b16 %v532
      %v1935 = vunpack.c.h.b16 %v532
      %v1936 = vunpack.c.l.b16 %v533
      %v1937 = vunpack.c.h.b16 %v533
      %v1938 = vunpack.c.l.b16 %v534
      %v1939 = vunpack.c.l.b16 %v535
      %v1940 = vunpack.c.h.b16 %v535
      %v1941 = vunpack.c.l.b16 %v536
      %v1942 = vunpack.c.h.b16 %v536
      %v1943 = vunpack.c.l.b16 %v537
      %v1944 = vunpack.c.l.b16 %v538
      %v1945 = vunpack.c.h.b16 %v538
      %v1946 = vunpack.c.l.b16 %v539
      %v1947 = vunpack.c.h.b16 %v539
      %v1948 = vunpack.c.l.b16 %v540
      %v1949 = vunpack.c.l.b16 %v541
      %v1950 = vunpack.c.h.b16 %v541
      %v1951 = vunpack.c.l.b16 %v542
      %v1952 = vunpack.c.h.b16 %v542
      %v1953 = vunpack.c.l.b16 %v543
      %v1954 = vunpack.c.l.b16 %v544
      %v1955 = vunpack.c.h.b16 %v544
      %v1956 = vunpack.c.l.b16 %v545
      %v1957 = vunpack.c.h.b16 %v545
      %v1958 = vunpack.c.l.b16 %v546
      %v1959 = vunpack.c.l.b16 %v547
      %v1960 = vunpack.c.h.b16 %v547
      %v1961 = vunpack.c.l.b16 %v548
      %v1962 = vunpack.c.h.b16 %v548
      %v1963 = vunpack.c.l.b16 %v549
      %v1964 = vunpack.c.l.b16 %v550
      %v1965 = vunpack.c.h.b16 %v550
      %v1966 = vunpack.c.l.b16 %v551
      %v1967 = vunpack.c.h.b16 %v551
      %v1968 = vunpack.c.l.b16 %v552
      %v1969 = vpack.c.b16 %v1494, %v1489
      %v1970 = vpack.c.b16 %v1495, %v1490
      %v1971 = vpack.c.b16 %v1496, %v1491
      %v1972 = vpack.c.b16 %v1497, %v1492
      %v1973 = vpack.c.b16 %v1498, %v1493
      %v1974 = vpack.c.b16 %v1504, %v1499
      %v1975 = vpack.c.b16 %v1505, %v1500
      %v1976 = vpack.c.b16 %v1506, %v1501
      %v1977 = vpack.c.b16 %v1507, %v1502
      %v1978 = vpack.c.b16 %v1508, %v1503
      %v1979 = vpack.c.b16 %v1514, %v1509
      %v1980 = vpack.c.b16 %v1515, %v1510
      %v1981 = vpack.c.b16 %v1516, %v1511
      %v1982 = vpack.c.b16 %v1517, %v1512
      %v1983 = vpack.c.b16 %v1518, %v1513
      %v1984 = vpack.c.b16 %v1524, %v1519
      %v1985 = vpack.c.b16 %v1525, %v1520
      %v1986 = vpack.c.b16 %v1526, %v1521
      %v1987 = vpack.c.b16 %v1527, %v1522
      %v1988 = vpack.c.b16 %v1528, %v1523
      %v1989 = vpack.c.b16 %v1534, %v1529
      %v1990 = vpack.c.b16 %v1535, %v1530
      %v1991 = vpack.c.b16 %v1536, %v1531
      %v1992 = vpack.c.b16 %v1537, %v1532
      %v1993 = vpack.c.b16 %v1538, %v1533
      %v1994 = vpack.c.b16 %v1544, %v1539
      %v1995 = vpack.c.b16 %v1545, %v1540
      %v1996 = vpack.c.b16 %v1546, %v1541
      %v1997 = vpack.c.b16 %v1547, %v1542
      %v1998 = vpack.c.b16 %v1548, %v1543
      %v1999 = vpack.c.b16 %v1554, %v1549
      %v2000 = vpack.c.b16 %v1555, %v1550
      %v2001 = vpack.c.b16 %v1556, %v1551
      %v2002 = vpack.c.b16 %v1557, %v1552
      %v2003 = vpack.c.b16 %v1558, %v1553
      %v2004 = vpack.c.b16 %v1564, %v1559
      %v2005 = vpack.c.b16 %v1565, %v1560
      %v2006 = vpack.c.b16 %v1566, %v1561
      %v2007 = vpack.c.b16 %v1567, %v1562
      %v2008 = vpack.c.b16 %v1568, %v1563
      %v2009 = vpack.c.b16 %v1574, %v1569
      %v2010 = vpack.c.b16 %v1575, %v1570
      %v2011 = vpack.c.b16 %v1576, %v1571
      %v2012 = vpack.c.b16 %v1577, %v1572
      %v2013 = vpack.c.b16 %v1578, %v1573
      %v2014 = vpack.c.b16 %v1584, %v1579
      %v2015 = vpack.c.b16 %v1585, %v1580
      %v2016 = vpack.c.b16 %v1586, %v1581
      %v2017 = vpack.c.b16 %v1587, %v1582
      %v2018 = vpack.c.b16 %v1588, %v1583
      %v2019 = vpack.c.b16 %v1594, %v1589
      %v2020 = vpack.c.b16 %v1595, %v1590
      %v2021 = vpack.c.b16 %v1596, %v1591
      %v2022 = vpack.c.b16 %v1597, %v1592
      %v2023 = vpack.c.b16 %v1598, %v1593
      %v2024 = vpack.c.b16 %v1604, %v1599
      %v2025 = vpack.c.b16 %v1605, %v1600
      %v2026 = vpack.c.b16 %v1606, %v1601
      %v2027 = vpack.c.b16 %v1607, %v1602
      %v2028 = vpack.c.b16 %v1608, %v1603
      %v2029 = vpack.c.b16 %v1614, %v1609
      %v2030 = vpack.c.b16 %v1615, %v1610
      %v2031 = vpack.c.b16 %v1616, %v1611
      %v2032 = vpack.c.b16 %v1617, %v1612
      %v2033 = vpack.c.b16 %v1618, %v1613
      %v2034 = vpack.c.b16 %v1624, %v1619
      %v2035 = vpack.c.b16 %v1625, %v1620
      %v2036 = vpack.c.b16 %v1626, %v1621
      %v2037 = vpack.c.b16 %v1627, %v1622
      %v2038 = vpack.c.b16 %v1628, %v1623
      %v2039 = vpack.c.b16 %v1634, %v1629
      %v2040 = vpack.c.b16 %v1635, %v1630
      %v2041 = vpack.c.b16 %v1636, %v1631
      %v2042 = vpack.c.b16 %v1637, %v1632
      %v2043 = vpack.c.b16 %v1638, %v1633
      %v2044 = vpack.c.b16 %v1644, %v1639
      %v2045 = vpack.c.b16 %v1645, %v1640
      %v2046 = vpack.c.b16 %v1646, %v1641
      %v2047 = vpack.c.b16 %v1647, %v1642
      %v2048 = vpack.c.b16 %v1648, %v1643
      %v2049 = vpack.c.b16 %v1654, %v1649
      %v2050 = vpack.c.b16 %v1655, %v1650
      %v2051 = vpack.c.b16 %v1656, %v1651
      %v2052 = vpack.c.b16 %v1657, %v1652
      %v2053 = vpack.c.b16 %v1658, %v1653
      %v2054 = vpack.c.b16 %v1664, %v1659
      %v2055 = vpack.c.b16 %v1665, %v1660
      %v2056 = vpack.c.b16 %v1666, %v1661
      %v2057 = vpack.c.b16 %v1667, %v1662
      %v2058 = vpack.c.b16 %v1668, %v1663
      %v2059 = vpack.c.b16 %v1674, %v1669
      %v2060 = vpack.c.b16 %v1675, %v1670
      %v2061 = vpack.c.b16 %v1676, %v1671
      %v2062 = vpack.c.b16 %v1677, %v1672
      %v2063 = vpack.c.b16 %v1678, %v1673
      %v2064 = vpack.c.b16 %v1684, %v1679
      %v2065 = vpack.c.b16 %v1685, %v1680
      %v2066 = vpack.c.b16 %v1686, %v1681
      %v2067 = vpack.c.b16 %v1687, %v1682
      %v2068 = vpack.c.b16 %v1688, %v1683
      %v2069 = vpack.c.b16 %v1694, %v1689
      %v2070 = vpack.c.b16 %v1695, %v1690
      %v2071 = vpack.c.b16 %v1696, %v1691
      %v2072 = vpack.c.b16 %v1697, %v1692
      %v2073 = vpack.c.b16 %v1698, %v1693
      %v2074 = vpack.c.b16 %v1704, %v1699
      %v2075 = vpack.c.b16 %v1705, %v1700
      %v2076 = vpack.c.b16 %v1706, %v1701
      %v2077 = vpack.c.b16 %v1707, %v1702
      %v2078 = vpack.c.b16 %v1708, %v1703
      %v2079 = vpack.c.b16 %v1714, %v1709
      %v2080 = vpack.c.b16 %v1715, %v1710
      %v2081 = vpack.c.b16 %v1716, %v1711
      %v2082 = vpack.c.b16 %v1717, %v1712
      %v2083 = vpack.c.b16 %v1718, %v1713
      %v2084 = vpack.c.b16 %v1724, %v1719
      %v2085 = vpack.c.b16 %v1725, %v1720
      %v2086 = vpack.c.b16 %v1726, %v1721
      %v2087 = vpack.c.b16 %v1727, %v1722
      %v2088 = vpack.c.b16 %v1728, %v1723
      %v2089 = vpack.c.b16 %v1734, %v1729
      %v2090 = vpack.c.b16 %v1735, %v1730
      %v2091 = vpack.c.b16 %v1736, %v1731
      %v2092 = vpack.c.b16 %v1737, %v1732
      %v2093 = vpack.c.b16 %v1738, %v1733
      %v2094 = vpack.c.b16 %v1744, %v1739
      %v2095 = vpack.c.b16 %v1745, %v1740
      %v2096 = vpack.c.b16 %v1746, %v1741
      %v2097 = vpack.c.b16 %v1747, %v1742
      %v2098 = vpack.c.b16 %v1748, %v1743
      %v2099 = vpack.c.b16 %v1754, %v1749
      %v2100 = vpack.c.b16 %v1755, %v1750
      %v2101 = vpack.c.b16 %v1756, %v1751
      %v2102 = vpack.c.b16 %v1757, %v1752
      %v2103 = vpack.c.b16 %v1758, %v1753
      %v2104 = vpack.c.b16 %v1764, %v1759
      %v2105 = vpack.c.b16 %v1765, %v1760
      %v2106 = vpack.c.b16 %v1766, %v1761
      %v2107 = vpack.c.b16 %v1767, %v1762
      %v2108 = vpack.c.b16 %v1768, %v1763
      %v2109 = vpack.c.b16 %v1774, %v1769
      %v2110 = vpack.c.b16 %v1775, %v1770
      %v2111 = vpack.c.b16 %v1776, %v1771
      %v2112 = vpack.c.b16 %v1777, %v1772
      %v2113 = vpack.c.b16 %v1778, %v1773
      %v2114 = vpack.c.b16 %v1784, %v1779
      %v2115 = vpack.c.b16 %v1785, %v1780
      %v2116 = vpack.c.b16 %v1786, %v1781
      %v2117 = vpack.c.b16 %v1787, %v1782
      %v2118 = vpack.c.b16 %v1788, %v1783
      %v2119 = vpack.c.b16 %v1794, %v1789
      %v2120 = vpack.c.b16 %v1795, %v1790
      %v2121 = vpack.c.b16 %v1796, %v1791
      %v2122 = vpack.c.b16 %v1797, %v1792
      %v2123 = vpack.c.b16 %v1798, %v1793
      %v2124 = vpack.c.b16 %v1804, %v1799
      %v2125 = vpack.c.b16 %v1805, %v1800
      %v2126 = vpack.c.b16 %v1806, %v1801
      %v2127 = vpack.c.b16 %v1807, %v1802
      %v2128 = vpack.c.b16 %v1808, %v1803
      %v2129 = vpack.c.b16 %v1814, %v1809
      %v2130 = vpack.c.b16 %v1815, %v1810
      %v2131 = vpack.c.b16 %v1816, %v1811
      %v2132 = vpack.c.b16 %v1817, %v1812
      %v2133 = vpack.c.b16 %v1818, %v1813
      %v2134 = vpack.c.b16 %v1824, %v1819
      %v2135 = vpack.c.b16 %v1825, %v1820
      %v2136 = vpack.c.b16 %v1826, %v1821
      %v2137 = vpack.c.b16 %v1827, %v1822
      %v2138 = vpack.c.b16 %v1828, %v1823
      %v2139 = vpack.c.b16 %v1834, %v1829
      %v2140 = vpack.c.b16 %v1835, %v1830
      %v2141 = vpack.c.b16 %v1836, %v1831
      %v2142 = vpack.c.b16 %v1837, %v1832
      %v2143 = vpack.c.b16 %v1838, %v1833
      %v2144 = vpack.c.b16 %v1844, %v1839
      %v2145 = vpack.c.b16 %v1845, %v1840
      %v2146 = vpack.c.b16 %v1846, %v1841
      %v2147 = vpack.c.b16 %v1847, %v1842
      %v2148 = vpack.c.b16 %v1848, %v1843
      %v2149 = vpack.c.b16 %v1854, %v1849
      %v2150 = vpack.c.b16 %v1855, %v1850
      %v2151 = vpack.c.b16 %v1856, %v1851
      %v2152 = vpack.c.b16 %v1857, %v1852
      %v2153 = vpack.c.b16 %v1858, %v1853
      %v2154 = vpack.c.b16 %v1864, %v1859
      %v2155 = vpack.c.b16 %v1865, %v1860
      %v2156 = vpack.c.b16 %v1866, %v1861
      %v2157 = vpack.c.b16 %v1867, %v1862
      %v2158 = vpack.c.b16 %v1868, %v1863
      %v2159 = vpack.c.b16 %v1874, %v1869
      %v2160 = vpack.c.b16 %v1875, %v1870
      %v2161 = vpack.c.b16 %v1876, %v1871
      %v2162 = vpack.c.b16 %v1877, %v1872
      %v2163 = vpack.c.b16 %v1878, %v1873
      %v2164 = vpack.c.b16 %v1884, %v1879
      %v2165 = vpack.c.b16 %v1885, %v1880
      %v2166 = vpack.c.b16 %v1886, %v1881
      %v2167 = vpack.c.b16 %v1887, %v1882
      %v2168 = vpack.c.b16 %v1888, %v1883
      %v2169 = vpack.c.b16 %v1894, %v1889
      %v2170 = vpack.c.b16 %v1895, %v1890
      %v2171 = vpack.c.b16 %v1896, %v1891
      %v2172 = vpack.c.b16 %v1897, %v1892
      %v2173 = vpack.c.b16 %v1898, %v1893
      %v2174 = vpack.c.b16 %v1904, %v1899
      %v2175 = vpack.c.b16 %v1905, %v1900
      %v2176 = vpack.c.b16 %v1906, %v1901
      %v2177 = vpack.c.b16 %v1907, %v1902
      %v2178 = vpack.c.b16 %v1908, %v1903
      %v2179 = vpack.c.b16 %v1914, %v1909
      %v2180 = vpack.c.b16 %v1915, %v1910
      %v2181 = vpack.c.b16 %v1916, %v1911
      %v2182 = vpack.c.b16 %v1917, %v1912
      %v2183 = vpack.c.b16 %v1918, %v1913
      %v2184 = vpack.c.b16 %v1924, %v1919
      %v2185 = vpack.c.b16 %v1925, %v1920
      %v2186 = vpack.c.b16 %v1926, %v1921
      %v2187 = vpack.c.b16 %v1927, %v1922
      %v2188 = vpack.c.b16 %v1928, %v1923
      %v2189 = vpack.c.b16 %v1934, %v1929
      %v2190 = vpack.c.b16 %v1935, %v1930
      %v2191 = vpack.c.b16 %v1936, %v1931
      %v2192 = vpack.c.b16 %v1937, %v1932
      %v2193 = vpack.c.b16 %v1938, %v1933
      %v2194 = vpack.c.b16 %v1944, %v1939
      %v2195 = vpack.c.b16 %v1945, %v1940
      %v2196 = vpack.c.b16 %v1946, %v1941
      %v2197 = vpack.c.b16 %v1947, %v1942
      %v2198 = vpack.c.b16 %v1948, %v1943
      %v2199 = vpack.c.b16 %v1954, %v1949
      %v2200 = vpack.c.b16 %v1955, %v1950
      %v2201 = vpack.c.b16 %v1956, %v1951
      %v2202 = vpack.c.b16 %v1957, %v1952
      %v2203 = vpack.c.b16 %v1958, %v1953
      %v2204 = vpack.c.b16 %v1964, %v1959
      %v2205 = vpack.c.b16 %v1965, %v1960
      %v2206 = vpack.c.b16 %v1966, %v1961
      %v2207 = vpack.c.b16 %v1967, %v1962
      %v2208 = vpack.c.b16 %v1968, %v1963
      %v2473 = vunpack.c.l.b16 %v553
      %v2474 = vunpack.c.h.b16 %v553
      %v2475 = vunpack.c.l.b16 %v554
      %v2476 = vunpack.c.h.b16 %v554
      %v2477 = vunpack.c.l.b16 %v555
      %v2478 = vunpack.c.h.b16 %v555
      %v2479 = vunpack.c.l.b16 %v556
      %v2480 = vunpack.c.h.b16 %v556
      %v2481 = vunpack.c.l.b16 %v557
      %v2482 = vunpack.c.h.b16 %v557
      %v2483 = vunpack.c.l.b16 %v558
      %v2484 = vunpack.c.h.b16 %v558
      %v2485 = vunpack.c.l.b16 %v559
      %v2486 = vunpack.c.h.b16 %v559
      %v2487 = vunpack.c.l.b16 %v560
      %v2488 = vunpack.c.h.b16 %v560
      %v2489 = vunpack.c.l.b16 %v561
      %v2490 = vunpack.c.h.b16 %v561
      %v2491 = vunpack.c.l.b16 %v562
      %v2492 = vunpack.c.h.b16 %v562
      %v2493 = vunpack.c.l.b16 %v563
      %v2494 = vunpack.c.h.b16 %v563
      %v2495 = vunpack.c.l.b16 %v564
      %v2496 = vunpack.c.h.b16 %v564
      %v2497 = vunpack.c.l.b16 %v565
      %v2498 = vunpack.c.h.b16 %v565
      %v2499 = vunpack.c.l.b16 %v566
      %v2500 = vunpack.c.h.b16 %v566
      %v2501 = vunpack.c.l.b16 %v567
      %v2502 = vunpack.c.h.b16 %v567
      %v2503 = vunpack.c.l.b16 %v568
      %v2504 = vunpack.c.h.b16 %v568
      %v2505 = vunpack.c.l.b16 %v569
      %v2506 = vunpack.c.h.b16 %v569
      %v2507 = vunpack.c.l.b16 %v570
      %v2508 = vunpack.c.h.b16 %v570
      %v2509 = vunpack.c.l.b16 %v571
      %v2510 = vunpack.c.h.b16 %v571
      %v2511 = vunpack.c.l.b16 %v572
      %v2512 = vunpack.c.h.b16 %v572
      %v2513 = vunpack.c.l.b16 %v573
      %v2514 = vunpack.c.h.b16 %v573
      %v2515 = vunpack.c.l.b16 %v574
      %v2516 = vunpack.c.h.b16 %v574
      %v2517 = vunpack.c.l.b16 %v575
      %v2518 = vunpack.c.h.b16 %v575
      %v2519 = vunpack.c.l.b16 %v576
      %v2520 = vunpack.c.h.b16 %v576
      %v2521 = vunpack.c.l.b16 %v577
      %v2522 = vunpack.c.h.b16 %v577
      %v2523 = vunpack.c.l.b16 %v578
      %v2524 = vunpack.c.h.b16 %v578
      %v2525 = vunpack.c.l.b16 %v579
      %v2526 = vunpack.c.h.b16 %v579
      %v2527 = vunpack.c.l.b16 %v580
      %v2528 = vunpack.c.h.b16 %v580
      %v2529 = vunpack.c.l.b16 %v581
      %v2530 = vunpack.c.h.b16 %v581
      %v2531 = vunpack.c.l.b16 %v582
      %v2532 = vunpack.c.h.b16 %v582
      %v2533 = vunpack.c.l.b16 %v583
      %v2534 = vunpack.c.h.b16 %v583
      %v2535 = vunpack.c.l.b16 %v584
      %v2536 = vunpack.c.h.b16 %v584
      %v2537 = vunpack.c.l.b16 %v585
      %v2538 = vunpack.c.h.b16 %v585
      %v2539 = vunpack.c.l.b16 %v586
      %v2540 = vunpack.c.h.b16 %v586
      %v2541 = vunpack.c.l.b16 %v587
      %v2542 = vunpack.c.h.b16 %v587
      %v2543 = vunpack.c.l.b16 %v588
      %v2544 = vunpack.c.h.b16 %v588
      %v2545 = vunpack.c.l.b16 %v589
      %v2546 = vunpack.c.h.b16 %v589
      %v2547 = vunpack.c.l.b16 %v590
      %v2548 = vunpack.c.h.b16 %v590
      %v2549 = vunpack.c.l.b16 %v591
      %v2550 = vunpack.c.h.b16 %v591
      %v2551 = vunpack.c.l.b16 %v592
      %v2552 = vunpack.c.h.b16 %v592
      %v2553 = vunpack.c.l.b16 %v593
      %v2554 = vunpack.c.h.b16 %v593
      %v2555 = vunpack.c.l.b16 %v594
      %v2556 = vunpack.c.h.b16 %v594
      %v2557 = vunpack.c.l.b16 %v595
      %v2558 = vunpack.c.h.b16 %v595
      %v2559 = vunpack.c.l.b16 %v596
      %v2560 = vunpack.c.h.b16 %v596
      %v2561 = vunpack.c.l.b16 %v597
      %v2562 = vunpack.c.h.b16 %v597
      %v2563 = vunpack.c.l.b16 %v598
      %v2564 = vunpack.c.h.b16 %v598
      %v2565 = vunpack.c.l.b16 %v599
      %v2566 = vunpack.c.h.b16 %v599
      %v2567 = vunpack.c.l.b16 %v600
      %v2568 = vunpack.c.h.b16 %v600
      %v2569 = vunpack.c.l.b16 %v601
      %v2570 = vunpack.c.h.b16 %v601
      %v2571 = vunpack.c.l.b16 %v602
      %v2572 = vunpack.c.h.b16 %v602
      %v2573 = vunpack.c.l.b16 %v603
      %v2574 = vunpack.c.h.b16 %v603
      %v2575 = vunpack.c.l.b16 %v604
      %v2576 = vunpack.c.h.b16 %v604
      %v2577 = vunpack.c.l.b16 %v605
      %v2578 = vunpack.c.h.b16 %v605
      %v2579 = vunpack.c.l.b16 %v606
      %v2580 = vunpack.c.h.b16 %v606
      %v2581 = vunpack.c.l.b16 %v607
      %v2582 = vunpack.c.h.b16 %v607
      %v2583 = vunpack.c.l.b16 %v608
      %v2584 = vunpack.c.h.b16 %v608
      %v2585 = vunpack.c.l.b16 %v609
      %v2586 = vunpack.c.h.b16 %v609
      %v2587 = vunpack.c.l.b16 %v610
      %v2588 = vunpack.c.h.b16 %v610
      %v2589 = vunpack.c.l.b16 %v611
      %v2590 = vunpack.c.h.b16 %v611
      %v2591 = vunpack.c.l.b16 %v612
      %v2592 = vunpack.c.h.b16 %v612
      %v2593 = vunpack.c.l.b16 %v613
      %v2594 = vunpack.c.h.b16 %v613
      %v2595 = vunpack.c.l.b16 %v614
      %v2596 = vunpack.c.h.b16 %v614
      %v2597 = vunpack.c.l.b16 %v615
      %v2598 = vunpack.c.h.b16 %v615
      %v2599 = vunpack.c.l.b16 %v616
      %v2600 = vunpack.c.h.b16 %v616
      %v2601 = vunpack.c.l.b16 %v617
      %v2602 = vunpack.c.h.b16 %v617
      %v2603 = vunpack.c.l.b16 %v618
      %v2604 = vunpack.c.h.b16 %v618
      %v2605 = vunpack.c.l.b16 %v619
      %v2606 = vunpack.c.h.b16 %v619
      %v2607 = vunpack.c.l.b16 %v620
      %v2608 = vunpack.c.h.b16 %v620
      %v2609 = vunpack.c.l.b16 %v621
      %v2610 = vunpack.c.h.b16 %v621
      %v2611 = vunpack.c.l.b16 %v622
      %v2612 = vunpack.c.h.b16 %v622
      %v2613 = vunpack.c.l.b16 %v623
      %v2614 = vunpack.c.h.b16 %v623
      %v2615 = vunpack.c.l.b16 %v624
      %v2616 = vunpack.c.h.b16 %v624
      %v2617 = vpack.c.b16 %v2475, %v2473
      %v2618 = vpack.c.b16 %v2476, %v2474
      %v2619 = vpack.c.b16 %v2479, %v2477
      %v2620 = vpack.c.b16 %v2480, %v2478
      %v2621 = vpack.c.b16 %v2483, %v2481
      %v2622 = vpack.c.b16 %v2484, %v2482
      %v2623 = vpack.c.b16 %v2487, %v2485
      %v2624 = vpack.c.b16 %v2488, %v2486
      %v2625 = vpack.c.b16 %v2491, %v2489
      %v2626 = vpack.c.b16 %v2492, %v2490
      %v2627 = vpack.c.b16 %v2495, %v2493
      %v2628 = vpack.c.b16 %v2496, %v2494
      %v2629 = vpack.c.b16 %v2499, %v2497
      %v2630 = vpack.c.b16 %v2500, %v2498
      %v2631 = vpack.c.b16 %v2503, %v2501
      %v2632 = vpack.c.b16 %v2504, %v2502
      %v2633 = vpack.c.b16 %v2507, %v2505
      %v2634 = vpack.c.b16 %v2508, %v2506
      %v2635 = vpack.c.b16 %v2511, %v2509
      %v2636 = vpack.c.b16 %v2512, %v2510
      %v2637 = vpack.c.b16 %v2515, %v2513
      %v2638 = vpack.c.b16 %v2516, %v2514
      %v2639 = vpack.c.b16 %v2519, %v2517
      %v2640 = vpack.c.b16 %v2520, %v2518
      %v2641 = vpack.c.b16 %v2523, %v2521
      %v2642 = vpack.c.b16 %v2524, %v2522
      %v2643 = vpack.c.b16 %v2527, %v2525
      %v2644 = vpack.c.b16 %v2528, %v2526
      %v2645 = vpack.c.b16 %v2531, %v2529
      %v2646 = vpack.c.b16 %v2532, %v2530
      %v2647 = vpack.c.b16 %v2535, %v2533
      %v2648 = vpack.c.b16 %v2536, %v2534
      %v2649 = vpack.c.b16 %v2539, %v2537
      %v2650 = vpack.c.b16 %v2540, %v2538
      %v2651 = vpack.c.b16 %v2543, %v2541
      %v2652 = vpack.c.b16 %v2544, %v2542
      %v2653 = vpack.c.b16 %v2547, %v2545
      %v2654 = vpack.c.b16 %v2548, %v2546
      %v2655 = vpack.c.b16 %v2551, %v2549
      %v2656 = vpack.c.b16 %v2552, %v2550
      %v2657 = vpack.c.b16 %v2555, %v2553
      %v2658 = vpack.c.b16 %v2556, %v2554
      %v2659 = vpack.c.b16 %v2559, %v2557
      %v2660 = vpack.c.b16 %v2560, %v2558
      %v2661 = vpack.c.b16 %v2563, %v2561
      %v2662 = vpack.c.b16 %v2564, %v2562
      %v2663 = vpack.c.b16 %v2567, %v2565
      %v2664 = vpack.c.b16 %v2568, %v2566
      %v2665 = vpack.c.b16 %v2571, %v2569
      %v2666 = vpack.c.b16 %v2572, %v2570
      %v2667 = vpack.c.b16 %v2575, %v2573
      %v2668 = vpack.c.b16 %v2576, %v2574
      %v2669 = vpack.c.b16 %v2579, %v2577
      %v2670 = vpack.c.b16 %v2580, %v2578
      %v2671 = vpack.c.b16 %v2583, %v2581
      %v2672 = vpack.c.b16 %v2584, %v2582
      %v2673 = vpack.c.b16 %v2587, %v2585
      %v2674 = vpack.c.b16 %v2588, %v2586
      %v2675 = vpack.c.b16 %v2591, %v2589
      %v2676 = vpack.c.b16 %v2592, %v2590
      %v2677 = vpack.c.b16 %v2595, %v2593
      %v2678 = vpack.c.b16 %v2596, %v2594
      %v2679 = vpack.c.b16 %v2599, %v2597
      %v2680 = vpack.c.b16 %v2600, %v2598
      %v2681 = vpack.c.b16 %v2603, %v2601
      %v2682 = vpack.c.b16 %v2604, %v2602
      %v2683 = vpack.c.b16 %v2607, %v2605
      %v2684 = vpack.c.b16 %v2608, %v2606
      %v2685 = vpack.c.b16 %v2611, %v2609
      %v2686 = vpack.c.b16 %v2612, %v2610
      %v2687 = vpack.c.b16 %v2615, %v2613
      %v2688 = vpack.c.b16 %v2616, %v2614
      %vm2761 = vcmask 523264
      %v2763 = vsel %vm2761, %v1973, 0
      %v2766 = vsel %vm2761, %v1978, 0
      %v2769 = vsel %vm2761, %v1983, 0
      %v2772 = vsel %vm2761, %v1988, 0
      %v2775 = vsel %vm2761, %v1993, 0
      %v2778 = vsel %vm2761, %v1998, 0
      %v2781 = vsel %vm2761, %v2003, 0
      %v2784 = vsel %vm2761, %v2008, 0
      %v2787 = vsel %vm2761, %v2013, 0
      %v2790 = vsel %vm2761, %v2018, 0
      %v2793 = vsel %vm2761, %v2023, 0
      %v2796 = vsel %vm2761, %v2028, 0
      %v2799 = vsel %vm2761, %v2033, 0
      %v2802 = vsel %vm2761, %v2038, 0
      %v2805 = vsel %vm2761, %v2043, 0
      %v2808 = vsel %vm2761, %v2048, 0
      %v2811 = vsel %vm2761, %v2053, 0
      %v2814 = vsel %vm2761, %v2058, 0
      %v2817 = vsel %vm2761, %v2063, 0
      %v2820 = vsel %vm2761, %v2068, 0
      %v2823 = vsel %vm2761, %v2073, 0
      %v2826 = vsel %vm2761, %v2078, 0
      %v2829 = vsel %vm2761, %v2083, 0
      %v2832 = vsel %vm2761, %v2088, 0
      %v2835 = vsel %vm2761, %v2093, 0
      %v2838 = vsel %vm2761, %v2098, 0
      %v2841 = vsel %vm2761, %v2103, 0
      %v2844 = vsel %vm2761, %v2108, 0
      %v2847 = vsel %vm2761, %v2113, 0
      %v2850 = vsel %vm2761, %v2118, 0
      %v2853 = vsel %vm2761, %v2123, 0
      %v2856 = vsel %vm2761, %v2128, 0
      %v2859 = vsel %vm2761, %v2133, 0
      %v2862 = vsel %vm2761, %v2138, 0
      %v2865 = vsel %vm2761, %v2143, 0
      %v2868 = vsel %vm2761, %v2148, 0
      %v2871 = vsel %vm2761, %v2153, 0
      %v2874 = vsel %vm2761, %v2158, 0
      %v2877 = vsel %vm2761, %v2163, 0
      %v2880 = vsel %vm2761, %v2168, 0
      %v2883 = vsel %vm2761, %v2173, 0
      %v2886 = vsel %vm2761, %v2178, 0
      %v2889 = vsel %vm2761, %v2183, 0
      %v2892 = vsel %vm2761, %v2188, 0
      %v2895 = vsel %vm2761, %v2193, 0
      %v2898 = vsel %vm2761, %v2198, 0
      %v2901 = vsel %vm2761, %v2203, 0
      %v2904 = vsel %vm2761, %v2208, 0
      %2906 = vmatprep.subr.bf16.mxu0 %v2618
      %2907 = vmatpush1.bf16.msra.mxu0 %v2617
      %2908 = vmatprep.subr.bf16.mxu0 %v2620
      %2909 = vmatpush1.bf16.msra.mxu0 %v2619
      %2910 = vmatprep.subr.bf16.mxu0 %v2622
      %2911 = vmatpush1.bf16.msra.mxu0 %v2621
      %2912 = vmatprep.subr.bf16.mxu0 %v2624
      %2913 = vmatpush1.bf16.msra.mxu0 %v2623
      %2914 = vmatprep.subr.bf16.mxu0 %v2626
      %2915 = vmatpush1.bf16.msra.mxu0 %v2625
      %2916 = vmatprep.subr.bf16.mxu0 %v2628
      %2917 = vmatpush1.bf16.msra.mxu0 %v2627
      %2918 = vmatprep.subr.bf16.mxu0 %v2630
      %2919 = vmatpush1.bf16.msra.mxu0 %v2629
      %2920 = vmatprep.subr.bf16.mxu0 %v2632
      %2921 = vmatpush1.bf16.msra.mxu0 %v2631
      %2922 = vmatprep.subr.bf16.mxu0 %v2634
      %2923 = vmatpush1.bf16.msra.mxu0 %v2633
      %2924 = vmatprep.subr.bf16.mxu0 %v2636
      %2925 = vmatpush1.bf16.msra.mxu0 %v2635
      %2926 = vmatprep.subr.bf16.mxu0 %v2638
      %2927 = vmatpush1.bf16.msra.mxu0 %v2637
      %2928 = vmatprep.subr.bf16.mxu0 %v2640
      %2929 = vmatpush1.bf16.msra.mxu0 %v2639
      %2930 = vmatprep.subr.bf16.mxu0 %v2642
      %2931 = vmatpush1.bf16.msra.mxu0 %v2641
      %2932 = vmatprep.subr.bf16.mxu0 %v2644
      %2933 = vmatpush1.bf16.msra.mxu0 %v2643
      %2934 = vmatprep.subr.bf16.mxu0 %v2646
      %2935 = vmatpush1.bf16.msra.mxu0 %v2645
      %2936 = vmatprep.subr.bf16.mxu0 %v2648
      %2937 = vmatpush1.bf16.msra.mxu0 %v2647
      %2938 = vmatprep.mubr.bf16.mxu0 %v1970
      %2939 = vmatmul.mubr.bf16.gmra.mrb[0].mxu0 %v1969
      %v2940 = vpop.f32.mrb[0].mxu0
      %v2941 = vadd.f32 %v724, %v2940
      %v2942 = vpop.f32.mrb[0].mxu0
      %v2943 = vadd.f32 %v724, %v2942
      %v2944 = vpop.f32.mrb[0].mxu0
      %v2945 = vadd.f32 %v729, %v2944
      %v2946 = vpop.f32.mrb[0].mxu0
      %v2947 = vadd.f32 %v729, %v2946
      %2948 = vmatprep.mubr.bf16.mxu0 %v1975
      %2949 = vmatmul.mubr.bf16.gmra.mrb[0].mxu0 %v1974
      %v2950 = vpop.f32.mrb[0].mxu0
      %v2951 = vadd.f32 %v734, %v2950
      %v2952 = vpop.f32.mrb[0].mxu0
      %v2953 = vadd.f32 %v734, %v2952
      %v2954 = vpop.f32.mrb[0].mxu0
      %v2955 = vadd.f32 %v739, %v2954
      %v2956 = vpop.f32.mrb[0].mxu0
      %v2957 = vadd.f32 %v739, %v2956
      %2958 = vmatprep.mubr.bf16.mxu0 %v1980
      %2959 = vmatmul.mubr.bf16.gmra.mrb[0].mxu0 %v1979
      %v2960 = vpop.f32.mrb[0].mxu0
      %v2961 = vadd.f32 %v744, %v2960
      %v2962 = vpop.f32.mrb[0].mxu0
      %v2963 = vadd.f32 %v744, %v2962
      %v2964 = vpop.f32.mrb[0].mxu0
      %v2965 = vadd.f32 %v749, %v2964
      %v2966 = vpop.f32.mrb[0].mxu0
      %v2967 = vadd.f32 %v749, %v2966
      %2968 = vmatprep.mubr.bf16.mxu0 %v1985
      %2969 = vmatmul.mubr.bf16.gmra.mrb[0].mxu0 %v1984
      %v2970 = vpop.f32.mrb[0].mxu0
      %v2971 = vadd.f32 %v754, %v2970
      %v2972 = vpop.f32.mrb[0].mxu0
      %v2973 = vadd.f32 %v754, %v2972
      %v2974 = vpop.f32.mrb[0].mxu0
      %v2975 = vadd.f32 %v759, %v2974
      %v2976 = vpop.f32.mrb[0].mxu0
      %v2977 = vadd.f32 %v759, %v2976
      %2978 = vmatprep.mubr.bf16.mxu0 %v1990
      %2979 = vmatmul.mubr.bf16.gmra.mrb[0].mxu0 %v1989
      %v2980 = vpop.f32.mrb[0].mxu0
      %v2981 = vadd.f32 %v764, %v2980
      %v2982 = vpop.f32.mrb[0].mxu0
      %v2983 = vadd.f32 %v764, %v2982
      %v2984 = vpop.f32.mrb[0].mxu0
      %v2985 = vadd.f32 %v769, %v2984
      %v2986 = vpop.f32.mrb[0].mxu0
      %v2987 = vadd.f32 %v769, %v2986
      %2988 = vmatprep.mubr.bf16.mxu0 %v1995
      %2989 = vmatmul.mubr.bf16.gmra.mrb[0].mxu0 %v1994
      %v2990 = vpop.f32.mrb[0].mxu0
      %v2991 = vadd.f32 %v774, %v2990
      %v2992 = vpop.f32.mrb[0].mxu0
      %v2993 = vadd.f32 %v774, %v2992
      %v2994 = vpop.f32.mrb[0].mxu0
      %v2995 = vadd.f32 %v779, %v2994
      %v2996 = vpop.f32.mrb[0].mxu0
      %v2997 = vadd.f32 %v779, %v2996
      %2998 = vmatprep.mubr.bf16.mxu0 %v2000
      %2999 = vmatmul.mubr.bf16.gmra.mrb[0].mxu0 %v1999
      %v3000 = vpop.f32.mrb[0].mxu0
      %v3001 = vadd.f32 %v784, %v3000
      %v3002 = vpop.f32.mrb[0].mxu0
      %v3003 = vadd.f32 %v784, %v3002
      %v3004 = vpop.f32.mrb[0].mxu0
      %v3005 = vadd.f32 %v789, %v3004
      %v3006 = vpop.f32.mrb[0].mxu0
      %v3007 = vadd.f32 %v789, %v3006
      %3008 = vmatprep.mubr.bf16.mxu0 %v2005
      %3009 = vmatmul.mubr.bf16.gmra.mrb[0].mxu0 %v2004
      %v3010 = vpop.f32.mrb[0].mxu0
      %v3011 = vadd.f32 %v794, %v3010
      %v3012 = vpop.f32.mrb[0].mxu0
      %v3013 = vadd.f32 %v794, %v3012
      %v3014 = vpop.f32.mrb[0].mxu0
      %v3015 = vadd.f32 %v799, %v3014
      %v3016 = vpop.f32.mrb[0].mxu0
      %v3017 = vadd.f32 %v799, %v3016
      %3018 = vmatprep.mubr.bf16.mxu0 %v2010
      %3019 = vmatmul.mubr.bf16.gmra.mrb[0].mxu0 %v2009
      %v3020 = vpop.f32.mrb[0].mxu0
      %v3021 = vadd.f32 %v804, %v3020
      %v3022 = vpop.f32.mrb[0].mxu0
      %v3023 = vadd.f32 %v804, %v3022
      %v3024 = vpop.f32.mrb[0].mxu0
      %v3025 = vadd.f32 %v809, %v3024
      %v3026 = vpop.f32.mrb[0].mxu0
      %v3027 = vadd.f32 %v809, %v3026
      %3028 = vmatprep.mubr.bf16.mxu0 %v2015
      %3029 = vmatmul.mubr.bf16.gmra.mrb[0].mxu0 %v2014
      %v3030 = vpop.f32.mrb[0].mxu0
      %v3031 = vadd.f32 %v814, %v3030
      %v3032 = vpop.f32.mrb[0].mxu0
      %v3033 = vadd.f32 %v814, %v3032
      %v3034 = vpop.f32.mrb[0].mxu0
      %v3035 = vadd.f32 %v819, %v3034
      %v3036 = vpop.f32.mrb[0].mxu0
      %v3037 = vadd.f32 %v819, %v3036
      %3038 = vmatprep.mubr.bf16.mxu0 %v2020
      %3039 = vmatmul.mubr.bf16.gmra.mrb[0].mxu0 %v2019
      %v3040 = vpop.f32.mrb[0].mxu0
      %v3041 = vadd.f32 %v824, %v3040
      %v3042 = vpop.f32.mrb[0].mxu0
      %v3043 = vadd.f32 %v824, %v3042
      %v3044 = vpop.f32.mrb[0].mxu0
      %v3045 = vadd.f32 %v829, %v3044
      %v3046 = vpop.f32.mrb[0].mxu0
      %v3047 = vadd.f32 %v829, %v3046
      %3048 = vmatprep.mubr.bf16.mxu0 %v2025
      %3049 = vmatmul.mubr.bf16.gmra.mrb[0].mxu0 %v2024
      %v3050 = vpop.f32.mrb[0].mxu0
      %v3051 = vadd.f32 %v834, %v3050
      %v3052 = vpop.f32.mrb[0].mxu0
      %v3053 = vadd.f32 %v834, %v3052
      %v3054 = vpop.f32.mrb[0].mxu0
      %v3055 = vadd.f32 %v839, %v3054
      %v3056 = vpop.f32.mrb[0].mxu0
      %v3057 = vadd.f32 %v839, %v3056
      %3058 = vmatprep.mubr.bf16.mxu0 %v2030
      %3059 = vmatmul.mubr.bf16.gmra.mrb[0].mxu0 %v2029
      %v3060 = vpop.f32.mrb[0].mxu0
      %v3061 = vadd.f32 %v844, %v3060
      %v3062 = vpop.f32.mrb[0].mxu0
      %v3063 = vadd.f32 %v844, %v3062
      %v3064 = vpop.f32.mrb[0].mxu0
      %v3065 = vadd.f32 %v849, %v3064
      %v3066 = vpop.f32.mrb[0].mxu0
      %v3067 = vadd.f32 %v849, %v3066
      %3068 = vmatprep.mubr.bf16.mxu0 %v2035
      %3069 = vmatmul.mubr.bf16.gmra.mrb[0].mxu0 %v2034
      %v3070 = vpop.f32.mrb[0].mxu0
      %v3071 = vadd.f32 %v854, %v3070
      %v3072 = vpop.f32.mrb[0].mxu0
      %v3073 = vadd.f32 %v854, %v3072
      %v3074 = vpop.f32.mrb[0].mxu0
      %v3075 = vadd.f32 %v859, %v3074
      %v3076 = vpop.f32.mrb[0].mxu0
      %v3077 = vadd.f32 %v859, %v3076
      %3078 = vmatprep.mubr.bf16.mxu0 %v2040
      %3079 = vmatmul.mubr.bf16.gmra.mrb[0].mxu0 %v2039
      %v3080 = vpop.f32.mrb[0].mxu0
      %v3081 = vadd.f32 %v864, %v3080
      %v3082 = vpop.f32.mrb[0].mxu0
      %v3083 = vadd.f32 %v864, %v3082
      %v3084 = vpop.f32.mrb[0].mxu0
      %v3085 = vadd.f32 %v869, %v3084
      %v3086 = vpop.f32.mrb[0].mxu0
      %v3087 = vadd.f32 %v869, %v3086
      %3088 = vmatprep.mubr.bf16.mxu0 %v2045
      %3089 = vmatmul.mubr.bf16.gmra.mrb[0].mxu0 %v2044
      %v3090 = vpop.f32.mrb[0].mxu0
      %v3091 = vadd.f32 %v874, %v3090
      %v3092 = vpop.f32.mrb[0].mxu0
      %v3093 = vadd.f32 %v874, %v3092
      %v3094 = vpop.f32.mrb[0].mxu0
      %v3095 = vadd.f32 %v879, %v3094
      %v3096 = vpop.f32.mrb[0].mxu0
      %v3097 = vadd.f32 %v879, %v3096
      %3098 = vmatprep.mubr.bf16.mxu0 %v2050
      %3099 = vmatmul.mubr.bf16.gmra.mrb[0].mxu0 %v2049
      %v3100 = vpop.f32.mrb[0].mxu0
      %v3101 = vadd.f32 %v884, %v3100
      %v3102 = vpop.f32.mrb[0].mxu0
      %v3103 = vadd.f32 %v884, %v3102
      %v3104 = vpop.f32.mrb[0].mxu0
      %v3105 = vadd.f32 %v889, %v3104
      %v3106 = vpop.f32.mrb[0].mxu0
      %v3107 = vadd.f32 %v889, %v3106
      %3108 = vmatprep.mubr.bf16.mxu0 %v2055
      %3109 = vmatmul.mubr.bf16.gmra.mrb[0].mxu0 %v2054
      %v3110 = vpop.f32.mrb[0].mxu0
      %v3111 = vadd.f32 %v894, %v3110
      %v3112 = vpop.f32.mrb[0].mxu0
      %v3113 = vadd.f32 %v894, %v3112
      %v3114 = vpop.f32.mrb[0].mxu0
      %v3115 = vadd.f32 %v899, %v3114
      %v3116 = vpop.f32.mrb[0].mxu0
      %v3117 = vadd.f32 %v899, %v3116
      %3118 = vmatprep.mubr.bf16.mxu0 %v2060
      %3119 = vmatmul.mubr.bf16.gmra.mrb[0].mxu0 %v2059
      %v3120 = vpop.f32.mrb[0].mxu0
      %v3121 = vadd.f32 %v904, %v3120
      %v3122 = vpop.f32.mrb[0].mxu0
      %v3123 = vadd.f32 %v904, %v3122
      %v3124 = vpop.f32.mrb[0].mxu0
      %v3125 = vadd.f32 %v909, %v3124
      %v3126 = vpop.f32.mrb[0].mxu0
      %v3127 = vadd.f32 %v909, %v3126
      %3128 = vmatprep.mubr.bf16.mxu0 %v2065
      %3129 = vmatmul.mubr.bf16.gmra.mrb[0].mxu0 %v2064
      %v3130 = vpop.f32.mrb[0].mxu0
      %v3131 = vadd.f32 %v914, %v3130
      %v3132 = vpop.f32.mrb[0].mxu0
      %v3133 = vadd.f32 %v914, %v3132
      %v3134 = vpop.f32.mrb[0].mxu0
      %v3135 = vadd.f32 %v919, %v3134
      %v3136 = vpop.f32.mrb[0].mxu0
      %v3137 = vadd.f32 %v919, %v3136
      %3138 = vmatprep.mubr.bf16.mxu0 %v2070
      %3139 = vmatmul.mubr.bf16.gmra.mrb[0].mxu0 %v2069
      %v3140 = vpop.f32.mrb[0].mxu0
      %v3141 = vadd.f32 %v924, %v3140
      %v3142 = vpop.f32.mrb[0].mxu0
      %v3143 = vadd.f32 %v924, %v3142
      %v3144 = vpop.f32.mrb[0].mxu0
      %v3145 = vadd.f32 %v929, %v3144
      %v3146 = vpop.f32.mrb[0].mxu0
      %v3147 = vadd.f32 %v929, %v3146
      %3148 = vmatprep.mubr.bf16.mxu0 %v2075
      %3149 = vmatmul.mubr.bf16.gmra.mrb[0].mxu0 %v2074
      %v3150 = vpop.f32.mrb[0].mxu0
      %v3151 = vadd.f32 %v934, %v3150
      %v3152 = vpop.f32.mrb[0].mxu0
      %v3153 = vadd.f32 %v934, %v3152
      %v3154 = vpop.f32.mrb[0].mxu0
      %v3155 = vadd.f32 %v939, %v3154
      %v3156 = vpop.f32.mrb[0].mxu0
      %v3157 = vadd.f32 %v939, %v3156
      %3158 = vmatprep.mubr.bf16.mxu0 %v2080
      %3159 = vmatmul.mubr.bf16.gmra.mrb[0].mxu0 %v2079
      %v3160 = vpop.f32.mrb[0].mxu0
      %v3161 = vadd.f32 %v944, %v3160
      %v3162 = vpop.f32.mrb[0].mxu0
      %v3163 = vadd.f32 %v944, %v3162
      %v3164 = vpop.f32.mrb[0].mxu0
      %v3165 = vadd.f32 %v949, %v3164
      %v3166 = vpop.f32.mrb[0].mxu0
      %v3167 = vadd.f32 %v949, %v3166
      %3168 = vmatprep.mubr.bf16.mxu0 %v2085
      %3169 = vmatmul.mubr.bf16.gmra.mrb[0].mxu0 %v2084
      %v3170 = vpop.f32.mrb[0].mxu0
      %v3171 = vadd.f32 %v954, %v3170
      %v3172 = vpop.f32.mrb[0].mxu0
      %v3173 = vadd.f32 %v954, %v3172
      %v3174 = vpop.f32.mrb[0].mxu0
      %v3175 = vadd.f32 %v959, %v3174
      %v3176 = vpop.f32.mrb[0].mxu0
      %v3177 = vadd.f32 %v959, %v3176
      %3178 = vmatprep.mubr.bf16.mxu0 %v2090
      %3179 = vmatmul.mubr.bf16.gmra.mrb[0].mxu0 %v2089
      %v3180 = vpop.f32.mrb[0].mxu0
      %v3181 = vadd.f32 %v964, %v3180
      %v3182 = vpop.f32.mrb[0].mxu0
      %v3183 = vadd.f32 %v964, %v3182
      %v3184 = vpop.f32.mrb[0].mxu0
      %v3185 = vadd.f32 %v969, %v3184
      %v3186 = vpop.f32.mrb[0].mxu0
      %v3187 = vadd.f32 %v969, %v3186
      %3188 = vmatprep.mubr.bf16.mxu0 %v2095
      %3189 = vmatmul.mubr.bf16.gmra.mrb[0].mxu0 %v2094
      %v3190 = vpop.f32.mrb[0].mxu0
      %v3191 = vadd.f32 %v974, %v3190
      %v3192 = vpop.f32.mrb[0].mxu0
      %v3193 = vadd.f32 %v974, %v3192
      %v3194 = vpop.f32.mrb[0].mxu0
      %v3195 = vadd.f32 %v979, %v3194
      %v3196 = vpop.f32.mrb[0].mxu0
      %v3197 = vadd.f32 %v979, %v3196
      %3198 = vmatprep.mubr.bf16.mxu0 %v2100
      %3199 = vmatmul.mubr.bf16.gmra.mrb[0].mxu0 %v2099
      %v3200 = vpop.f32.mrb[0].mxu0
      %v3201 = vadd.f32 %v984, %v3200
      %v3202 = vpop.f32.mrb[0].mxu0
      %v3203 = vadd.f32 %v984, %v3202
      %v3204 = vpop.f32.mrb[0].mxu0
      %v3205 = vadd.f32 %v989, %v3204
      %v3206 = vpop.f32.mrb[0].mxu0
      %v3207 = vadd.f32 %v989, %v3206
      %3208 = vmatprep.mubr.bf16.mxu0 %v2105
      %3209 = vmatmul.mubr.bf16.gmra.mrb[0].mxu0 %v2104
      %v3210 = vpop.f32.mrb[0].mxu0
      %v3211 = vadd.f32 %v994, %v3210
      %v3212 = vpop.f32.mrb[0].mxu0
      %v3213 = vadd.f32 %v994, %v3212
      %v3214 = vpop.f32.mrb[0].mxu0
      %v3215 = vadd.f32 %v999, %v3214
      %v3216 = vpop.f32.mrb[0].mxu0
      %v3217 = vadd.f32 %v999, %v3216
      %3218 = vmatprep.mubr.bf16.mxu0 %v2110
      %3219 = vmatmul.mubr.bf16.gmra.mrb[0].mxu0 %v2109
      %v3220 = vpop.f32.mrb[0].mxu0
      %v3221 = vadd.f32 %v1004, %v3220
      %v3222 = vpop.f32.mrb[0].mxu0
      %v3223 = vadd.f32 %v1004, %v3222
      %v3224 = vpop.f32.mrb[0].mxu0
      %v3225 = vadd.f32 %v1009, %v3224
      %v3226 = vpop.f32.mrb[0].mxu0
      %v3227 = vadd.f32 %v1009, %v3226
      %3228 = vmatprep.mubr.bf16.mxu0 %v2115
      %3229 = vmatmul.mubr.bf16.gmra.mrb[0].mxu0 %v2114
      %v3230 = vpop.f32.mrb[0].mxu0
      %v3231 = vadd.f32 %v1014, %v3230
      %v3232 = vpop.f32.mrb[0].mxu0
      %v3233 = vadd.f32 %v1014, %v3232
      %v3234 = vpop.f32.mrb[0].mxu0
      %v3235 = vadd.f32 %v1019, %v3234
      %v3236 = vpop.f32.mrb[0].mxu0
      %v3237 = vadd.f32 %v1019, %v3236
      %3238 = vmatprep.mubr.bf16.mxu0 %v2120
      %3239 = vmatmul.mubr.bf16.gmra.mrb[0].mxu0 %v2119
      %v3240 = vpop.f32.mrb[0].mxu0
      %v3241 = vadd.f32 %v1024, %v3240
      %v3242 = vpop.f32.mrb[0].mxu0
      %v3243 = vadd.f32 %v1024, %v3242
      %v3244 = vpop.f32.mrb[0].mxu0
      %v3245 = vadd.f32 %v1029, %v3244
      %v3246 = vpop.f32.mrb[0].mxu0
      %v3247 = vadd.f32 %v1029, %v3246
      %3248 = vmatprep.mubr.bf16.mxu0 %v2125
      %3249 = vmatmul.mubr.bf16.gmra.mrb[0].mxu0 %v2124
      %v3250 = vpop.f32.mrb[0].mxu0
      %v3251 = vadd.f32 %v1034, %v3250
      %v3252 = vpop.f32.mrb[0].mxu0
      %v3253 = vadd.f32 %v1034, %v3252
      %v3254 = vpop.f32.mrb[0].mxu0
      %v3255 = vadd.f32 %v1039, %v3254
      %v3256 = vpop.f32.mrb[0].mxu0
      %v3257 = vadd.f32 %v1039, %v3256
      %3258 = vmatprep.mubr.bf16.mxu0 %v2130
      %3259 = vmatmul.mubr.bf16.gmra.mrb[0].mxu0 %v2129
      %v3260 = vpop.f32.mrb[0].mxu0
      %v3261 = vadd.f32 %v1044, %v3260
      %v3262 = vpop.f32.mrb[0].mxu0
      %v3263 = vadd.f32 %v1044, %v3262
      %v3264 = vpop.f32.mrb[0].mxu0
      %v3265 = vadd.f32 %v1049, %v3264
      %v3266 = vpop.f32.mrb[0].mxu0
      %v3267 = vadd.f32 %v1049, %v3266
      %3268 = vmatprep.mubr.bf16.mxu0 %v2135
      %3269 = vmatmul.mubr.bf16.gmra.mrb[0].mxu0 %v2134
      %v3270 = vpop.f32.mrb[0].mxu0
      %v3271 = vadd.f32 %v1054, %v3270
      %v3272 = vpop.f32.mrb[0].mxu0
      %v3273 = vadd.f32 %v1054, %v3272
      %v3274 = vpop.f32.mrb[0].mxu0
      %v3275 = vadd.f32 %v1059, %v3274
      %v3276 = vpop.f32.mrb[0].mxu0
      %v3277 = vadd.f32 %v1059, %v3276
      %3278 = vmatprep.mubr.bf16.mxu0 %v2140
      %3279 = vmatmul.mubr.bf16.gmra.mrb[0].mxu0 %v2139
      %v3280 = vpop.f32.mrb[0].mxu0
      %v3281 = vadd.f32 %v1064, %v3280
      %v3282 = vpop.f32.mrb[0].mxu0
      %v3283 = vadd.f32 %v1064, %v3282
      %v3284 = vpop.f32.mrb[0].mxu0
      %v3285 = vadd.f32 %v1069, %v3284
      %v3286 = vpop.f32.mrb[0].mxu0
      %v3287 = vadd.f32 %v1069, %v3286
      %3288 = vmatprep.mubr.bf16.mxu0 %v2145
      %3289 = vmatmul.mubr.bf16.gmra.mrb[0].mxu0 %v2144
      %v3290 = vpop.f32.mrb[0].mxu0
      %v3291 = vadd.f32 %v1074, %v3290
      %v3292 = vpop.f32.mrb[0].mxu0
      %v3293 = vadd.f32 %v1074, %v3292
      %v3294 = vpop.f32.mrb[0].mxu0
      %v3295 = vadd.f32 %v1079, %v3294
      %v3296 = vpop.f32.mrb[0].mxu0
      %v3297 = vadd.f32 %v1079, %v3296
      %3298 = vmatprep.mubr.bf16.mxu0 %v2150
      %3299 = vmatmul.mubr.bf16.gmra.mrb[0].mxu0 %v2149
      %v3300 = vpop.f32.mrb[0].mxu0
      %v3301 = vadd.f32 %v1084, %v3300
      %v3302 = vpop.f32.mrb[0].mxu0
      %v3303 = vadd.f32 %v1084, %v3302
      %v3304 = vpop.f32.mrb[0].mxu0
      %v3305 = vadd.f32 %v1089, %v3304
      %v3306 = vpop.f32.mrb[0].mxu0
      %v3307 = vadd.f32 %v1089, %v3306
      %3308 = vmatprep.mubr.bf16.mxu0 %v2155
      %3309 = vmatmul.mubr.bf16.gmra.mrb[0].mxu0 %v2154
      %v3310 = vpop.f32.mrb[0].mxu0
      %v3311 = vadd.f32 %v1094, %v3310
      %v3312 = vpop.f32.mrb[0].mxu0
      %v3313 = vadd.f32 %v1094, %v3312
      %v3314 = vpop.f32.mrb[0].mxu0
      %v3315 = vadd.f32 %v1099, %v3314
      %v3316 = vpop.f32.mrb[0].mxu0
      %v3317 = vadd.f32 %v1099, %v3316
      %3318 = vmatprep.mubr.bf16.mxu0 %v2160
      %3319 = vmatmul.mubr.bf16.gmra.mrb[0].mxu0 %v2159
      %v3320 = vpop.f32.mrb[0].mxu0
      %v3321 = vadd.f32 %v1104, %v3320
      %v3322 = vpop.f32.mrb[0].mxu0
      %v3323 = vadd.f32 %v1104, %v3322
      %v3324 = vpop.f32.mrb[0].mxu0
      %v3325 = vadd.f32 %v1109, %v3324
      %v3326 = vpop.f32.mrb[0].mxu0
      %v3327 = vadd.f32 %v1109, %v3326
      %3328 = vmatprep.mubr.bf16.mxu0 %v2165
      %3329 = vmatmul.mubr.bf16.gmra.mrb[0].mxu0 %v2164
      %v3330 = vpop.f32.mrb[0].mxu0
      %v3331 = vadd.f32 %v1114, %v3330
      %v3332 = vpop.f32.mrb[0].mxu0
      %v3333 = vadd.f32 %v1114, %v3332
      %v3334 = vpop.f32.mrb[0].mxu0
      %v3335 = vadd.f32 %v1119, %v3334
      %v3336 = vpop.f32.mrb[0].mxu0
      %v3337 = vadd.f32 %v1119, %v3336
      %3338 = vmatprep.mubr.bf16.mxu0 %v2170
      %3339 = vmatmul.mubr.bf16.gmra.mrb[0].mxu0 %v2169
      %v3340 = vpop.f32.mrb[0].mxu0
      %v3341 = vadd.f32 %v1124, %v3340
      %v3342 = vpop.f32.mrb[0].mxu0
      %v3343 = vadd.f32 %v1124, %v3342
      %v3344 = vpop.f32.mrb[0].mxu0
      %v3345 = vadd.f32 %v1129, %v3344
      %v3346 = vpop.f32.mrb[0].mxu0
      %v3347 = vadd.f32 %v1129, %v3346
      %3348 = vmatprep.mubr.bf16.mxu0 %v2175
      %3349 = vmatmul.mubr.bf16.gmra.mrb[0].mxu0 %v2174
      %v3350 = vpop.f32.mrb[0].mxu0
      %v3351 = vadd.f32 %v1134, %v3350
      %v3352 = vpop.f32.mrb[0].mxu0
      %v3353 = vadd.f32 %v1134, %v3352
      %v3354 = vpop.f32.mrb[0].mxu0
      %v3355 = vadd.f32 %v1139, %v3354
      %v3356 = vpop.f32.mrb[0].mxu0
      %v3357 = vadd.f32 %v1139, %v3356
      %3358 = vmatprep.mubr.bf16.mxu0 %v2180
      %3359 = vmatmul.mubr.bf16.gmra.mrb[0].mxu0 %v2179
      %v3360 = vpop.f32.mrb[0].mxu0
      %v3361 = vadd.f32 %v1144, %v3360
      %v3362 = vpop.f32.mrb[0].mxu0
      %v3363 = vadd.f32 %v1144, %v3362
      %v3364 = vpop.f32.mrb[0].mxu0
      %v3365 = vadd.f32 %v1149, %v3364
      %v3366 = vpop.f32.mrb[0].mxu0
      %v3367 = vadd.f32 %v1149, %v3366
      %3368 = vmatprep.mubr.bf16.mxu0 %v2185
      %3369 = vmatmul.mubr.bf16.gmra.mrb[0].mxu0 %v2184
      %v3370 = vpop.f32.mrb[0].mxu0
      %v3371 = vadd.f32 %v1154, %v3370
      %v3372 = vpop.f32.mrb[0].mxu0
      %v3373 = vadd.f32 %v1154, %v3372
      %v3374 = vpop.f32.mrb[0].mxu0
      %v3375 = vadd.f32 %v1159, %v3374
      %v3376 = vpop.f32.mrb[0].mxu0
      %v3377 = vadd.f32 %v1159, %v3376
      %3378 = vmatprep.mubr.bf16.mxu0 %v2190
      %3379 = vmatmul.mubr.bf16.gmra.mrb[0].mxu0 %v2189
      %v3380 = vpop.f32.mrb[0].mxu0
      %v3381 = vadd.f32 %v1164, %v3380
      %v3382 = vpop.f32.mrb[0].mxu0
      %v3383 = vadd.f32 %v1164, %v3382
      %v3384 = vpop.f32.mrb[0].mxu0
      %v3385 = vadd.f32 %v1169, %v3384
      %v3386 = vpop.f32.mrb[0].mxu0
      %v3387 = vadd.f32 %v1169, %v3386
      %3388 = vmatprep.mubr.bf16.mxu0 %v2195
      %3389 = vmatmul.mubr.bf16.gmra.mrb[0].mxu0 %v2194
      %v3390 = vpop.f32.mrb[0].mxu0
      %v3391 = vadd.f32 %v1174, %v3390
      %v3392 = vpop.f32.mrb[0].mxu0
      %v3393 = vadd.f32 %v1174, %v3392
      %v3394 = vpop.f32.mrb[0].mxu0
      %v3395 = vadd.f32 %v1179, %v3394
      %v3396 = vpop.f32.mrb[0].mxu0
      %v3397 = vadd.f32 %v1179, %v3396
      %3398 = vmatprep.mubr.bf16.mxu0 %v2200
      %3399 = vmatmul.mubr.bf16.gmra.mrb[0].mxu0 %v2199
      %v3400 = vpop.f32.mrb[0].mxu0
      %v3401 = vadd.f32 %v1184, %v3400
      %v3402 = vpop.f32.mrb[0].mxu0
      %v3403 = vadd.f32 %v1184, %v3402
      %v3404 = vpop.f32.mrb[0].mxu0
      %v3405 = vadd.f32 %v1189, %v3404
      %v3406 = vpop.f32.mrb[0].mxu0
      %v3407 = vadd.f32 %v1189, %v3406
      %3408 = vmatprep.mubr.bf16.mxu0 %v2205
      %3409 = vmatmul.mubr.bf16.gmra.mrb[0].mxu0 %v2204
      %v3410 = vpop.f32.mrb[0].mxu0
      %v3411 = vadd.f32 %v1194, %v3410
      %v3412 = vpop.f32.mrb[0].mxu0
      %v3413 = vadd.f32 %v1194, %v3412
      %v3414 = vpop.f32.mrb[0].mxu0
      %v3415 = vadd.f32 %v1199, %v3414
      %v3416 = vpop.f32.mrb[0].mxu0
      %v3417 = vadd.f32 %v1199, %v3416
      %3418 = vdwg.mxu0
      %3419 = vmatprep.subr.bf16.mxu0 %v2650
      %3420 = vmatpush1.bf16.msra.mxu0 %v2649
      %3421 = vmatprep.subr.bf16.mxu0 %v2652
      %3422 = vmatpush1.bf16.msra.mxu0 %v2651
      %3423 = vmatprep.subr.bf16.mxu0 %v2654
      %3424 = vmatpush1.bf16.msra.mxu0 %v2653
      %3425 = vmatprep.subr.bf16.mxu0 %v2656
      %3426 = vmatpush1.bf16.msra.mxu0 %v2655
      %3427 = vmatprep.subr.bf16.mxu0 %v2658
      %3428 = vmatpush1.bf16.msra.mxu0 %v2657
      %3429 = vmatprep.subr.bf16.mxu0 %v2660
      %3430 = vmatpush1.bf16.msra.mxu0 %v2659
      %3431 = vmatprep.subr.bf16.mxu0 %v2662
      %3432 = vmatpush1.bf16.msra.mxu0 %v2661
      %3433 = vmatprep.subr.bf16.mxu0 %v2664
      %3434 = vmatpush1.bf16.msra.mxu0 %v2663
      %3435 = vmatprep.subr.bf16.mxu0 %v2666
      %3436 = vmatpush1.bf16.msra.mxu0 %v2665
      %3437 = vmatprep.subr.bf16.mxu0 %v2668
      %3438 = vmatpush1.bf16.msra.mxu0 %v2667
      %3439 = vmatprep.subr.bf16.mxu0 %v2670
      %3440 = vmatpush1.bf16.msra.mxu0 %v2669
      %3441 = vmatprep.subr.bf16.mxu0 %v2672
      %3442 = vmatpush1.bf16.msra.mxu0 %v2671
      %3443 = vmatprep.subr.bf16.mxu0 %v2674
      %3444 = vmatpush1.bf16.msra.mxu0 %v2673
      %3445 = vmatprep.subr.bf16.mxu0 %v2676
      %3446 = vmatpush1.bf16.msra.mxu0 %v2675
      %3447 = vmatprep.subr.bf16.mxu0 %v2678
      %3448 = vmatpush1.bf16.msra.mxu0 %v2677
      %3449 = vmatprep.subr.bf16.mxu0 %v2680
      %3450 = vmatpush1.bf16.msra.mxu0 %v2679
      %3451 = vmatprep.mubr.bf16.mxu0 %v1972
      %3452 = vmatmul.mubr.bf16.gmra.mrb[0].mxu0 %v1971
      %v3453 = vpop.f32.mrb[0].mxu0
      %v3454 = vadd.f32 %v2941, %v3453
      %v3455 = vpop.f32.mrb[0].mxu0
      %v3456 = vadd.f32 %v2943, %v3455
      %v3457 = vpop.f32.mrb[0].mxu0
      %v3458 = vadd.f32 %v2945, %v3457
      %v3459 = vpop.f32.mrb[0].mxu0
      %v3460 = vadd.f32 %v2947, %v3459
      %3461 = vmatprep.mubr.bf16.mxu0 %v1977
      %3462 = vmatmul.mubr.bf16.gmra.mrb[0].mxu0 %v1976
      %v3463 = vpop.f32.mrb[0].mxu0
      %v3464 = vadd.f32 %v2951, %v3463
      %v3465 = vpop.f32.mrb[0].mxu0
      %v3466 = vadd.f32 %v2953, %v3465
      %v3467 = vpop.f32.mrb[0].mxu0
      %v3468 = vadd.f32 %v2955, %v3467
      %v3469 = vpop.f32.mrb[0].mxu0
      %v3470 = vadd.f32 %v2957, %v3469
      %3471 = vmatprep.mubr.bf16.mxu0 %v1982
      %3472 = vmatmul.mubr.bf16.gmra.mrb[0].mxu0 %v1981
      %v3473 = vpop.f32.mrb[0].mxu0
      %v3474 = vadd.f32 %v2961, %v3473
      %v3475 = vpop.f32.mrb[0].mxu0
      %v3476 = vadd.f32 %v2963, %v3475
      %v3477 = vpop.f32.mrb[0].mxu0
      %v3478 = vadd.f32 %v2965, %v3477
      %v3479 = vpop.f32.mrb[0].mxu0
      %v3480 = vadd.f32 %v2967, %v3479
      %3481 = vmatprep.mubr.bf16.mxu0 %v1987
      %3482 = vmatmul.mubr.bf16.gmra.mrb[0].mxu0 %v1986
      %v3483 = vpop.f32.mrb[0].mxu0
      %v3484 = vadd.f32 %v2971, %v3483
      %v3485 = vpop.f32.mrb[0].mxu0
      %v3486 = vadd.f32 %v2973, %v3485
      %v3487 = vpop.f32.mrb[0].mxu0
      %v3488 = vadd.f32 %v2975, %v3487
      %v3489 = vpop.f32.mrb[0].mxu0
      %v3490 = vadd.f32 %v2977, %v3489
      %3491 = vmatprep.mubr.bf16.mxu0 %v1992
      %3492 = vmatmul.mubr.bf16.gmra.mrb[0].mxu0 %v1991
      %v3493 = vpop.f32.mrb[0].mxu0
      %v3494 = vadd.f32 %v2981, %v3493
      %v3495 = vpop.f32.mrb[0].mxu0
      %v3496 = vadd.f32 %v2983, %v3495
      %v3497 = vpop.f32.mrb[0].mxu0
      %v3498 = vadd.f32 %v2985, %v3497
      %v3499 = vpop.f32.mrb[0].mxu0
      %v3500 = vadd.f32 %v2987, %v3499
      %3501 = vmatprep.mubr.bf16.mxu0 %v1997
      %3502 = vmatmul.mubr.bf16.gmra.mrb[0].mxu0 %v1996
      %v3503 = vpop.f32.mrb[0].mxu0
      %v3504 = vadd.f32 %v2991, %v3503
      %v3505 = vpop.f32.mrb[0].mxu0
      %v3506 = vadd.f32 %v2993, %v3505
      %v3507 = vpop.f32.mrb[0].mxu0
      %v3508 = vadd.f32 %v2995, %v3507
      %v3509 = vpop.f32.mrb[0].mxu0
      %v3510 = vadd.f32 %v2997, %v3509
      %3511 = vmatprep.mubr.bf16.mxu0 %v2002
      %3512 = vmatmul.mubr.bf16.gmra.mrb[0].mxu0 %v2001
      %v3513 = vpop.f32.mrb[0].mxu0
      %v3514 = vadd.f32 %v3001, %v3513
      %v3515 = vpop.f32.mrb[0].mxu0
      %v3516 = vadd.f32 %v3003, %v3515
      %v3517 = vpop.f32.mrb[0].mxu0
      %v3518 = vadd.f32 %v3005, %v3517
      %v3519 = vpop.f32.mrb[0].mxu0
      %v3520 = vadd.f32 %v3007, %v3519
      %3521 = vmatprep.mubr.bf16.mxu0 %v2007
      %3522 = vmatmul.mubr.bf16.gmra.mrb[0].mxu0 %v2006
      %v3523 = vpop.f32.mrb[0].mxu0
      %v3524 = vadd.f32 %v3011, %v3523
      %v3525 = vpop.f32.mrb[0].mxu0
      %v3526 = vadd.f32 %v3013, %v3525
      %v3527 = vpop.f32.mrb[0].mxu0
      %v3528 = vadd.f32 %v3015, %v3527
      %v3529 = vpop.f32.mrb[0].mxu0
      %v3530 = vadd.f32 %v3017, %v3529
      %3531 = vmatprep.mubr.bf16.mxu0 %v2012
      %3532 = vmatmul.mubr.bf16.gmra.mrb[0].mxu0 %v2011
      %v3533 = vpop.f32.mrb[0].mxu0
      %v3534 = vadd.f32 %v3021, %v3533
      %v3535 = vpop.f32.mrb[0].mxu0
      %v3536 = vadd.f32 %v3023, %v3535
      %v3537 = vpop.f32.mrb[0].mxu0
      %v3538 = vadd.f32 %v3025, %v3537
      %v3539 = vpop.f32.mrb[0].mxu0
      %v3540 = vadd.f32 %v3027, %v3539
      %3541 = vmatprep.mubr.bf16.mxu0 %v2017
      %3542 = vmatmul.mubr.bf16.gmra.mrb[0].mxu0 %v2016
      %v3543 = vpop.f32.mrb[0].mxu0
      %v3544 = vadd.f32 %v3031, %v3543
      %v3545 = vpop.f32.mrb[0].mxu0
      %v3546 = vadd.f32 %v3033, %v3545
      %v3547 = vpop.f32.mrb[0].mxu0
      %v3548 = vadd.f32 %v3035, %v3547
      %v3549 = vpop.f32.mrb[0].mxu0
      %v3550 = vadd.f32 %v3037, %v3549
      %3551 = vmatprep.mubr.bf16.mxu0 %v2022
      %3552 = vmatmul.mubr.bf16.gmra.mrb[0].mxu0 %v2021
      %v3553 = vpop.f32.mrb[0].mxu0
      %v3554 = vadd.f32 %v3041, %v3553
      %v3555 = vpop.f32.mrb[0].mxu0
      %v3556 = vadd.f32 %v3043, %v3555
      %v3557 = vpop.f32.mrb[0].mxu0
      %v3558 = vadd.f32 %v3045, %v3557
      %v3559 = vpop.f32.mrb[0].mxu0
      %v3560 = vadd.f32 %v3047, %v3559
      %3561 = vmatprep.mubr.bf16.mxu0 %v2027
      %3562 = vmatmul.mubr.bf16.gmra.mrb[0].mxu0 %v2026
      %v3563 = vpop.f32.mrb[0].mxu0
      %v3564 = vadd.f32 %v3051, %v3563
      %v3565 = vpop.f32.mrb[0].mxu0
      %v3566 = vadd.f32 %v3053, %v3565
      %v3567 = vpop.f32.mrb[0].mxu0
      %v3568 = vadd.f32 %v3055, %v3567
      %v3569 = vpop.f32.mrb[0].mxu0
      %v3570 = vadd.f32 %v3057, %v3569
      %3571 = vmatprep.mubr.bf16.mxu0 %v2032
      %3572 = vmatmul.mubr.bf16.gmra.mrb[0].mxu0 %v2031
      %v3573 = vpop.f32.mrb[0].mxu0
      %v3574 = vadd.f32 %v3061, %v3573
      %v3575 = vpop.f32.mrb[0].mxu0
      %v3576 = vadd.f32 %v3063, %v3575
      %v3577 = vpop.f32.mrb[0].mxu0
      %v3578 = vadd.f32 %v3065, %v3577
      %v3579 = vpop.f32.mrb[0].mxu0
      %v3580 = vadd.f32 %v3067, %v3579
      %3581 = vmatprep.mubr.bf16.mxu0 %v2037
      %3582 = vmatmul.mubr.bf16.gmra.mrb[0].mxu0 %v2036
      %v3583 = vpop.f32.mrb[0].mxu0
      %v3584 = vadd.f32 %v3071, %v3583
      %v3585 = vpop.f32.mrb[0].mxu0
      %v3586 = vadd.f32 %v3073, %v3585
      %v3587 = vpop.f32.mrb[0].mxu0
      %v3588 = vadd.f32 %v3075, %v3587
      %v3589 = vpop.f32.mrb[0].mxu0
      %v3590 = vadd.f32 %v3077, %v3589
      %3591 = vmatprep.mubr.bf16.mxu0 %v2042
      %3592 = vmatmul.mubr.bf16.gmra.mrb[0].mxu0 %v2041
      %v3593 = vpop.f32.mrb[0].mxu0
      %v3594 = vadd.f32 %v3081, %v3593
      %v3595 = vpop.f32.mrb[0].mxu0
      %v3596 = vadd.f32 %v3083, %v3595
      %v3597 = vpop.f32.mrb[0].mxu0
      %v3598 = vadd.f32 %v3085, %v3597
      %v3599 = vpop.f32.mrb[0].mxu0
      %v3600 = vadd.f32 %v3087, %v3599
      %3601 = vmatprep.mubr.bf16.mxu0 %v2047
      %3602 = vmatmul.mubr.bf16.gmra.mrb[0].mxu0 %v2046
      %v3603 = vpop.f32.mrb[0].mxu0
      %v3604 = vadd.f32 %v3091, %v3603
      %v3605 = vpop.f32.mrb[0].mxu0
      %v3606 = vadd.f32 %v3093, %v3605
      %v3607 = vpop.f32.mrb[0].mxu0
      %v3608 = vadd.f32 %v3095, %v3607
      %v3609 = vpop.f32.mrb[0].mxu0
      %v3610 = vadd.f32 %v3097, %v3609
      %3611 = vmatprep.mubr.bf16.mxu0 %v2052
      %3612 = vmatmul.mubr.bf16.gmra.mrb[0].mxu0 %v2051
      %v3613 = vpop.f32.mrb[0].mxu0
      %v3614 = vadd.f32 %v3101, %v3613
      %v3615 = vpop.f32.mrb[0].mxu0
      %v3616 = vadd.f32 %v3103, %v3615
      %v3617 = vpop.f32.mrb[0].mxu0
      %v3618 = vadd.f32 %v3105, %v3617
      %v3619 = vpop.f32.mrb[0].mxu0
      %v3620 = vadd.f32 %v3107, %v3619
      %3621 = vmatprep.mubr.bf16.mxu0 %v2057
      %3622 = vmatmul.mubr.bf16.gmra.mrb[0].mxu0 %v2056
      %v3623 = vpop.f32.mrb[0].mxu0
      %v3624 = vadd.f32 %v3111, %v3623
      %v3625 = vpop.f32.mrb[0].mxu0
      %v3626 = vadd.f32 %v3113, %v3625
      %v3627 = vpop.f32.mrb[0].mxu0
      %v3628 = vadd.f32 %v3115, %v3627
      %v3629 = vpop.f32.mrb[0].mxu0
      %v3630 = vadd.f32 %v3117, %v3629
      %3631 = vmatprep.mubr.bf16.mxu0 %v2062
      %3632 = vmatmul.mubr.bf16.gmra.mrb[0].mxu0 %v2061
      %v3633 = vpop.f32.mrb[0].mxu0
      %v3634 = vadd.f32 %v3121, %v3633
      %v3635 = vpop.f32.mrb[0].mxu0
      %v3636 = vadd.f32 %v3123, %v3635
      %v3637 = vpop.f32.mrb[0].mxu0
      %v3638 = vadd.f32 %v3125, %v3637
      %v3639 = vpop.f32.mrb[0].mxu0
      %v3640 = vadd.f32 %v3127, %v3639
      %3641 = vmatprep.mubr.bf16.mxu0 %v2067
      %3642 = vmatmul.mubr.bf16.gmra.mrb[0].mxu0 %v2066
      %v3643 = vpop.f32.mrb[0].mxu0
      %v3644 = vadd.f32 %v3131, %v3643
      %v3645 = vpop.f32.mrb[0].mxu0
      %v3646 = vadd.f32 %v3133, %v3645
      %v3647 = vpop.f32.mrb[0].mxu0
      %v3648 = vadd.f32 %v3135, %v3647
      %v3649 = vpop.f32.mrb[0].mxu0
      %v3650 = vadd.f32 %v3137, %v3649
      %3651 = vmatprep.mubr.bf16.mxu0 %v2072
      %3652 = vmatmul.mubr.bf16.gmra.mrb[0].mxu0 %v2071
      %v3653 = vpop.f32.mrb[0].mxu0
      %v3654 = vadd.f32 %v3141, %v3653
      %v3655 = vpop.f32.mrb[0].mxu0
      %v3656 = vadd.f32 %v3143, %v3655
      %v3657 = vpop.f32.mrb[0].mxu0
      %v3658 = vadd.f32 %v3145, %v3657
      %v3659 = vpop.f32.mrb[0].mxu0
      %v3660 = vadd.f32 %v3147, %v3659
      %3661 = vmatprep.mubr.bf16.mxu0 %v2077
      %3662 = vmatmul.mubr.bf16.gmra.mrb[0].mxu0 %v2076
      %v3663 = vpop.f32.mrb[0].mxu0
      %v3664 = vadd.f32 %v3151, %v3663
      %v3665 = vpop.f32.mrb[0].mxu0
      %v3666 = vadd.f32 %v3153, %v3665
      %v3667 = vpop.f32.mrb[0].mxu0
      %v3668 = vadd.f32 %v3155, %v3667
      %v3669 = vpop.f32.mrb[0].mxu0
      %v3670 = vadd.f32 %v3157, %v3669
      %3671 = vmatprep.mubr.bf16.mxu0 %v2082
      %3672 = vmatmul.mubr.bf16.gmra.mrb[0].mxu0 %v2081
      %v3673 = vpop.f32.mrb[0].mxu0
      %v3674 = vadd.f32 %v3161, %v3673
      %v3675 = vpop.f32.mrb[0].mxu0
      %v3676 = vadd.f32 %v3163, %v3675
      %v3677 = vpop.f32.mrb[0].mxu0
      %v3678 = vadd.f32 %v3165, %v3677
      %v3679 = vpop.f32.mrb[0].mxu0
      %v3680 = vadd.f32 %v3167, %v3679
      %3681 = vmatprep.mubr.bf16.mxu0 %v2087
      %3682 = vmatmul.mubr.bf16.gmra.mrb[0].mxu0 %v2086
      %v3683 = vpop.f32.mrb[0].mxu0
      %v3684 = vadd.f32 %v3171, %v3683
      %v3685 = vpop.f32.mrb[0].mxu0
      %v3686 = vadd.f32 %v3173, %v3685
      %v3687 = vpop.f32.mrb[0].mxu0
      %v3688 = vadd.f32 %v3175, %v3687
      %v3689 = vpop.f32.mrb[0].mxu0
      %v3690 = vadd.f32 %v3177, %v3689
      %3691 = vmatprep.mubr.bf16.mxu0 %v2092
      %3692 = vmatmul.mubr.bf16.gmra.mrb[0].mxu0 %v2091
      %v3693 = vpop.f32.mrb[0].mxu0
      %v3694 = vadd.f32 %v3181, %v3693
      %v3695 = vpop.f32.mrb[0].mxu0
      %v3696 = vadd.f32 %v3183, %v3695
      %v3697 = vpop.f32.mrb[0].mxu0
      %v3698 = vadd.f32 %v3185, %v3697
      %v3699 = vpop.f32.mrb[0].mxu0
      %v3700 = vadd.f32 %v3187, %v3699
      %3701 = vmatprep.mubr.bf16.mxu0 %v2097
      %3702 = vmatmul.mubr.bf16.gmra.mrb[0].mxu0 %v2096
      %v3703 = vpop.f32.mrb[0].mxu0
      %v3704 = vadd.f32 %v3191, %v3703
      %v3705 = vpop.f32.mrb[0].mxu0
      %v3706 = vadd.f32 %v3193, %v3705
      %v3707 = vpop.f32.mrb[0].mxu0
      %v3708 = vadd.f32 %v3195, %v3707
      %v3709 = vpop.f32.mrb[0].mxu0
      %v3710 = vadd.f32 %v3197, %v3709
      %3711 = vmatprep.mubr.bf16.mxu0 %v2102
      %3712 = vmatmul.mubr.bf16.gmra.mrb[0].mxu0 %v2101
      %v3713 = vpop.f32.mrb[0].mxu0
      %v3714 = vadd.f32 %v3201, %v3713
      %v3715 = vpop.f32.mrb[0].mxu0
      %v3716 = vadd.f32 %v3203, %v3715
      %v3717 = vpop.f32.mrb[0].mxu0
      %v3718 = vadd.f32 %v3205, %v3717
      %v3719 = vpop.f32.mrb[0].mxu0
      %v3720 = vadd.f32 %v3207, %v3719
      %3721 = vmatprep.mubr.bf16.mxu0 %v2107
      %3722 = vmatmul.mubr.bf16.gmra.mrb[0].mxu0 %v2106
      %v3723 = vpop.f32.mrb[0].mxu0
      %v3724 = vadd.f32 %v3211, %v3723
      %v3725 = vpop.f32.mrb[0].mxu0
      %v3726 = vadd.f32 %v3213, %v3725
      %v3727 = vpop.f32.mrb[0].mxu0
      %v3728 = vadd.f32 %v3215, %v3727
      %v3729 = vpop.f32.mrb[0].mxu0
      %v3730 = vadd.f32 %v3217, %v3729
      %3731 = vmatprep.mubr.bf16.mxu0 %v2112
      %3732 = vmatmul.mubr.bf16.gmra.mrb[0].mxu0 %v2111
      %v3733 = vpop.f32.mrb[0].mxu0
      %v3734 = vadd.f32 %v3221, %v3733
      %v3735 = vpop.f32.mrb[0].mxu0
      %v3736 = vadd.f32 %v3223, %v3735
      %v3737 = vpop.f32.mrb[0].mxu0
      %v3738 = vadd.f32 %v3225, %v3737
      %v3739 = vpop.f32.mrb[0].mxu0
      %v3740 = vadd.f32 %v3227, %v3739
      %3741 = vmatprep.mubr.bf16.mxu0 %v2117
      %3742 = vmatmul.mubr.bf16.gmra.mrb[0].mxu0 %v2116
      %v3743 = vpop.f32.mrb[0].mxu0
      %v3744 = vadd.f32 %v3231, %v3743
      %v3745 = vpop.f32.mrb[0].mxu0
      %v3746 = vadd.f32 %v3233, %v3745
      %v3747 = vpop.f32.mrb[0].mxu0
      %v3748 = vadd.f32 %v3235, %v3747
      %v3749 = vpop.f32.mrb[0].mxu0
      %v3750 = vadd.f32 %v3237, %v3749
      %3751 = vmatprep.mubr.bf16.mxu0 %v2122
      %3752 = vmatmul.mubr.bf16.gmra.mrb[0].mxu0 %v2121
      %v3753 = vpop.f32.mrb[0].mxu0
      %v3754 = vadd.f32 %v3241, %v3753
      %v3755 = vpop.f32.mrb[0].mxu0
      %v3756 = vadd.f32 %v3243, %v3755
      %v3757 = vpop.f32.mrb[0].mxu0
      %v3758 = vadd.f32 %v3245, %v3757
      %v3759 = vpop.f32.mrb[0].mxu0
      %v3760 = vadd.f32 %v3247, %v3759
      %3761 = vmatprep.mubr.bf16.mxu0 %v2127
      %3762 = vmatmul.mubr.bf16.gmra.mrb[0].mxu0 %v2126
      %v3763 = vpop.f32.mrb[0].mxu0
      %v3764 = vadd.f32 %v3251, %v3763
      %v3765 = vpop.f32.mrb[0].mxu0
      %v3766 = vadd.f32 %v3253, %v3765
      %v3767 = vpop.f32.mrb[0].mxu0
      %v3768 = vadd.f32 %v3255, %v3767
      %v3769 = vpop.f32.mrb[0].mxu0
      %v3770 = vadd.f32 %v3257, %v3769
      %3771 = vmatprep.mubr.bf16.mxu0 %v2132
      %3772 = vmatmul.mubr.bf16.gmra.mrb[0].mxu0 %v2131
      %v3773 = vpop.f32.mrb[0].mxu0
      %v3774 = vadd.f32 %v3261, %v3773
      %v3775 = vpop.f32.mrb[0].mxu0
      %v3776 = vadd.f32 %v3263, %v3775
      %v3777 = vpop.f32.mrb[0].mxu0
      %v3778 = vadd.f32 %v3265, %v3777
      %v3779 = vpop.f32.mrb[0].mxu0
      %v3780 = vadd.f32 %v3267, %v3779
      %3781 = vmatprep.mubr.bf16.mxu0 %v2137
      %3782 = vmatmul.mubr.bf16.gmra.mrb[0].mxu0 %v2136
      %v3783 = vpop.f32.mrb[0].mxu0
      %v3784 = vadd.f32 %v3271, %v3783
      %v3785 = vpop.f32.mrb[0].mxu0
      %v3786 = vadd.f32 %v3273, %v3785
      %v3787 = vpop.f32.mrb[0].mxu0
      %v3788 = vadd.f32 %v3275, %v3787
      %v3789 = vpop.f32.mrb[0].mxu0
      %v3790 = vadd.f32 %v3277, %v3789
      %3791 = vmatprep.mubr.bf16.mxu0 %v2142
      %3792 = vmatmul.mubr.bf16.gmra.mrb[0].mxu0 %v2141
      %v3793 = vpop.f32.mrb[0].mxu0
      %v3794 = vadd.f32 %v3281, %v3793
      %v3795 = vpop.f32.mrb[0].mxu0
      %v3796 = vadd.f32 %v3283, %v3795
      %v3797 = vpop.f32.mrb[0].mxu0
      %v3798 = vadd.f32 %v3285, %v3797
      %v3799 = vpop.f32.mrb[0].mxu0
      %v3800 = vadd.f32 %v3287, %v3799
      %3801 = vmatprep.mubr.bf16.mxu0 %v2147
      %3802 = vmatmul.mubr.bf16.gmra.mrb[0].mxu0 %v2146
      %v3803 = vpop.f32.mrb[0].mxu0
      %v3804 = vadd.f32 %v3291, %v3803
      %v3805 = vpop.f32.mrb[0].mxu0
      %v3806 = vadd.f32 %v3293, %v3805
      %v3807 = vpop.f32.mrb[0].mxu0
      %v3808 = vadd.f32 %v3295, %v3807
      %v3809 = vpop.f32.mrb[0].mxu0
      %v3810 = vadd.f32 %v3297, %v3809
      %3811 = vmatprep.mubr.bf16.mxu0 %v2152
      %3812 = vmatmul.mubr.bf16.gmra.mrb[0].mxu0 %v2151
      %v3813 = vpop.f32.mrb[0].mxu0
      %v3814 = vadd.f32 %v3301, %v3813
      %v3815 = vpop.f32.mrb[0].mxu0
      %v3816 = vadd.f32 %v3303, %v3815
      %v3817 = vpop.f32.mrb[0].mxu0
      %v3818 = vadd.f32 %v3305, %v3817
      %v3819 = vpop.f32.mrb[0].mxu0
      %v3820 = vadd.f32 %v3307, %v3819
      %3821 = vmatprep.mubr.bf16.mxu0 %v2157
      %3822 = vmatmul.mubr.bf16.gmra.mrb[0].mxu0 %v2156
      %v3823 = vpop.f32.mrb[0].mxu0
      %v3824 = vadd.f32 %v3311, %v3823
      %v3825 = vpop.f32.mrb[0].mxu0
      %v3826 = vadd.f32 %v3313, %v3825
      %v3827 = vpop.f32.mrb[0].mxu0
      %v3828 = vadd.f32 %v3315, %v3827
      %v3829 = vpop.f32.mrb[0].mxu0
      %v3830 = vadd.f32 %v3317, %v3829
      %3831 = vmatprep.mubr.bf16.mxu0 %v2162
      %3832 = vmatmul.mubr.bf16.gmra.mrb[0].mxu0 %v2161
      %v3833 = vpop.f32.mrb[0].mxu0
      %v3834 = vadd.f32 %v3321, %v3833
      %v3835 = vpop.f32.mrb[0].mxu0
      %v3836 = vadd.f32 %v3323, %v3835
      %v3837 = vpop.f32.mrb[0].mxu0
      %v3838 = vadd.f32 %v3325, %v3837
      %v3839 = vpop.f32.mrb[0].mxu0
      %v3840 = vadd.f32 %v3327, %v3839
      %3841 = vmatprep.mubr.bf16.mxu0 %v2167
      %3842 = vmatmul.mubr.bf16.gmra.mrb[0].mxu0 %v2166
      %v3843 = vpop.f32.mrb[0].mxu0
      %v3844 = vadd.f32 %v3331, %v3843
      %v3845 = vpop.f32.mrb[0].mxu0
      %v3846 = vadd.f32 %v3333, %v3845
      %v3847 = vpop.f32.mrb[0].mxu0
      %v3848 = vadd.f32 %v3335, %v3847
      %v3849 = vpop.f32.mrb[0].mxu0
      %v3850 = vadd.f32 %v3337, %v3849
      %3851 = vmatprep.mubr.bf16.mxu0 %v2172
      %3852 = vmatmul.mubr.bf16.gmra.mrb[0].mxu0 %v2171
      %v3853 = vpop.f32.mrb[0].mxu0
      %v3854 = vadd.f32 %v3341, %v3853
      %v3855 = vpop.f32.mrb[0].mxu0
      %v3856 = vadd.f32 %v3343, %v3855
      %v3857 = vpop.f32.mrb[0].mxu0
      %v3858 = vadd.f32 %v3345, %v3857
      %v3859 = vpop.f32.mrb[0].mxu0
      %v3860 = vadd.f32 %v3347, %v3859
      %3861 = vmatprep.mubr.bf16.mxu0 %v2177
      %3862 = vmatmul.mubr.bf16.gmra.mrb[0].mxu0 %v2176
      %v3863 = vpop.f32.mrb[0].mxu0
      %v3864 = vadd.f32 %v3351, %v3863
      %v3865 = vpop.f32.mrb[0].mxu0
      %v3866 = vadd.f32 %v3353, %v3865
      %v3867 = vpop.f32.mrb[0].mxu0
      %v3868 = vadd.f32 %v3355, %v3867
      %v3869 = vpop.f32.mrb[0].mxu0
      %v3870 = vadd.f32 %v3357, %v3869
      %3871 = vmatprep.mubr.bf16.mxu0 %v2182
      %3872 = vmatmul.mubr.bf16.gmra.mrb[0].mxu0 %v2181
      %v3873 = vpop.f32.mrb[0].mxu0
      %v3874 = vadd.f32 %v3361, %v3873
      %v3875 = vpop.f32.mrb[0].mxu0
      %v3876 = vadd.f32 %v3363, %v3875
      %v3877 = vpop.f32.mrb[0].mxu0
      %v3878 = vadd.f32 %v3365, %v3877
      %v3879 = vpop.f32.mrb[0].mxu0
      %v3880 = vadd.f32 %v3367, %v3879
      %3881 = vmatprep.mubr.bf16.mxu0 %v2187
      %3882 = vmatmul.mubr.bf16.gmra.mrb[0].mxu0 %v2186
      %v3883 = vpop.f32.mrb[0].mxu0
      %v3884 = vadd.f32 %v3371, %v3883
      %v3885 = vpop.f32.mrb[0].mxu0
      %v3886 = vadd.f32 %v3373, %v3885
      %v3887 = vpop.f32.mrb[0].mxu0
      %v3888 = vadd.f32 %v3375, %v3887
      %v3889 = vpop.f32.mrb[0].mxu0
      %v3890 = vadd.f32 %v3377, %v3889
      %3891 = vmatprep.mubr.bf16.mxu0 %v2192
      %3892 = vmatmul.mubr.bf16.gmra.mrb[0].mxu0 %v2191
      %v3893 = vpop.f32.mrb[0].mxu0
      %v3894 = vadd.f32 %v3381, %v3893
      %v3895 = vpop.f32.mrb[0].mxu0
      %v3896 = vadd.f32 %v3383, %v3895
      %v3897 = vpop.f32.mrb[0].mxu0
      %v3898 = vadd.f32 %v3385, %v3897
      %v3899 = vpop.f32.mrb[0].mxu0
      %v3900 = vadd.f32 %v3387, %v3899
      %3901 = vmatprep.mubr.bf16.mxu0 %v2197
      %3902 = vmatmul.mubr.bf16.gmra.mrb[0].mxu0 %v2196
      %v3903 = vpop.f32.mrb[0].mxu0
      %v3904 = vadd.f32 %v3391, %v3903
      %v3905 = vpop.f32.mrb[0].mxu0
      %v3906 = vadd.f32 %v3393, %v3905
      %v3907 = vpop.f32.mrb[0].mxu0
      %v3908 = vadd.f32 %v3395, %v3907
      %v3909 = vpop.f32.mrb[0].mxu0
      %v3910 = vadd.f32 %v3397, %v3909
      %3911 = vmatprep.mubr.bf16.mxu0 %v2202
      %3912 = vmatmul.mubr.bf16.gmra.mrb[0].mxu0 %v2201
      %v3913 = vpop.f32.mrb[0].mxu0
      %v3914 = vadd.f32 %v3401, %v3913
      %v3915 = vpop.f32.mrb[0].mxu0
      %v3916 = vadd.f32 %v3403, %v3915
      %v3917 = vpop.f32.mrb[0].mxu0
      %v3918 = vadd.f32 %v3405, %v3917
      %v3919 = vpop.f32.mrb[0].mxu0
      %v3920 = vadd.f32 %v3407, %v3919
      %3921 = vmatprep.mubr.bf16.mxu0 %v2207
      %3922 = vmatmul.mubr.bf16.gmra.mrb[0].mxu0 %v2206
      %v3923 = vpop.f32.mrb[0].mxu0
      %v3924 = vadd.f32 %v3411, %v3923
      %v3925 = vpop.f32.mrb[0].mxu0
      %v3926 = vadd.f32 %v3413, %v3925
      %v3927 = vpop.f32.mrb[0].mxu0
      %v3928 = vadd.f32 %v3415, %v3927
      %v3929 = vpop.f32.mrb[0].mxu0
      %v3930 = vadd.f32 %v3417, %v3929
      %3931 = vdwg.mxu0
      %3932 = vmatprep.subr.bf16.mxu0 %v2682
      %3933 = vmatpush1.bf16.msra.mxu0 %v2681
      %3934 = vmatprep.subr.bf16.mxu0 %v2684
      %3935 = vmatpush1.bf16.msra.mxu0 %v2683
      %3936 = vmatprep.subr.bf16.mxu0 %v2686
      %3937 = vmatpush1.bf16.msra.mxu0 %v2685
      %3938 = vmatprep.subr.bf16.mxu0 %v2688
      %3939 = vmatpush1.bf16.msra.mxu0 %v2687
      %3940 = vmatprep.subr.bf16.mxu0 0
      %3941 = vmatpush1.bf16.msra.mxu0 0
      %3942 = vmatprep.subr.bf16.mxu0 0
      %3943 = vmatpush1.bf16.msra.mxu0 0
      %3944 = vmatprep.subr.bf16.mxu0 0
      %3945 = vmatpush1.bf16.msra.mxu0 0
      %3946 = vmatprep.subr.bf16.mxu0 0
      %3947 = vmatpush1.bf16.msra.mxu0 0
      %3948 = vmatprep.subr.bf16.mxu0 0
      %3949 = vmatpush1.bf16.msra.mxu0 0
      %3950 = vmatprep.subr.bf16.mxu0 0
      %3951 = vmatpush1.bf16.msra.mxu0 0
      %3952 = vmatprep.subr.bf16.mxu0 0
      %3953 = vmatpush1.bf16.msra.mxu0 0
      %3954 = vmatprep.subr.bf16.mxu0 0
      %3955 = vmatpush1.bf16.msra.mxu0 0
      %3956 = vmatprep.subr.bf16.mxu0 0
      %3957 = vmatpush1.bf16.msra.mxu0 0
      %3958 = vmatprep.subr.bf16.mxu0 0
      %3959 = vmatpush1.bf16.msra.mxu0 0
      %3960 = vmatprep.subr.bf16.mxu0 0
      %3961 = vmatpush1.bf16.msra.mxu0 0
      %3962 = vmatprep.subr.bf16.mxu0 0
      %3963 = vmatpush1.bf16.msra.mxu0 0
      %3964 = vmatprep.mubr.bf16.mxu0 0
      %3965 = vmatmul.mubr.bf16.gmra.mrb[0].mxu0 %v2763
      %v3966 = vpop.f32.mrb[0].mxu0
      %v3967 = vadd.f32 %v3454, %v3966
      %v3968 = vpop.f32.mrb[0].mxu0
      %v3969 = vadd.f32 %v3456, %v3968
      %v3970 = vpop.f32.mrb[0].mxu0
      %v3971 = vadd.f32 %v3458, %v3970
      %v3972 = vpop.f32.mrb[0].mxu0
      %v3973 = vadd.f32 %v3460, %v3972
      %3974 = vmatprep.mubr.bf16.mxu0 0
      %3975 = vmatmul.mubr.bf16.gmra.mrb[0].mxu0 %v2766
      %v3976 = vpop.f32.mrb[0].mxu0
      %v3977 = vadd.f32 %v3464, %v3976
      %v3978 = vpop.f32.mrb[0].mxu0
      %v3979 = vadd.f32 %v3466, %v3978
      %v3980 = vpop.f32.mrb[0].mxu0
      %v3981 = vadd.f32 %v3468, %v3980
      %v3982 = vpop.f32.mrb[0].mxu0
      %v3983 = vadd.f32 %v3470, %v3982
      %3984 = vmatprep.mubr.bf16.mxu0 0
      %3985 = vmatmul.mubr.bf16.gmra.mrb[0].mxu0 %v2769
      %v3986 = vpop.f32.mrb[0].mxu0
      %v3987 = vadd.f32 %v3474, %v3986
      %v3988 = vpop.f32.mrb[0].mxu0
      %v3989 = vadd.f32 %v3476, %v3988
      %v3990 = vpop.f32.mrb[0].mxu0
      %v3991 = vadd.f32 %v3478, %v3990
      %v3992 = vpop.f32.mrb[0].mxu0
      %v3993 = vadd.f32 %v3480, %v3992
      %3994 = vmatprep.mubr.bf16.mxu0 0
      %3995 = vmatmul.mubr.bf16.gmra.mrb[0].mxu0 %v2772
      %v3996 = vpop.f32.mrb[0].mxu0
      %v3997 = vadd.f32 %v3484, %v3996
      %v3998 = vpop.f32.mrb[0].mxu0
      %v3999 = vadd.f32 %v3486, %v3998
      %v4000 = vpop.f32.mrb[0].mxu0
      %v4001 = vadd.f32 %v3488, %v4000
      %v4002 = vpop.f32.mrb[0].mxu0
      %v4003 = vadd.f32 %v3490, %v4002
      %4004 = vmatprep.mubr.bf16.mxu0 0
      %4005 = vmatmul.mubr.bf16.gmra.mrb[0].mxu0 %v2775
      %v4006 = vpop.f32.mrb[0].mxu0
      %v4007 = vadd.f32 %v3494, %v4006
      %v4008 = vpop.f32.mrb[0].mxu0
      %v4009 = vadd.f32 %v3496, %v4008
      %v4010 = vpop.f32.mrb[0].mxu0
      %v4011 = vadd.f32 %v3498, %v4010
      %v4012 = vpop.f32.mrb[0].mxu0
      %v4013 = vadd.f32 %v3500, %v4012
      %4014 = vmatprep.mubr.bf16.mxu0 0
      %4015 = vmatmul.mubr.bf16.gmra.mrb[0].mxu0 %v2778
      %v4016 = vpop.f32.mrb[0].mxu0
      %v4017 = vadd.f32 %v3504, %v4016
      %v4018 = vpop.f32.mrb[0].mxu0
      %v4019 = vadd.f32 %v3506, %v4018
      %v4020 = vpop.f32.mrb[0].mxu0
      %v4021 = vadd.f32 %v3508, %v4020
      %v4022 = vpop.f32.mrb[0].mxu0
      %v4023 = vadd.f32 %v3510, %v4022
      %4024 = vmatprep.mubr.bf16.mxu0 0
      %4025 = vmatmul.mubr.bf16.gmra.mrb[0].mxu0 %v2781
      %v4026 = vpop.f32.mrb[0].mxu0
      %v4027 = vadd.f32 %v3514, %v4026
      %v4028 = vpop.f32.mrb[0].mxu0
      %v4029 = vadd.f32 %v3516, %v4028
      %v4030 = vpop.f32.mrb[0].mxu0
      %v4031 = vadd.f32 %v3518, %v4030
      %v4032 = vpop.f32.mrb[0].mxu0
      %v4033 = vadd.f32 %v3520, %v4032
      %4034 = vmatprep.mubr.bf16.mxu0 0
      %4035 = vmatmul.mubr.bf16.gmra.mrb[0].mxu0 %v2784
      %v4036 = vpop.f32.mrb[0].mxu0
      %v4037 = vadd.f32 %v3524, %v4036
      %v4038 = vpop.f32.mrb[0].mxu0
      %v4039 = vadd.f32 %v3526, %v4038
      %v4040 = vpop.f32.mrb[0].mxu0
      %v4041 = vadd.f32 %v3528, %v4040
      %v4042 = vpop.f32.mrb[0].mxu0
      %v4043 = vadd.f32 %v3530, %v4042
      %4044 = vmatprep.mubr.bf16.mxu0 0
      %4045 = vmatmul.mubr.bf16.gmra.mrb[0].mxu0 %v2787
      %v4046 = vpop.f32.mrb[0].mxu0
      %v4047 = vadd.f32 %v3534, %v4046
      %v4048 = vpop.f32.mrb[0].mxu0
      %v4049 = vadd.f32 %v3536, %v4048
      %v4050 = vpop.f32.mrb[0].mxu0
      %v4051 = vadd.f32 %v3538, %v4050
      %v4052 = vpop.f32.mrb[0].mxu0
      %v4053 = vadd.f32 %v3540, %v4052
      %4054 = vmatprep.mubr.bf16.mxu0 0
      %4055 = vmatmul.mubr.bf16.gmra.mrb[0].mxu0 %v2790
      %v4056 = vpop.f32.mrb[0].mxu0
      %v4057 = vadd.f32 %v3544, %v4056
      %v4058 = vpop.f32.mrb[0].mxu0
      %v4059 = vadd.f32 %v3546, %v4058
      %v4060 = vpop.f32.mrb[0].mxu0
      %v4061 = vadd.f32 %v3548, %v4060
      %v4062 = vpop.f32.mrb[0].mxu0
      %v4063 = vadd.f32 %v3550, %v4062
      %4064 = vmatprep.mubr.bf16.mxu0 0
      %4065 = vmatmul.mubr.bf16.gmra.mrb[0].mxu0 %v2793
      %v4066 = vpop.f32.mrb[0].mxu0
      %v4067 = vadd.f32 %v3554, %v4066
      %v4068 = vpop.f32.mrb[0].mxu0
      %v4069 = vadd.f32 %v3556, %v4068
      %v4070 = vpop.f32.mrb[0].mxu0
      %v4071 = vadd.f32 %v3558, %v4070
      %v4072 = vpop.f32.mrb[0].mxu0
      %v4073 = vadd.f32 %v3560, %v4072
      %4074 = vmatprep.mubr.bf16.mxu0 0
      %4075 = vmatmul.mubr.bf16.gmra.mrb[0].mxu0 %v2796
      %v4076 = vpop.f32.mrb[0].mxu0
      %v4077 = vadd.f32 %v3564, %v4076
      %v4078 = vpop.f32.mrb[0].mxu0
      %v4079 = vadd.f32 %v3566, %v4078
      %v4080 = vpop.f32.mrb[0].mxu0
      %v4081 = vadd.f32 %v3568, %v4080
      %v4082 = vpop.f32.mrb[0].mxu0
      %v4083 = vadd.f32 %v3570, %v4082
      %4084 = vmatprep.mubr.bf16.mxu0 0
      %4085 = vmatmul.mubr.bf16.gmra.mrb[0].mxu0 %v2799
      %v4086 = vpop.f32.mrb[0].mxu0
      %v4087 = vadd.f32 %v3574, %v4086
      %v4088 = vpop.f32.mrb[0].mxu0
      %v4089 = vadd.f32 %v3576, %v4088
      %v4090 = vpop.f32.mrb[0].mxu0
      %v4091 = vadd.f32 %v3578, %v4090
      %v4092 = vpop.f32.mrb[0].mxu0
      %v4093 = vadd.f32 %v3580, %v4092
      %4094 = vmatprep.mubr.bf16.mxu0 0
      %4095 = vmatmul.mubr.bf16.gmra.mrb[0].mxu0 %v2802
      %v4096 = vpop.f32.mrb[0].mxu0
      %v4097 = vadd.f32 %v3584, %v4096
      %v4098 = vpop.f32.mrb[0].mxu0
      %v4099 = vadd.f32 %v3586, %v4098
      %v4100 = vpop.f32.mrb[0].mxu0
      %v4101 = vadd.f32 %v3588, %v4100
      %v4102 = vpop.f32.mrb[0].mxu0
      %v4103 = vadd.f32 %v3590, %v4102
      %4104 = vmatprep.mubr.bf16.mxu0 0
      %4105 = vmatmul.mubr.bf16.gmra.mrb[0].mxu0 %v2805
      %v4106 = vpop.f32.mrb[0].mxu0
      %v4107 = vadd.f32 %v3594, %v4106
      %v4108 = vpop.f32.mrb[0].mxu0
      %v4109 = vadd.f32 %v3596, %v4108
      %v4110 = vpop.f32.mrb[0].mxu0
      %v4111 = vadd.f32 %v3598, %v4110
      %v4112 = vpop.f32.mrb[0].mxu0
      %v4113 = vadd.f32 %v3600, %v4112
      %4114 = vmatprep.mubr.bf16.mxu0 0
      %4115 = vmatmul.mubr.bf16.gmra.mrb[0].mxu0 %v2808
      %v4116 = vpop.f32.mrb[0].mxu0
      %v4117 = vadd.f32 %v3604, %v4116
      %v4118 = vpop.f32.mrb[0].mxu0
      %v4119 = vadd.f32 %v3606, %v4118
      %v4120 = vpop.f32.mrb[0].mxu0
      %v4121 = vadd.f32 %v3608, %v4120
      %v4122 = vpop.f32.mrb[0].mxu0
      %v4123 = vadd.f32 %v3610, %v4122
      %4124 = vmatprep.mubr.bf16.mxu0 0
      %4125 = vmatmul.mubr.bf16.gmra.mrb[0].mxu0 %v2811
      %v4126 = vpop.f32.mrb[0].mxu0
      %v4127 = vadd.f32 %v3614, %v4126
      %v4128 = vpop.f32.mrb[0].mxu0
      %v4129 = vadd.f32 %v3616, %v4128
      %v4130 = vpop.f32.mrb[0].mxu0
      %v4131 = vadd.f32 %v3618, %v4130
      %v4132 = vpop.f32.mrb[0].mxu0
      %v4133 = vadd.f32 %v3620, %v4132
      %4134 = vmatprep.mubr.bf16.mxu0 0
      %4135 = vmatmul.mubr.bf16.gmra.mrb[0].mxu0 %v2814
      %v4136 = vpop.f32.mrb[0].mxu0
      %v4137 = vadd.f32 %v3624, %v4136
      %v4138 = vpop.f32.mrb[0].mxu0
      %v4139 = vadd.f32 %v3626, %v4138
      %v4140 = vpop.f32.mrb[0].mxu0
      %v4141 = vadd.f32 %v3628, %v4140
      %v4142 = vpop.f32.mrb[0].mxu0
      %v4143 = vadd.f32 %v3630, %v4142
      %4144 = vmatprep.mubr.bf16.mxu0 0
      %4145 = vmatmul.mubr.bf16.gmra.mrb[0].mxu0 %v2817
      %v4146 = vpop.f32.mrb[0].mxu0
      %v4147 = vadd.f32 %v3634, %v4146
      %v4148 = vpop.f32.mrb[0].mxu0
      %v4149 = vadd.f32 %v3636, %v4148
      %v4150 = vpop.f32.mrb[0].mxu0
      %v4151 = vadd.f32 %v3638, %v4150
      %v4152 = vpop.f32.mrb[0].mxu0
      %v4153 = vadd.f32 %v3640, %v4152
      %4154 = vmatprep.mubr.bf16.mxu0 0
      %4155 = vmatmul.mubr.bf16.gmra.mrb[0].mxu0 %v2820
      %v4156 = vpop.f32.mrb[0].mxu0
      %v4157 = vadd.f32 %v3644, %v4156
      %v4158 = vpop.f32.mrb[0].mxu0
      %v4159 = vadd.f32 %v3646, %v4158
      %v4160 = vpop.f32.mrb[0].mxu0
      %v4161 = vadd.f32 %v3648, %v4160
      %v4162 = vpop.f32.mrb[0].mxu0
      %v4163 = vadd.f32 %v3650, %v4162
      %4164 = vmatprep.mubr.bf16.mxu0 0
      %4165 = vmatmul.mubr.bf16.gmra.mrb[0].mxu0 %v2823
      %v4166 = vpop.f32.mrb[0].mxu0
      %v4167 = vadd.f32 %v3654, %v4166
      %v4168 = vpop.f32.mrb[0].mxu0
      %v4169 = vadd.f32 %v3656, %v4168
      %v4170 = vpop.f32.mrb[0].mxu0
      %v4171 = vadd.f32 %v3658, %v4170
      %v4172 = vpop.f32.mrb[0].mxu0
      %v4173 = vadd.f32 %v3660, %v4172
      %4174 = vmatprep.mubr.bf16.mxu0 0
      %4175 = vmatmul.mubr.bf16.gmra.mrb[0].mxu0 %v2826
      %v4176 = vpop.f32.mrb[0].mxu0
      %v4177 = vadd.f32 %v3664, %v4176
      %v4178 = vpop.f32.mrb[0].mxu0
      %v4179 = vadd.f32 %v3666, %v4178
      %v4180 = vpop.f32.mrb[0].mxu0
      %v4181 = vadd.f32 %v3668, %v4180
      %v4182 = vpop.f32.mrb[0].mxu0
      %v4183 = vadd.f32 %v3670, %v4182
      %4184 = vmatprep.mubr.bf16.mxu0 0
      %4185 = vmatmul.mubr.bf16.gmra.mrb[0].mxu0 %v2829
      %v4186 = vpop.f32.mrb[0].mxu0
      %v4187 = vadd.f32 %v3674, %v4186
      %v4188 = vpop.f32.mrb[0].mxu0
      %v4189 = vadd.f32 %v3676, %v4188
      %v4190 = vpop.f32.mrb[0].mxu0
      %v4191 = vadd.f32 %v3678, %v4190
      %v4192 = vpop.f32.mrb[0].mxu0
      %v4193 = vadd.f32 %v3680, %v4192
      %4194 = vmatprep.mubr.bf16.mxu0 0
      %4195 = vmatmul.mubr.bf16.gmra.mrb[0].mxu0 %v2832
      %v4196 = vpop.f32.mrb[0].mxu0
      %v4197 = vadd.f32 %v3684, %v4196
      %v4198 = vpop.f32.mrb[0].mxu0
      %v4199 = vadd.f32 %v3686, %v4198
      %v4200 = vpop.f32.mrb[0].mxu0
      %v4201 = vadd.f32 %v3688, %v4200
      %v4202 = vpop.f32.mrb[0].mxu0
      %v4203 = vadd.f32 %v3690, %v4202
      %4204 = vmatprep.mubr.bf16.mxu0 0
      %4205 = vmatmul.mubr.bf16.gmra.mrb[0].mxu0 %v2835
      %v4206 = vpop.f32.mrb[0].mxu0
      %v4207 = vadd.f32 %v3694, %v4206
      %v4208 = vpop.f32.mrb[0].mxu0
      %v4209 = vadd.f32 %v3696, %v4208
      %v4210 = vpop.f32.mrb[0].mxu0
      %v4211 = vadd.f32 %v3698, %v4210
      %v4212 = vpop.f32.mrb[0].mxu0
      %v4213 = vadd.f32 %v3700, %v4212
      %4214 = vmatprep.mubr.bf16.mxu0 0
      %4215 = vmatmul.mubr.bf16.gmra.mrb[0].mxu0 %v2838
      %v4216 = vpop.f32.mrb[0].mxu0
      %v4217 = vadd.f32 %v3704, %v4216
      %v4218 = vpop.f32.mrb[0].mxu0
      %v4219 = vadd.f32 %v3706, %v4218
      %v4220 = vpop.f32.mrb[0].mxu0
      %v4221 = vadd.f32 %v3708, %v4220
      %v4222 = vpop.f32.mrb[0].mxu0
      %v4223 = vadd.f32 %v3710, %v4222
      %4224 = vmatprep.mubr.bf16.mxu0 0
      %4225 = vmatmul.mubr.bf16.gmra.mrb[0].mxu0 %v2841
      %v4226 = vpop.f32.mrb[0].mxu0
      %v4227 = vadd.f32 %v3714, %v4226
      %v4228 = vpop.f32.mrb[0].mxu0
      %v4229 = vadd.f32 %v3716, %v4228
      %v4230 = vpop.f32.mrb[0].mxu0
      %v4231 = vadd.f32 %v3718, %v4230
      %v4232 = vpop.f32.mrb[0].mxu0
      %v4233 = vadd.f32 %v3720, %v4232
      %4234 = vmatprep.mubr.bf16.mxu0 0
      %4235 = vmatmul.mubr.bf16.gmra.mrb[0].mxu0 %v2844
      %v4236 = vpop.f32.mrb[0].mxu0
      %v4237 = vadd.f32 %v3724, %v4236
      %v4238 = vpop.f32.mrb[0].mxu0
      %v4239 = vadd.f32 %v3726, %v4238
      %v4240 = vpop.f32.mrb[0].mxu0
      %v4241 = vadd.f32 %v3728, %v4240
      %v4242 = vpop.f32.mrb[0].mxu0
      %v4243 = vadd.f32 %v3730, %v4242
      %4244 = vmatprep.mubr.bf16.mxu0 0
      %4245 = vmatmul.mubr.bf16.gmra.mrb[0].mxu0 %v2847
      %v4246 = vpop.f32.mrb[0].mxu0
      %v4247 = vadd.f32 %v3734, %v4246
      %v4248 = vpop.f32.mrb[0].mxu0
      %v4249 = vadd.f32 %v3736, %v4248
      %v4250 = vpop.f32.mrb[0].mxu0
      %v4251 = vadd.f32 %v3738, %v4250
      %v4252 = vpop.f32.mrb[0].mxu0
      %v4253 = vadd.f32 %v3740, %v4252
      %4254 = vmatprep.mubr.bf16.mxu0 0
      %4255 = vmatmul.mubr.bf16.gmra.mrb[0].mxu0 %v2850
      %v4256 = vpop.f32.mrb[0].mxu0
      %v4257 = vadd.f32 %v3744, %v4256
      %v4258 = vpop.f32.mrb[0].mxu0
      %v4259 = vadd.f32 %v3746, %v4258
      %v4260 = vpop.f32.mrb[0].mxu0
      %v4261 = vadd.f32 %v3748, %v4260
      %v4262 = vpop.f32.mrb[0].mxu0
      %v4263 = vadd.f32 %v3750, %v4262
      %4264 = vmatprep.mubr.bf16.mxu0 0
      %4265 = vmatmul.mubr.bf16.gmra.mrb[0].mxu0 %v2853
      %v4266 = vpop.f32.mrb[0].mxu0
      %v4267 = vadd.f32 %v3754, %v4266
      %v4268 = vpop.f32.mrb[0].mxu0
      %v4269 = vadd.f32 %v3756, %v4268
      %v4270 = vpop.f32.mrb[0].mxu0
      %v4271 = vadd.f32 %v3758, %v4270
      %v4272 = vpop.f32.mrb[0].mxu0
      %v4273 = vadd.f32 %v3760, %v4272
      %4274 = vmatprep.mubr.bf16.mxu0 0
      %4275 = vmatmul.mubr.bf16.gmra.mrb[0].mxu0 %v2856
      %v4276 = vpop.f32.mrb[0].mxu0
      %v4277 = vadd.f32 %v3764, %v4276
      %v4278 = vpop.f32.mrb[0].mxu0
      %v4279 = vadd.f32 %v3766, %v4278
      %v4280 = vpop.f32.mrb[0].mxu0
      %v4281 = vadd.f32 %v3768, %v4280
      %v4282 = vpop.f32.mrb[0].mxu0
      %v4283 = vadd.f32 %v3770, %v4282
      %4284 = vmatprep.mubr.bf16.mxu0 0
      %4285 = vmatmul.mubr.bf16.gmra.mrb[0].mxu0 %v2859
      %v4286 = vpop.f32.mrb[0].mxu0
      %v4287 = vadd.f32 %v3774, %v4286
      %v4288 = vpop.f32.mrb[0].mxu0
      %v4289 = vadd.f32 %v3776, %v4288
      %v4290 = vpop.f32.mrb[0].mxu0
      %v4291 = vadd.f32 %v3778, %v4290
      %v4292 = vpop.f32.mrb[0].mxu0
      %v4293 = vadd.f32 %v3780, %v4292
      %4294 = vmatprep.mubr.bf16.mxu0 0
      %4295 = vmatmul.mubr.bf16.gmra.mrb[0].mxu0 %v2862
      %v4296 = vpop.f32.mrb[0].mxu0
      %v4297 = vadd.f32 %v3784, %v4296
      %v4298 = vpop.f32.mrb[0].mxu0
      %v4299 = vadd.f32 %v3786, %v4298
      %v4300 = vpop.f32.mrb[0].mxu0
      %v4301 = vadd.f32 %v3788, %v4300
      %v4302 = vpop.f32.mrb[0].mxu0
      %v4303 = vadd.f32 %v3790, %v4302
      %4304 = vmatprep.mubr.bf16.mxu0 0
      %4305 = vmatmul.mubr.bf16.gmra.mrb[0].mxu0 %v2865
      %v4306 = vpop.f32.mrb[0].mxu0
      %v4307 = vadd.f32 %v3794, %v4306
      %v4308 = vpop.f32.mrb[0].mxu0
      %v4309 = vadd.f32 %v3796, %v4308
      %v4310 = vpop.f32.mrb[0].mxu0
      %v4311 = vadd.f32 %v3798, %v4310
      %v4312 = vpop.f32.mrb[0].mxu0
      %v4313 = vadd.f32 %v3800, %v4312
      %4314 = vmatprep.mubr.bf16.mxu0 0
      %4315 = vmatmul.mubr.bf16.gmra.mrb[0].mxu0 %v2868
      %v4316 = vpop.f32.mrb[0].mxu0
      %v4317 = vadd.f32 %v3804, %v4316
      %v4318 = vpop.f32.mrb[0].mxu0
      %v4319 = vadd.f32 %v3806, %v4318
      %v4320 = vpop.f32.mrb[0].mxu0
      %v4321 = vadd.f32 %v3808, %v4320
      %v4322 = vpop.f32.mrb[0].mxu0
      %v4323 = vadd.f32 %v3810, %v4322
      %4324 = vmatprep.mubr.bf16.mxu0 0
      %4325 = vmatmul.mubr.bf16.gmra.mrb[0].mxu0 %v2871
      %v4326 = vpop.f32.mrb[0].mxu0
      %v4327 = vadd.f32 %v3814, %v4326
      %v4328 = vpop.f32.mrb[0].mxu0
      %v4329 = vadd.f32 %v3816, %v4328
      %v4330 = vpop.f32.mrb[0].mxu0
      %v4331 = vadd.f32 %v3818, %v4330
      %v4332 = vpop.f32.mrb[0].mxu0
      %v4333 = vadd.f32 %v3820, %v4332
      %4334 = vmatprep.mubr.bf16.mxu0 0
      %4335 = vmatmul.mubr.bf16.gmra.mrb[0].mxu0 %v2874
      %v4336 = vpop.f32.mrb[0].mxu0
      %v4337 = vadd.f32 %v3824, %v4336
      %v4338 = vpop.f32.mrb[0].mxu0
      %v4339 = vadd.f32 %v3826, %v4338
      %v4340 = vpop.f32.mrb[0].mxu0
      %v4341 = vadd.f32 %v3828, %v4340
      %v4342 = vpop.f32.mrb[0].mxu0
      %v4343 = vadd.f32 %v3830, %v4342
      %4344 = vmatprep.mubr.bf16.mxu0 0
      %4345 = vmatmul.mubr.bf16.gmra.mrb[0].mxu0 %v2877
      %v4346 = vpop.f32.mrb[0].mxu0
      %v4347 = vadd.f32 %v3834, %v4346
      %v4348 = vpop.f32.mrb[0].mxu0
      %v4349 = vadd.f32 %v3836, %v4348
      %v4350 = vpop.f32.mrb[0].mxu0
      %v4351 = vadd.f32 %v3838, %v4350
      %v4352 = vpop.f32.mrb[0].mxu0
      %v4353 = vadd.f32 %v3840, %v4352
      %4354 = vmatprep.mubr.bf16.mxu0 0
      %4355 = vmatmul.mubr.bf16.gmra.mrb[0].mxu0 %v2880
      %v4356 = vpop.f32.mrb[0].mxu0
      %v4357 = vadd.f32 %v3844, %v4356
      %v4358 = vpop.f32.mrb[0].mxu0
      %v4359 = vadd.f32 %v3846, %v4358
      %v4360 = vpop.f32.mrb[0].mxu0
      %v4361 = vadd.f32 %v3848, %v4360
      %v4362 = vpop.f32.mrb[0].mxu0
      %v4363 = vadd.f32 %v3850, %v4362
      %4364 = vmatprep.mubr.bf16.mxu0 0
      %4365 = vmatmul.mubr.bf16.gmra.mrb[0].mxu0 %v2883
      %v4366 = vpop.f32.mrb[0].mxu0
      %v4367 = vadd.f32 %v3854, %v4366
      %v4368 = vpop.f32.mrb[0].mxu0
      %v4369 = vadd.f32 %v3856, %v4368
      %v4370 = vpop.f32.mrb[0].mxu0
      %v4371 = vadd.f32 %v3858, %v4370
      %v4372 = vpop.f32.mrb[0].mxu0
      %v4373 = vadd.f32 %v3860, %v4372
      %4374 = vmatprep.mubr.bf16.mxu0 0
      %4375 = vmatmul.mubr.bf16.gmra.mrb[0].mxu0 %v2886
      %v4376 = vpop.f32.mrb[0].mxu0
      %v4377 = vadd.f32 %v3864, %v4376
      %v4378 = vpop.f32.mrb[0].mxu0
      %v4379 = vadd.f32 %v3866, %v4378
      %v4380 = vpop.f32.mrb[0].mxu0
      %v4381 = vadd.f32 %v3868, %v4380
      %v4382 = vpop.f32.mrb[0].mxu0
      %v4383 = vadd.f32 %v3870, %v4382
      %4384 = vmatprep.mubr.bf16.mxu0 0
      %4385 = vmatmul.mubr.bf16.gmra.mrb[0].mxu0 %v2889
      %v4386 = vpop.f32.mrb[0].mxu0
      %v4387 = vadd.f32 %v3874, %v4386
      %v4388 = vpop.f32.mrb[0].mxu0
      %v4389 = vadd.f32 %v3876, %v4388
      %v4390 = vpop.f32.mrb[0].mxu0
      %v4391 = vadd.f32 %v3878, %v4390
      %v4392 = vpop.f32.mrb[0].mxu0
      %v4393 = vadd.f32 %v3880, %v4392
      %4394 = vmatprep.mubr.bf16.mxu0 0
      %4395 = vmatmul.mubr.bf16.gmra.mrb[0].mxu0 %v2892
      %v4396 = vpop.f32.mrb[0].mxu0
      %v4397 = vadd.f32 %v3884, %v4396
      %v4398 = vpop.f32.mrb[0].mxu0
      %v4399 = vadd.f32 %v3886, %v4398
      %v4400 = vpop.f32.mrb[0].mxu0
      %v4401 = vadd.f32 %v3888, %v4400
      %v4402 = vpop.f32.mrb[0].mxu0
      %v4403 = vadd.f32 %v3890, %v4402
      %4404 = vmatprep.mubr.bf16.mxu0 0
      %4405 = vmatmul.mubr.bf16.gmra.mrb[0].mxu0 %v2895
      %v4406 = vpop.f32.mrb[0].mxu0
      %v4407 = vadd.f32 %v3894, %v4406
      %v4408 = vpop.f32.mrb[0].mxu0
      %v4409 = vadd.f32 %v3896, %v4408
      %v4410 = vpop.f32.mrb[0].mxu0
      %v4411 = vadd.f32 %v3898, %v4410
      %v4412 = vpop.f32.mrb[0].mxu0
      %v4413 = vadd.f32 %v3900, %v4412
      %4414 = vmatprep.mubr.bf16.mxu0 0
      %4415 = vmatmul.mubr.bf16.gmra.mrb[0].mxu0 %v2898
      %v4416 = vpop.f32.mrb[0].mxu0
      %v4417 = vadd.f32 %v3904, %v4416
      %v4418 = vpop.f32.mrb[0].mxu0
      %v4419 = vadd.f32 %v3906, %v4418
      %v4420 = vpop.f32.mrb[0].mxu0
      %v4421 = vadd.f32 %v3908, %v4420
      %v4422 = vpop.f32.mrb[0].mxu0
      %v4423 = vadd.f32 %v3910, %v4422
      %4424 = vmatprep.mubr.bf16.mxu0 0
      %4425 = vmatmul.mubr.bf16.gmra.mrb[0].mxu0 %v2901
      %v4426 = vpop.f32.mrb[0].mxu0
      %v4427 = vadd.f32 %v3914, %v4426
      %v4428 = vpop.f32.mrb[0].mxu0
      %v4429 = vadd.f32 %v3916, %v4428
      %v4430 = vpop.f32.mrb[0].mxu0
      %v4431 = vadd.f32 %v3918, %v4430
      %v4432 = vpop.f32.mrb[0].mxu0
      %v4433 = vadd.f32 %v3920, %v4432
      %4434 = vmatprep.mubr.bf16.mxu0 0
      %4435 = vmatmul.mubr.bf16.gmra.mrb[0].mxu0 %v2904
      %v4436 = vpop.f32.mrb[0].mxu0
      %v4437 = vadd.f32 %v3924, %v4436
      %v4438 = vpop.f32.mrb[0].mxu0
      %v4439 = vadd.f32 %v3926, %v4438
      %v4440 = vpop.f32.mrb[0].mxu0
      %v4441 = vadd.f32 %v3928, %v4440
      %v4442 = vpop.f32.mrb[0].mxu0
      %v4443 = vadd.f32 %v3930, %v4442
      %4444 = vdwg.mxu0
      %v4445 = vmax.f32 %v3967, 0.0
      %v4446 = vmax.f32 %v3969, 0.0
      %v4447 = vmax.f32 %v3971, 0.0
      %v4448 = vmax.f32 %v3973, 0.0
      %v4449 = vmax.f32 %v3977, 0.0
      %v4450 = vmax.f32 %v3979, 0.0
      %v4451 = vmax.f32 %v3981, 0.0
      %v4452 = vmax.f32 %v3983, 0.0
      %v4453 = vmax.f32 %v3987, 0.0
      %v4454 = vmax.f32 %v3989, 0.0
      %v4455 = vmax.f32 %v3991, 0.0
      %v4456 = vmax.f32 %v3993, 0.0
      %v4457 = vmax.f32 %v3997, 0.0
      %v4458 = vmax.f32 %v3999, 0.0
      %v4459 = vmax.f32 %v4001, 0.0
      %v4460 = vmax.f32 %v4003, 0.0
      %v4461 = vmax.f32 %v4007, 0.0
      %v4462 = vmax.f32 %v4009, 0.0
      %v4463 = vmax.f32 %v4011, 0.0
      %v4464 = vmax.f32 %v4013, 0.0
      %v4465 = vmax.f32 %v4017, 0.0
      %v4466 = vmax.f32 %v4019, 0.0
      %v4467 = vmax.f32 %v4021, 0.0
      %v4468 = vmax.f32 %v4023, 0.0
      %v4469 = vmax.f32 %v4027, 0.0
      %v4470 = vmax.f32 %v4029, 0.0
      %v4471 = vmax.f32 %v4031, 0.0
      %v4472 = vmax.f32 %v4033, 0.0
      %v4473 = vmax.f32 %v4037, 0.0
      %v4474 = vmax.f32 %v4039, 0.0
      %v4475 = vmax.f32 %v4041, 0.0
      %v4476 = vmax.f32 %v4043, 0.0
      %v4477 = vmax.f32 %v4047, 0.0
      %v4478 = vmax.f32 %v4049, 0.0
      %v4479 = vmax.f32 %v4051, 0.0
      %v4480 = vmax.f32 %v4053, 0.0
      %v4481 = vmax.f32 %v4057, 0.0
      %v4482 = vmax.f32 %v4059, 0.0
      %v4483 = vmax.f32 %v4061, 0.0
      %v4484 = vmax.f32 %v4063, 0.0
      %v4485 = vmax.f32 %v4067, 0.0
      %v4486 = vmax.f32 %v4069, 0.0
      %v4487 = vmax.f32 %v4071, 0.0
      %v4488 = vmax.f32 %v4073, 0.0
      %v4489 = vmax.f32 %v4077, 0.0
      %v4490 = vmax.f32 %v4079, 0.0
      %v4491 = vmax.f32 %v4081, 0.0
      %v4492 = vmax.f32 %v4083, 0.0
      %v4493 = vmax.f32 %v4087, 0.0
      %v4494 = vmax.f32 %v4089, 0.0
      %v4495 = vmax.f32 %v4091, 0.0
      %v4496 = vmax.f32 %v4093, 0.0
      %v4497 = vmax.f32 %v4097, 0.0
      %v4498 = vmax.f32 %v4099, 0.0
      %v4499 = vmax.f32 %v4101, 0.0
      %v4500 = vmax.f32 %v4103, 0.0
      %v4501 = vmax.f32 %v4107, 0.0
      %v4502 = vmax.f32 %v4109, 0.0
      %v4503 = vmax.f32 %v4111, 0.0
      %v4504 = vmax.f32 %v4113, 0.0
      %v4505 = vmax.f32 %v4117, 0.0
      %v4506 = vmax.f32 %v4119, 0.0
      %v4507 = vmax.f32 %v4121, 0.0
      %v4508 = vmax.f32 %v4123, 0.0
      %v4509 = vmax.f32 %v4127, 0.0
      %v4510 = vmax.f32 %v4129, 0.0
      %v4511 = vmax.f32 %v4131, 0.0
      %v4512 = vmax.f32 %v4133, 0.0
      %v4513 = vmax.f32 %v4137, 0.0
      %v4514 = vmax.f32 %v4139, 0.0
      %v4515 = vmax.f32 %v4141, 0.0
      %v4516 = vmax.f32 %v4143, 0.0
      %v4517 = vmax.f32 %v4147, 0.0
      %v4518 = vmax.f32 %v4149, 0.0
      %v4519 = vmax.f32 %v4151, 0.0
      %v4520 = vmax.f32 %v4153, 0.0
      %v4521 = vmax.f32 %v4157, 0.0
      %v4522 = vmax.f32 %v4159, 0.0
      %v4523 = vmax.f32 %v4161, 0.0
      %v4524 = vmax.f32 %v4163, 0.0
      %v4525 = vmax.f32 %v4167, 0.0
      %v4526 = vmax.f32 %v4169, 0.0
      %v4527 = vmax.f32 %v4171, 0.0
      %v4528 = vmax.f32 %v4173, 0.0
      %v4529 = vmax.f32 %v4177, 0.0
      %v4530 = vmax.f32 %v4179, 0.0
      %v4531 = vmax.f32 %v4181, 0.0
      %v4532 = vmax.f32 %v4183, 0.0
      %v4533 = vmax.f32 %v4187, 0.0
      %v4534 = vmax.f32 %v4189, 0.0
      %v4535 = vmax.f32 %v4191, 0.0
      %v4536 = vmax.f32 %v4193, 0.0
      %v4537 = vmax.f32 %v4197, 0.0
      %v4538 = vmax.f32 %v4199, 0.0
      %v4539 = vmax.f32 %v4201, 0.0
      %v4540 = vmax.f32 %v4203, 0.0
      %v4541 = vmax.f32 %v4207, 0.0
      %v4542 = vmax.f32 %v4209, 0.0
      %v4543 = vmax.f32 %v4211, 0.0
      %v4544 = vmax.f32 %v4213, 0.0
      %v4545 = vmax.f32 %v4217, 0.0
      %v4546 = vmax.f32 %v4219, 0.0
      %v4547 = vmax.f32 %v4221, 0.0
      %v4548 = vmax.f32 %v4223, 0.0
      %v4549 = vmax.f32 %v4227, 0.0
      %v4550 = vmax.f32 %v4229, 0.0
      %v4551 = vmax.f32 %v4231, 0.0
      %v4552 = vmax.f32 %v4233, 0.0
      %v4553 = vmax.f32 %v4237, 0.0
      %v4554 = vmax.f32 %v4239, 0.0
      %v4555 = vmax.f32 %v4241, 0.0
      %v4556 = vmax.f32 %v4243, 0.0
      %v4557 = vmax.f32 %v4247, 0.0
      %v4558 = vmax.f32 %v4249, 0.0
      %v4559 = vmax.f32 %v4251, 0.0
      %v4560 = vmax.f32 %v4253, 0.0
      %v4561 = vmax.f32 %v4257, 0.0
      %v4562 = vmax.f32 %v4259, 0.0
      %v4563 = vmax.f32 %v4261, 0.0
      %v4564 = vmax.f32 %v4263, 0.0
      %v4565 = vmax.f32 %v4267, 0.0
      %v4566 = vmax.f32 %v4269, 0.0
      %v4567 = vmax.f32 %v4271, 0.0
      %v4568 = vmax.f32 %v4273, 0.0
      %v4569 = vmax.f32 %v4277, 0.0
      %v4570 = vmax.f32 %v4279, 0.0
      %v4571 = vmax.f32 %v4281, 0.0
      %v4572 = vmax.f32 %v4283, 0.0
      %v4573 = vmax.f32 %v4287, 0.0
      %v4574 = vmax.f32 %v4289, 0.0
      %v4575 = vmax.f32 %v4291, 0.0
      %v4576 = vmax.f32 %v4293, 0.0
      %v4577 = vmax.f32 %v4297, 0.0
      %v4578 = vmax.f32 %v4299, 0.0
      %v4579 = vmax.f32 %v4301, 0.0
      %v4580 = vmax.f32 %v4303, 0.0
      %v4581 = vmax.f32 %v4307, 0.0
      %v4582 = vmax.f32 %v4309, 0.0
      %v4583 = vmax.f32 %v4311, 0.0
      %v4584 = vmax.f32 %v4313, 0.0
      %v4585 = vmax.f32 %v4317, 0.0
      %v4586 = vmax.f32 %v4319, 0.0
      %v4587 = vmax.f32 %v4321, 0.0
      %v4588 = vmax.f32 %v4323, 0.0
      %v4589 = vmax.f32 %v4327, 0.0
      %v4590 = vmax.f32 %v4329, 0.0
      %v4591 = vmax.f32 %v4331, 0.0
      %v4592 = vmax.f32 %v4333, 0.0
      %v4593 = vmax.f32 %v4337, 0.0
      %v4594 = vmax.f32 %v4339, 0.0
      %v4595 = vmax.f32 %v4341, 0.0
      %v4596 = vmax.f32 %v4343, 0.0
      %v4597 = vmax.f32 %v4347, 0.0
      %v4598 = vmax.f32 %v4349, 0.0
      %v4599 = vmax.f32 %v4351, 0.0
      %v4600 = vmax.f32 %v4353, 0.0
      %v4601 = vmax.f32 %v4357, 0.0
      %v4602 = vmax.f32 %v4359, 0.0
      %v4603 = vmax.f32 %v4361, 0.0
      %v4604 = vmax.f32 %v4363, 0.0
      %v4605 = vmax.f32 %v4367, 0.0
      %v4606 = vmax.f32 %v4369, 0.0
      %v4607 = vmax.f32 %v4371, 0.0
      %v4608 = vmax.f32 %v4373, 0.0
      %v4609 = vmax.f32 %v4377, 0.0
      %v4610 = vmax.f32 %v4379, 0.0
      %v4611 = vmax.f32 %v4381, 0.0
      %v4612 = vmax.f32 %v4383, 0.0
      %v4613 = vmax.f32 %v4387, 0.0
      %v4614 = vmax.f32 %v4389, 0.0
      %v4615 = vmax.f32 %v4391, 0.0
      %v4616 = vmax.f32 %v4393, 0.0
      %v4617 = vmax.f32 %v4397, 0.0
      %v4618 = vmax.f32 %v4399, 0.0
      %v4619 = vmax.f32 %v4401, 0.0
      %v4620 = vmax.f32 %v4403, 0.0
      %v4621 = vmax.f32 %v4407, 0.0
      %v4622 = vmax.f32 %v4409, 0.0
      %v4623 = vmax.f32 %v4411, 0.0
      %v4624 = vmax.f32 %v4413, 0.0
      %v4625 = vmax.f32 %v4417, 0.0
      %v4626 = vmax.f32 %v4419, 0.0
      %v4627 = vmax.f32 %v4421, 0.0
      %v4628 = vmax.f32 %v4423, 0.0
      %v4629 = vmax.f32 %v4427, 0.0
      %v4630 = vmax.f32 %v4429, 0.0
      %v4631 = vmax.f32 %v4431, 0.0
      %v4632 = vmax.f32 %v4433, 0.0
      %v4633 = vmax.f32 %v4437, 0.0
      %v4634 = vmax.f32 %v4439, 0.0
      %v4635 = vmax.f32 %v4441, 0.0
      %v4636 = vmax.f32 %v4443, 0.0
      %v4637 = vld [vmem:[%s3] sm:$0xff]
      %v4638 = vld [vmem:[%s3 + $0x8] sm:$0xff]
      %v4639 = vld [vmem:[%s3 + $0x10] sm:$0xff]
      %v4640 = vld [vmem:[%s3 + $0x18] sm:$0xff]
      %v4641 = vld [vmem:[%s3 + $0x20] sm:$0xff]
      %v4642 = vld [vmem:[%s3 + $0x28] sm:$0xff]
      %v4643 = vpack.c.bf16 %v4447, %v4445
      %v4644 = vpack.c.bf16 %v4448, %v4446
      %v4645 = vpack.c.bf16 %v4451, %v4449
      %v4646 = vpack.c.bf16 %v4452, %v4450
      %v4647 = vpack.c.bf16 %v4455, %v4453
      %v4648 = vpack.c.bf16 %v4456, %v4454
      %v4649 = vpack.c.bf16 %v4459, %v4457
      %v4650 = vpack.c.bf16 %v4460, %v4458
      %v4651 = vpack.c.bf16 %v4463, %v4461
      %v4652 = vpack.c.bf16 %v4464, %v4462
      %v4653 = vpack.c.bf16 %v4467, %v4465
      %v4654 = vpack.c.bf16 %v4468, %v4466
      %v4655 = vpack.c.bf16 %v4471, %v4469
      %v4656 = vpack.c.bf16 %v4472, %v4470
      %v4657 = vpack.c.bf16 %v4475, %v4473
      %v4658 = vpack.c.bf16 %v4476, %v4474
      %v4659 = vpack.c.bf16 %v4479, %v4477
      %v4660 = vpack.c.bf16 %v4480, %v4478
      %v4661 = vpack.c.bf16 %v4483, %v4481
      %v4662 = vpack.c.bf16 %v4484, %v4482
      %v4663 = vpack.c.bf16 %v4487, %v4485
      %v4664 = vpack.c.bf16 %v4488, %v4486
      %v4665 = vpack.c.bf16 %v4491, %v4489
      %v4666 = vpack.c.bf16 %v4492, %v4490
      %v4667 = vpack.c.bf16 %v4495, %v4493
      %v4668 = vpack.c.bf16 %v4496, %v4494
      %v4669 = vpack.c.bf16 %v4499, %v4497
      %v4670 = vpack.c.bf16 %v4500, %v4498
      %v4671 = vpack.c.bf16 %v4503, %v4501
      %v4672 = vpack.c.bf16 %v4504, %v4502
      %v4673 = vpack.c.bf16 %v4507, %v4505
      %v4674 = vpack.c.bf16 %v4508, %v4506
      %v4675 = vpack.c.bf16 %v4511, %v4509
      %v4676 = vpack.c.bf16 %v4512, %v4510
      %v4677 = vpack.c.bf16 %v4515, %v4513
      %v4678 = vpack.c.bf16 %v4516, %v4514
      %v4679 = vpack.c.bf16 %v4519, %v4517
      %v4680 = vpack.c.bf16 %v4520, %v4518
      %v4681 = vpack.c.bf16 %v4523, %v4521
      %v4682 = vpack.c.bf16 %v4524, %v4522
      %v4683 = vpack.c.bf16 %v4527, %v4525
      %v4684 = vpack.c.bf16 %v4528, %v4526
      %v4685 = vpack.c.bf16 %v4531, %v4529
      %v4686 = vpack.c.bf16 %v4532, %v4530
      %v4687 = vpack.c.bf16 %v4535, %v4533
      %v4688 = vpack.c.bf16 %v4536, %v4534
      %v4689 = vpack.c.bf16 %v4539, %v4537
      %v4690 = vpack.c.bf16 %v4540, %v4538
      %v4691 = vpack.c.bf16 %v4543, %v4541
      %v4692 = vpack.c.bf16 %v4544, %v4542
      %v4693 = vpack.c.bf16 %v4547, %v4545
      %v4694 = vpack.c.bf16 %v4548, %v4546
      %v4695 = vpack.c.bf16 %v4551, %v4549
      %v4696 = vpack.c.bf16 %v4552, %v4550
      %v4697 = vpack.c.bf16 %v4555, %v4553
      %v4698 = vpack.c.bf16 %v4556, %v4554
      %v4699 = vpack.c.bf16 %v4559, %v4557
      %v4700 = vpack.c.bf16 %v4560, %v4558
      %v4701 = vpack.c.bf16 %v4563, %v4561
      %v4702 = vpack.c.bf16 %v4564, %v4562
      %v4703 = vpack.c.bf16 %v4567, %v4565
      %v4704 = vpack.c.bf16 %v4568, %v4566
      %v4705 = vpack.c.bf16 %v4571, %v4569
      %v4706 = vpack.c.bf16 %v4572, %v4570
      %v4707 = vpack.c.bf16 %v4575, %v4573
      %v4708 = vpack.c.bf16 %v4576, %v4574
      %v4709 = vpack.c.bf16 %v4579, %v4577
      %v4710 = vpack.c.bf16 %v4580, %v4578
      %v4711 = vpack.c.bf16 %v4583, %v4581
      %v4712 = vpack.c.bf16 %v4584, %v4582
      %v4713 = vpack.c.bf16 %v4587, %v4585
      %v4714 = vpack.c.bf16 %v4588, %v4586
      %v4715 = vpack.c.bf16 %v4591, %v4589
      %v4716 = vpack.c.bf16 %v4592, %v4590
      %v4717 = vpack.c.bf16 %v4595, %v4593
      %v4718 = vpack.c.bf16 %v4596, %v4594
      %v4719 = vpack.c.bf16 %v4599, %v4597
      %v4720 = vpack.c.bf16 %v4600, %v4598
      %v4721 = vpack.c.bf16 %v4603, %v4601
      %v4722 = vpack.c.bf16 %v4604, %v4602
      %v4723 = vpack.c.bf16 %v4607, %v4605
      %v4724 = vpack.c.bf16 %v4608, %v4606
      %v4725 = vpack.c.bf16 %v4611, %v4609
      %v4726 = vpack.c.bf16 %v4612, %v4610
      %v4727 = vpack.c.bf16 %v4615, %v4613
      %v4728 = vpack.c.bf16 %v4616, %v4614
      %v4729 = vpack.c.bf16 %v4619, %v4617
      %v4730 = vpack.c.bf16 %v4620, %v4618
      %v4731 = vpack.c.bf16 %v4623, %v4621
      %v4732 = vpack.c.bf16 %v4624, %v4622
      %v4733 = vpack.c.bf16 %v4627, %v4625
      %v4734 = vpack.c.bf16 %v4628, %v4626
      %v4735 = vpack.c.bf16 %v4631, %v4629
      %v4736 = vpack.c.bf16 %v4632, %v4630
      %v4737 = vpack.c.bf16 %v4635, %v4633
      %v4738 = vpack.c.bf16 %v4636, %v4634
      %v4739 = vld [vmem:[%s4] sm:$0xff]
      %v4740 = vld [vmem:[%s4 + $0x8] sm:$0xff]
      %4742 = vset.pattern.permute.xlu0 0
      %4743 = vperm.xlu0 %4742, %v4739
      %v4744 = vpop.permute.xlu0 %4743
      %4747 = vset.pattern.permute.xlu0 0
      %4748 = vperm.xlu0 %4747, %v4740
      %v4749 = vpop.permute.xlu0 %4748
      %v4757 = vunpack.c.l.b16 %v4637
      %v4758 = vunpack.c.h.b16 %v4637
      %v4759 = vunpack.c.l.b16 %v4638
      %v4760 = vunpack.c.h.b16 %v4638
      %v4761 = vunpack.c.l.b16 %v4639
      %v4762 = vunpack.c.h.b16 %v4639
      %v4763 = vunpack.c.l.b16 %v4640
      %v4764 = vunpack.c.h.b16 %v4640
      %v4765 = vunpack.c.l.b16 %v4641
      %v4766 = vunpack.c.h.b16 %v4641
      %v4767 = vunpack.c.l.b16 %v4642
      %v4768 = vunpack.c.h.b16 %v4642
      %v4769 = vpack.c.b16 %v4763, %v4757
      %v4770 = vpack.c.b16 %v4764, %v4758
      %v4771 = vpack.c.b16 %v4765, %v4759
      %v4772 = vpack.c.b16 %v4766, %v4760
      %v4773 = vpack.c.b16 %v4767, %v4761
      %v4774 = vpack.c.b16 %v4768, %v4762
      %4781 = vmatprep.subr.bf16.mxu0 %v4644
      %4782 = vmatpush1.bf16.msra.mxu0 %v4643
      %4783 = vmatprep.subr.bf16.mxu0 %v4646
      %4784 = vmatpush1.bf16.msra.mxu0 %v4645
      %4785 = vmatprep.subr.bf16.mxu0 %v4648
      %4786 = vmatpush1.bf16.msra.mxu0 %v4647
      %4787 = vmatprep.subr.bf16.mxu0 %v4650
      %4788 = vmatpush1.bf16.msra.mxu0 %v4649
      %4789 = vmatprep.subr.bf16.mxu0 %v4652
      %4790 = vmatpush1.bf16.msra.mxu0 %v4651
      %4791 = vmatprep.subr.bf16.mxu0 %v4654
      %4792 = vmatpush1.bf16.msra.mxu0 %v4653
      %4793 = vmatprep.subr.bf16.mxu0 %v4656
      %4794 = vmatpush1.bf16.msra.mxu0 %v4655
      %4795 = vmatprep.subr.bf16.mxu0 %v4658
      %4796 = vmatpush1.bf16.msra.mxu0 %v4657
      %4797 = vmatprep.subr.bf16.mxu0 %v4660
      %4798 = vmatpush1.bf16.msra.mxu0 %v4659
      %4799 = vmatprep.subr.bf16.mxu0 %v4662
      %4800 = vmatpush1.bf16.msra.mxu0 %v4661
      %4801 = vmatprep.subr.bf16.mxu0 %v4664
      %4802 = vmatpush1.bf16.msra.mxu0 %v4663
      %4803 = vmatprep.subr.bf16.mxu0 %v4666
      %4804 = vmatpush1.bf16.msra.mxu0 %v4665
      %4805 = vmatprep.subr.bf16.mxu0 %v4668
      %4806 = vmatpush1.bf16.msra.mxu0 %v4667
      %4807 = vmatprep.subr.bf16.mxu0 %v4670
      %4808 = vmatpush1.bf16.msra.mxu0 %v4669
      %4809 = vmatprep.subr.bf16.mxu0 %v4672
      %4810 = vmatpush1.bf16.msra.mxu0 %v4671
      %4811 = vmatprep.subr.bf16.mxu0 %v4674
      %4812 = vmatpush1.bf16.msra.mxu0 %v4673
      %4813 = vmatprep.mubr.bf16.mxu0 %v4770
      %4814 = vmatmul.mubr.bf16.gmra.mrb[0].mxu0 %v4769
      %v4815 = vpop.f32.mrb[0].mxu0
      %v4816 = vadd.f32 %v4744, %v4815
      %v4817 = vpop.f32.mrb[0].mxu0
      %v4818 = vadd.f32 %v4744, %v4817
      %v4819 = vpop.f32.mrb[0].mxu0
      %v4820 = vadd.f32 %v4749, %v4819
      %v4821 = vpop.f32.mrb[0].mxu0
      %v4822 = vadd.f32 %v4749, %v4821
      %4823 = vdwg.mxu0
      %4824 = vmatprep.subr.bf16.mxu0 %v4676
      %4825 = vmatpush1.bf16.msra.mxu0 %v4675
      %4826 = vmatprep.subr.bf16.mxu0 %v4678
      %4827 = vmatpush1.bf16.msra.mxu0 %v4677
      %4828 = vmatprep.subr.bf16.mxu0 %v4680
      %4829 = vmatpush1.bf16.msra.mxu0 %v4679
      %4830 = vmatprep.subr.bf16.mxu0 %v4682
      %4831 = vmatpush1.bf16.msra.mxu0 %v4681
      %4832 = vmatprep.subr.bf16.mxu0 %v4684
      %4833 = vmatpush1.bf16.msra.mxu0 %v4683
      %4834 = vmatprep.subr.bf16.mxu0 %v4686
      %4835 = vmatpush1.bf16.msra.mxu0 %v4685
      %4836 = vmatprep.subr.bf16.mxu0 %v4688
      %4837 = vmatpush1.bf16.msra.mxu0 %v4687
      %4838 = vmatprep.subr.bf16.mxu0 %v4690
      %4839 = vmatpush1.bf16.msra.mxu0 %v4689
      %4840 = vmatprep.subr.bf16.mxu0 %v4692
      %4841 = vmatpush1.bf16.msra.mxu0 %v4691
      %4842 = vmatprep.subr.bf16.mxu0 %v4694
      %4843 = vmatpush1.bf16.msra.mxu0 %v4693
      %4844 = vmatprep.subr.bf16.mxu0 %v4696
      %4845 = vmatpush1.bf16.msra.mxu0 %v4695
      %4846 = vmatprep.subr.bf16.mxu0 %v4698
      %4847 = vmatpush1.bf16.msra.mxu0 %v4697
      %4848 = vmatprep.subr.bf16.mxu0 %v4700
      %4849 = vmatpush1.bf16.msra.mxu0 %v4699
      %4850 = vmatprep.subr.bf16.mxu0 %v4702
      %4851 = vmatpush1.bf16.msra.mxu0 %v4701
      %4852 = vmatprep.subr.bf16.mxu0 %v4704
      %4853 = vmatpush1.bf16.msra.mxu0 %v4703
      %4854 = vmatprep.subr.bf16.mxu0 %v4706
      %4855 = vmatpush1.bf16.msra.mxu0 %v4705
      %4856 = vmatprep.mubr.bf16.mxu0 %v4772
      %4857 = vmatmul.mubr.bf16.gmra.mrb[0].mxu0 %v4771
      %v4858 = vpop.f32.mrb[0].mxu0
      %v4859 = vadd.f32 %v4816, %v4858
      %v4860 = vpop.f32.mrb[0].mxu0
      %v4861 = vadd.f32 %v4818, %v4860
      %v4862 = vpop.f32.mrb[0].mxu0
      %v4863 = vadd.f32 %v4820, %v4862
      %v4864 = vpop.f32.mrb[0].mxu0
      %v4865 = vadd.f32 %v4822, %v4864
      %4866 = vdwg.mxu0
      %4867 = vmatprep.subr.bf16.mxu0 %v4708
      %4868 = vmatpush1.bf16.msra.mxu0 %v4707
      %4869 = vmatprep.subr.bf16.mxu0 %v4710
      %4870 = vmatpush1.bf16.msra.mxu0 %v4709
      %4871 = vmatprep.subr.bf16.mxu0 %v4712
      %4872 = vmatpush1.bf16.msra.mxu0 %v4711
      %4873 = vmatprep.subr.bf16.mxu0 %v4714
      %4874 = vmatpush1.bf16.msra.mxu0 %v4713
      %4875 = vmatprep.subr.bf16.mxu0 %v4716
      %4876 = vmatpush1.bf16.msra.mxu0 %v4715
      %4877 = vmatprep.subr.bf16.mxu0 %v4718
      %4878 = vmatpush1.bf16.msra.mxu0 %v4717
      %4879 = vmatprep.subr.bf16.mxu0 %v4720
      %4880 = vmatpush1.bf16.msra.mxu0 %v4719
      %4881 = vmatprep.subr.bf16.mxu0 %v4722
      %4882 = vmatpush1.bf16.msra.mxu0 %v4721
      %4883 = vmatprep.subr.bf16.mxu0 %v4724
      %4884 = vmatpush1.bf16.msra.mxu0 %v4723
      %4885 = vmatprep.subr.bf16.mxu0 %v4726
      %4886 = vmatpush1.bf16.msra.mxu0 %v4725
      %4887 = vmatprep.subr.bf16.mxu0 %v4728
      %4888 = vmatpush1.bf16.msra.mxu0 %v4727
      %4889 = vmatprep.subr.bf16.mxu0 %v4730
      %4890 = vmatpush1.bf16.msra.mxu0 %v4729
      %4891 = vmatprep.subr.bf16.mxu0 %v4732
      %4892 = vmatpush1.bf16.msra.mxu0 %v4731
      %4893 = vmatprep.subr.bf16.mxu0 %v4734
      %4894 = vmatpush1.bf16.msra.mxu0 %v4733
      %4895 = vmatprep.subr.bf16.mxu0 %v4736
      %4896 = vmatpush1.bf16.msra.mxu0 %v4735
      %4897 = vmatprep.subr.bf16.mxu0 %v4738
      %4898 = vmatpush1.bf16.msra.mxu0 %v4737
      %4899 = vmatprep.mubr.bf16.mxu0 %v4774
      %4900 = vmatmul.mubr.bf16.gmra.mrb[0].mxu0 %v4773
      %v4901 = vpop.f32.mrb[0].mxu0
      %v4902 = vadd.f32 %v4859, %v4901
      %v4903 = vpop.f32.mrb[0].mxu0
      %v4904 = vadd.f32 %v4861, %v4903
      %v4905 = vpop.f32.mrb[0].mxu0
      %v4906 = vadd.f32 %v4863, %v4905
      %v4907 = vpop.f32.mrb[0].mxu0
      %v4908 = vadd.f32 %v4865, %v4907
      %4909 = vdwg.mxu0
      %v4910 = vlaneseq
      %v4911 = vshrl.u32 %v4910, 7
      %v4912 = vadd.s32 %v4911, 8
      %vm4913 = vcmp.lt.s32.totalorder %v4911, 3
      %vm4914 = vcmp.lt.s32.totalorder %v4912, 3
      %vm4915 = vcmp.ge.s32.totalorder %v4911, 6
      %vm4916 = vcmp.ge.s32.totalorder %v4912, 6
      %vm4917 = vcmp.lt.s32.totalorder %v4911, 9
      %vm4918 = vcmp.lt.s32.totalorder %v4912, 9
      %vm4919 = vmand %vm4915, %vm4917
      %vm4920 = vmand %vm4916, %vm4918
      %vm4921 = vcmp.ge.s32.totalorder %v4911, 9
      %vm4922 = vcmp.ge.s32.totalorder %v4912, 9
      %vm4923 = vcmp.lt.s32.totalorder %v4911, 11
      %vm4924 = vcmp.lt.s32.totalorder %v4912, 11
      %vm4925 = vmand %vm4921, %vm4923
      %vm4926 = vmand %vm4922, %vm4924
      %v4927 = vsub.f32 0.0, %v4902
      %v4928 = vsub.f32 0.0, %v4904
      %v4929 = vsub.f32 0.0, %v4906
      %v4930 = vsub.f32 0.0, %v4908
      %v4931 = vmul.f32 %v4927, 1.442695
      %v4932 = vpow.pop %v4931
      %v4933 = vmul.f32 %v4928, 1.442695
      %v4934 = vpow.pop %v4933
      %v4935 = vmul.f32 %v4929, 1.442695
      %v4936 = vpow.pop %v4935
      %v4937 = vmul.f32 %v4930, 1.442695
      %v4938 = vpow.pop %v4937
      %v4939 = vadd.f32 %v4932, 1.0
      %v4940 = vadd.f32 %v4934, 1.0
      %v4941 = vadd.f32 %v4936, 1.0
      %v4942 = vadd.f32 %v4938, 1.0
      %v4943 = vrcp.pop %v4939
      %v4944 = vmul.f32 1.0, %v4943
      %v4945 = vrcp.pop %v4940
      %v4946 = vmul.f32 1.0, %v4945
      %v4947 = vrcp.pop %v4941
      %v4948 = vmul.f32 1.0, %v4947
      %v4949 = vrcp.pop %v4942
      %v4950 = vmul.f32 1.0, %v4949
      %v4951 = vmul.f32 %v4902, %v4902
      %v4952 = vmul.f32 %v4904, %v4904
      %v4953 = vmul.f32 %v4906, %v4906
      %v4954 = vmul.f32 %v4908, %v4908
      %v4955 = vsel %vm4925, 1, 0
      %v4956 = vsel %vm4926, 1, 0
      %vm4957 = vcmp.eq.s32.totalorder %v4955, 1
      %vm4958 = vcmp.eq.s32.totalorder %v4956, 1
      %v4959 = vsel %vm4957, %v4951, 0.0
      %v4960 = vsel %vm4957, %v4952, 0.0
      %v4961 = vsel %vm4958, %v4953, 0.0
      %v4962 = vsel %vm4958, %v4954, 0.0
      %v4963 = vadd.f32 %v4959, %v4961
      %v4964 = vrot.slane %v4963, 4
      %v4965 = vadd.f32 %v4963, %v4964
      %v4966 = vrot.slane %v4965, 2
      %v4967 = vadd.f32 %v4965, %v4966
      %v4968 = vrot.slane %v4967, 1
      %v4969 = vadd.f32 %v4967, %v4968
      %v4970 = vadd.f32 %v4960, %v4962
      %v4971 = vrot.slane %v4970, 4
      %v4972 = vadd.f32 %v4970, %v4971
      %v4973 = vrot.slane %v4972, 2
      %v4974 = vadd.f32 %v4972, %v4973
      %v4975 = vrot.slane %v4974, 1
      %v4976 = vadd.f32 %v4974, %v4975
      %v4977 = vmax.f32 %v4969, 1e-24
      %v4978 = vmax.f32 %v4976, 1e-24
      %v4979 = vrsqrt.pop %v4977
      %v4980 = vrsqrt.pop %v4978
      %v4981 = vmax.f32 %v4944, 0.0001
      %v4982 = vmax.f32 %v4946, 0.0001
      %v4983 = vmax.f32 %v4948, 0.0001
      %v4984 = vmax.f32 %v4950, 0.0001
      %v4985 = vmin.f32 %v4981, 0.9999
      %v4986 = vmin.f32 %v4982, 0.9999
      %v4987 = vmin.f32 %v4983, 0.9999
      %v4988 = vmin.f32 %v4984, 0.9999
      %v4989 = vsel %vm4913, 1, 0
      %v4990 = vsel %vm4914, 1, 0
      %vm4991 = vcmp.eq.s32.totalorder %v4989, 1
      %vm4992 = vcmp.eq.s32.totalorder %v4990, 1
      %v4993 = vsel %vm4991, %v4985, %v4902
      %v4994 = vsel %vm4991, %v4986, %v4904
      %v4995 = vsel %vm4992, %v4987, %v4906
      %v4996 = vsel %vm4992, %v4988, %v4908
      %v4997 = vsub.f32 %v4944, 0.5
      %v4998 = vsub.f32 %v4946, 0.5
      %v4999 = vsub.f32 %v4948, 0.5
      %v5000 = vsub.f32 %v4950, 0.5
      %v5001 = vsel %vm4919, 1, 0
      %v5002 = vsel %vm4920, 1, 0
      %vm5003 = vcmp.eq.s32.totalorder %v5001, 1
      %vm5004 = vcmp.eq.s32.totalorder %v5002, 1
      %v5005 = vsel %vm5003, %v4997, %v4993
      %v5006 = vsel %vm5003, %v4998, %v4994
      %v5007 = vsel %vm5004, %v4999, %v4995
      %v5008 = vsel %vm5004, %v5000, %v4996
      %v5009 = vmul.f32 %v4902, %v4979
      %v5010 = vmul.f32 %v4904, %v4980
      %v5011 = vmul.f32 %v4906, %v4979
      %v5012 = vmul.f32 %v4908, %v4980
      %v5013 = vsel %vm4957, %v5009, %v5005
      %v5014 = vsel %vm4957, %v5010, %v5006
      %v5015 = vsel %vm4958, %v5011, %v5007
      %v5016 = vsel %vm4958, %v5012, %v5008
      %5017 = vst [vmem:[%s262] sm:$0xff] %v5013
      %5018 = vst [vmem:[%s262 + $0x8] sm:$0xff] %v5014
      %5019 = vst [vmem:[%s262 + $0x10] sm:$0xff] %v5015
      %5020 = vst [vmem:[%s262 + $0x18] sm:$0xff] %v5016
      %s5021 = smul.u32 2, %s21
      %p5022 = scmp.lt.s32.totalorder %s20, 1
      %s5023 = scalar_select %p5022, %s20, 1
      %p5024 = scmp.lt.s32.totalorder %s5021, 1
      %s5025 = scalar_select %p5024, %s5021, 1
      %s5026 = smul.addr %s5023, 4
      %s5027 = sadd.s32 %s5025, %s5026
      %s5028 = smul.addr %s5027, 8
      %s5029 = scalar_lea.vmem %s5, %s5028
      // Predicated region
      $region41: #{smoke_predictor_forward.1} parent=39 // pred_check
        %p5030 = pneg %p160
      $region42: #{smoke_predictor_forward.1} parent=39 // pred_check_branch
        %5032 = sbr.rel (%p5030) target = $region44
      $region43: #{smoke_predictor_forward.1} parent=39 // pred_region
        %s5033 = smul.u32 2, %s21
      $region44: #{smoke_predictor_forward.1} parent=39 // pred_fallthru
        _
    $region40: #{smoke_predictor_forward.1} parent=5 // pred_fallthru
      _
    %p5034 = scmp.le.s32.totalorder 2, %s11
    // Predicated region
    $region45: #{smoke_predictor_forward.1} parent=5 // pred_check
      %p5035 = pneg %p5034
    $region46: #{smoke_predictor_forward.1} parent=5 // pred_check_branch
      %5037 = sbr.rel (%p5035) target = $region48
    $region47: #{smoke_predictor_forward.1} parent=5 // pred_region
      %s5038 = ssub.s32 %s11, 2
      // Predicated region
      $region49: #{smoke_predictor_forward.1} parent=47 // pred_check
        %p5039 = pneg %p166
      $region50: #{smoke_predictor_forward.1} parent=47 // pred_check_branch
        %5041 = sbr.rel (%p5039) target = $region52
      $region51: #{smoke_predictor_forward.1} parent=47 // pred_region
        %s5042 = smul.u32 2, %s23
        %p5043 = scmp.lt.s32.totalorder %s22, 1
        %s5044 = scalar_select %p5043, %s22, 1
        %p5045 = scmp.lt.s32.totalorder %s5042, 1
        %s5046 = scalar_select %p5045, %s5042, 1
        %s5047 = smul.addr %s5044, 4
        %s5048 = sadd.s32 %s5046, %s5047
        %s5049 = smul.addr %s5048, 8
        %s5050 = scalar_lea.vmem %s5, %s5049
      $region52: #{smoke_predictor_forward.1} parent=47 // pred_fallthru
        _
    $region48: #{smoke_predictor_forward.1} parent=5 // pred_fallthru
      _
  $region6: #{smoke_predictor_forward.1} parent=0 // loop_footer
    %s15 = sadd.s32 1, %s11
  $region7: #{smoke_predictor_forward.1} parent=0 // loop_footer_branch
    %10 = sbr.rel target = $region3
  $region8: #{smoke_predictor_forward.1} parent=0 // loop_exit
    _

</llo_original>
